<compile_context>
chip_gen: v7x
topology: tpu7x:2x2x1
jax: 0.10.0
libtpu: 0.0.40
codegen_flags: <defaults>
</compile_context>

<pallas_src>
import jax
import jax.numpy as jnp
from jax import lax
from jax.experimental import pallas as pl
from jax.experimental.pallas import tpu as pltpu


def _round_up(x, m):
    return (x + m - 1) // m * m


# ----------------------------------------------------------------------------
# Recurrence kernel: emits h_seq; h/c carried in resident output blocks.
# ----------------------------------------------------------------------------
def _make_lstm_kernel(t_blk, e_pad, h_pad, seq_len, s_pad):
    def kernel(x_ref, w_ref, b_ref, h0_ref, c0_ref,
               hseq_ref, hN_ref, cN_ref, xh_sc):
        tb = pl.program_id(0)

        @pl.when(tb == 0)
        def _():
            hN_ref[...] = h0_ref[...]
            cN_ref[...] = c0_ref[...]

        def step(s, carry):
            h_prev, c_prev = carry
            # Single fused gate matmul: [x_t | h_prev] @ [W_ih^T ; W_hh^T].
            xh_sc[:, :e_pad] = x_ref[s]
            xh_sc[:, e_pad:] = h_prev
            gates = (jnp.dot(xh_sc[...], w_ref[...],
                             preferred_element_type=jnp.float32)
                     + b_ref[...])
            # PyTorch gate order i, f, g, o; slices lane-aligned (h_pad % 128 == 0).
            i_g = jax.nn.sigmoid(gates[:, 0 * h_pad:1 * h_pad])
            f_g = jax.nn.sigmoid(gates[:, 1 * h_pad:2 * h_pad])
            g_g = jnp.tanh(gates[:, 2 * h_pad:3 * h_pad])
            o_g = jax.nn.sigmoid(gates[:, 3 * h_pad:4 * h_pad])
            c_new = f_g * c_prev + i_g * g_g
            h_new = o_g * jnp.tanh(c_new)
            if s_pad != seq_len:  # trace-time check; mask padded tail timesteps
                keep = (tb * t_blk + s) < seq_len
                h_new = jnp.where(keep, h_new, h_prev)
                c_new = jnp.where(keep, c_new, c_prev)
            hseq_ref[s] = h_new
            return (h_new, c_new)

        h, c = lax.fori_loop(0, t_blk, step, (hN_ref[...], cN_ref[...]),
                             unroll=True)
        hN_ref[...] = h
        cN_ref[...] = c

    return kernel


# ----------------------------------------------------------------------------
# Decoupled linear head: batched (S*B, H) @ (H, V) matmul, parallel grid.
# ----------------------------------------------------------------------------
def _head_kernel(h_ref, w_ref, b_ref, o_ref):
    o_ref[...] = (jnp.dot(h_ref[...], w_ref[...],
                          preferred_element_type=jnp.float32)
                  + b_ref[...])


def lstm_forward(indices, hidden, params, *, t_blk=None):
    """indices: int32 (S, B, 1); hidden: (h0, c0) each (1, B, H).

    Returns (out, (h_n, c_n)) with out: (S, B, vocab), h_n/c_n: (1, B, H).
    """
    h0, c0 = hidden
    S, B, _ = indices.shape
    emb = params["embedding"]                 # (V, E)
    V, E = emb.shape
    H = params["w_hh"].shape[1]
    f32 = jnp.float32

    # ---- hardware-aligned padded sizes ----
    B_p = _round_up(B, 8)
    E_p = _round_up(E, 128)
    H_p = _round_up(H, 128)
    V_p = _round_up(V, 128)
    if t_blk is None:
        t_blk = min(S, 16)
    S_p = _round_up(S, t_blk)

    # Embedding lookup stays as plain-JAX gather glue.
    # TODO(synk): fuse embedding gather into the kernel via scalar prefetch.
    x_emb = jnp.take(emb, indices[:, :, 0], axis=0).astype(f32)      # (S, B, E)
    x_p = jnp.zeros((S_p, B_p, E_p), f32).at[:S, :B, :E].set(x_emb)

    # Fused, gate-padded recurrent weight (E_p + H_p, 4*H_p), PyTorch i,f,g,o order.
    w_ih_g = params["w_ih"].reshape(4, H, E)
    w_hh_g = params["w_hh"].reshape(4, H, H)
    W = jnp.zeros((E_p + H_p, 4, H_p), f32)
    W = W.at[:E, :, :H].set(jnp.transpose(w_ih_g, (2, 0, 1)))
    W = W.at[E_p:E_p + H, :, :H].set(jnp.transpose(w_hh_g, (2, 0, 1)))
    W = W.reshape(E_p + H_p, 4 * H_p)

    b = (params["b_ih"] + params["b_hh"]).reshape(4, H)
    b_p = jnp.zeros((4, H_p), f32).at[:, :H].set(b).reshape(1, 4 * H_p)

    h0_p = jnp.zeros((B_p, H_p), f32).at[:B, :H].set(h0[0].astype(f32))
    c0_p = jnp.zeros((B_p, H_p), f32).at[:B, :H].set(c0[0].astype(f32))

    grid_spec = pltpu.PrefetchScalarGridSpec(
        num_scalar_prefetch=0,
        grid=(S_p // t_blk,),
        in_specs=[
            pl.BlockSpec((t_blk, B_p, E_p), lambda t: (t, 0, 0)),   # x time-block
            pl.BlockSpec((E_p + H_p, 4 * H_p), lambda t: (0, 0)),   # fused W
            pl.BlockSpec((1, 4 * H_p), lambda t: (0, 0)),           # fused bias
            pl.BlockSpec((B_p, H_p), lambda t: (0, 0)),             # h0
            pl.BlockSpec((B_p, H_p), lambda t: (0, 0)),             # c0
        ],
        out_specs=[
            pl.BlockSpec((t_blk, B_p, H_p), lambda t: (t, 0, 0)),   # h_seq block
            pl.BlockSpec((B_p, H_p), lambda t: (0, 0)),             # h_n (resident carry)
            pl.BlockSpec((B_p, H_p), lambda t: (0, 0)),             # c_n (resident carry)
        ],
        scratch_shapes=[
            pltpu.VMEM((B_p, E_p + H_p), f32),                      # [x | h] staging
        ],
    )

    h_seq, h_n, c_n = pl.pallas_call(
        _make_lstm_kernel(t_blk, E_p, H_p, S, S_p),
        out_shape=(
            jax.ShapeDtypeStruct((S_p, B_p, H_p), f32),
            jax.ShapeDtypeStruct((B_p, H_p), f32),
            jax.ShapeDtypeStruct((B_p, H_p), f32),
        ),
        grid_spec=grid_spec,
        compiler_params=pltpu.CompilerParams(
            dimension_semantics=("arbitrary",)),      # recurrence is sequential
    )(x_p, W, b_p, h0_p, c0_p)

    # ---- linear head batched over all S*B rows (fills the MXU) ----
    wlin_p = jnp.zeros((H_p, V_p), f32).at[:H, :V].set(params["w_lin"].T)
    blin_p = jnp.zeros((1, V_p), f32).at[0, :V].set(params["b_lin"])

    M = S_p * B_p
    tm = 128 if M >= 128 else _round_up(M, 8)
    M_p = _round_up(M, tm)
    tn = 256 if V_p % 256 == 0 else 128

    h_flat = h_seq.reshape(M, H_p)
    if M_p != M:
        h_flat = jnp.zeros((M_p, H_p), f32).at[:M].set(h_flat)

    logits_flat = pl.pallas_call(
        _head_kernel,
        out_shape=jax.ShapeDtypeStruct((M_p, V_p), f32),
        grid_spec=pltpu.PrefetchScalarGridSpec(
            num_scalar_prefetch=0,
            grid=(M_p // tm, V_p // tn),
            in_specs=[
                pl.BlockSpec((tm, H_p), lambda i, j: (i, 0)),
                pl.BlockSpec((H_p, tn), lambda i, j: (0, j)),
                pl.BlockSpec((1, tn), lambda i, j: (0, j)),
            ],
            out_specs=pl.BlockSpec((tm, tn), lambda i, j: (i, j)),
        ),
        compiler_params=pltpu.CompilerParams(
            dimension_semantics=("parallel", "parallel")),
    )(h_flat, wlin_p, blin_p)

    # TODO(synk): dropout (p=0.2) is identity in eval mode; not applied.
    logits = logits_flat[:M].reshape(S_p, B_p, V_p)[:S, :B, :V]
    return logits, (h_n[:B, :H][None], c_n[:B, :H][None])


def lstm_forward_ref(indices, hidden, params):
    """Pure-JAX reference (lax.scan) for numerical verification."""
    h0, c0 = hidden
    H = params["w_hh"].shape[1]
    x_emb = jnp.take(params["embedding"], indices[:, :, 0], axis=0)
    b = params["b_ih"] + params["b_hh"]

    def step(carry, x_t):
        h, c = carry
        gates = x_t @ params["w_ih"].T + h @ params["w_hh"].T + b
        i = jax.nn.sigmoid(gates[:, 0 * H:1 * H])
        f = jax.nn.sigmoid(gates[:, 1 * H:2 * H])
        g = jnp.tanh(gates[:, 2 * H:3 * H])
        o = jax.nn.sigmoid(gates[:, 3 * H:4 * H])
        c_new = f * c + i * g
        h_new = o * jnp.tanh(c_new)
        return (h_new, c_new), h_new

    (h_n, c_n), h_seq = lax.scan(step, (h0[0], c0[0]), x_emb)
    out = h_seq @ params["w_lin"].T + params["b_lin"]
    return out, (h_n[None], c_n[None])


def init_params(key, vocab, emb, hidden):
    ks = jax.random.split(key, 8)
    s = 0.1
    return {
        "embedding": jax.random.normal(ks[0], (vocab, emb), jnp.float32) * s,
        "w_ih": jax.random.normal(ks[1], (4 * hidden, emb), jnp.float32) * s,
        "w_hh": jax.random.normal(ks[2], (4 * hidden, hidden), jnp.float32) * s,
        "b_ih": jax.random.normal(ks[3], (4 * hidden,), jnp.float32) * s,
        "b_hh": jax.random.normal(ks[4], (4 * hidden,), jnp.float32) * s,
        "w_lin": jax.random.normal(ks[5], (vocab, hidden), jnp.float32) * s,
        "b_lin": jax.random.normal(ks[6], (vocab,), jnp.float32) * s,
    }


if __name__ == "__main__":
    VOCAB, EMB, HIDDEN = 32, 16, 32
    SEQ, BATCH, NUM_LAYERS = 8, 2, 1

    key = jax.random.PRNGKey(0)
    k_param, k_idx = jax.random.split(key)
    params = init_params(k_param, VOCAB, EMB, HIDDEN)

    indices = jax.random.randint(k_idx, (SEQ, BATCH, 1), 0, VOCAB, jnp.int32)
    hidden = (jnp.zeros((NUM_LAYERS, BATCH, HIDDEN), jnp.float32),
              jnp.zeros((NUM_LAYERS, BATCH, HIDDEN), jnp.float32))

    out, (h_n, c_n) = lstm_forward(indices, hidden, params)
    jax.block_until_ready((out, h_n, c_n))

    out_r, (h_r, c_r) = lstm_forward_ref(indices, hidden, params)
    assert out.shape == (SEQ, BATCH, VOCAB)
    assert h_n.shape == (NUM_LAYERS, BATCH, HIDDEN)
    assert c_n.shape == (NUM_LAYERS, BATCH, HIDDEN)
    assert jnp.allclose(out, out_r, atol=1e-4), "logits mismatch vs reference"
    assert jnp.allclose(h_n, h_r, atol=1e-4), "h_n mismatch vs reference"
    assert jnp.allclose(c_n, c_r, atol=1e-4), "c_n mismatch vs reference"

    print("KERNEL_OK")
</pallas_src>

<mosaic_0001>
module attributes {stable_mosaic.version = 11 : i64} {
  func.func @kernel(%arg0: i32, %arg1: memref<8x8x128xf32, #tpu.memory_space<vmem>>, %arg2: memref<256x512xf32, #tpu.memory_space<vmem>>, %arg3: memref<1x512xf32, #tpu.memory_space<vmem>>, %arg4: memref<8x128xf32, #tpu.memory_space<vmem>>, %arg5: memref<8x128xf32, #tpu.memory_space<vmem>>, %arg6: memref<8x8x128xf32, #tpu.memory_space<vmem>>, %arg7: memref<8x128xf32, #tpu.memory_space<vmem>>, %arg8: memref<8x128xf32, #tpu.memory_space<vmem>>, %arg9: memref<8x256xf32, #tpu.memory_space<vmem>>) attributes {dimension_semantics = [#tpu.dimension_semantics<arbitrary>], iteration_bounds = array<i64: 1>, scalar_prefetch = 0 : i64, scratch_operands = 1 : i64, tpu.core_type = #tpu.core_type<tc>, window_params = [{transform_indices = @transform_0, window_bounds = array<i64: 8, 8, 128>}, {pipeline_mode = #tpu.pipeline_mode<synchronous>, transform_indices = @transform_1, window_bounds = array<i64: 256, 512>}, {pipeline_mode = #tpu.pipeline_mode<synchronous>, transform_indices = @transform_2, window_bounds = array<i64: 1, 512>}, {pipeline_mode = #tpu.pipeline_mode<synchronous>, transform_indices = @transform_3, window_bounds = array<i64: 8, 128>}, {pipeline_mode = #tpu.pipeline_mode<synchronous>, transform_indices = @transform_4, window_bounds = array<i64: 8, 128>}, {transform_indices = @transform_5, window_bounds = array<i64: 8, 8, 128>}, {pipeline_mode = #tpu.pipeline_mode<synchronous>, transform_indices = @transform_6, window_bounds = array<i64: 8, 128>}, {pipeline_mode = #tpu.pipeline_mode<synchronous>, transform_indices = @transform_7, window_bounds = array<i64: 8, 128>}]} {
    %c0_i32 = arith.constant 0 : i32
    %0 = arith.cmpi eq, %arg0, %c0_i32 : i32
    %1 = arith.extui %0 : i1 to i32
    %c0_i32_0 = arith.constant 0 : i32
    %2 = arith.cmpi ne, %1, %c0_i32_0 : i32
    scf.if %2 {
      %c0_151 = arith.constant 0 : index
      %c0_152 = arith.constant 0 : index
      %327 = vector.load %arg4[%c0_151, %c0_152] : memref<8x128xf32, #tpu.memory_space<vmem>>, vector<8x128xf32>
      %c0_153 = arith.constant 0 : index
      %c0_154 = arith.constant 0 : index
      %328 = vector.load %arg7[%c0_153, %c0_154] : memref<8x128xf32, #tpu.memory_space<vmem>>, vector<8x128xf32>
      tpu.vector_store %arg7[%c0_153, %c0_154], %327 {strides = array<i32>} : memref<8x128xf32, #tpu.memory_space<vmem>>, vector<8x128xf32>,
      %c0_155 = arith.constant 0 : index
      %c0_156 = arith.constant 0 : index
      %329 = vector.load %arg5[%c0_155, %c0_156] : memref<8x128xf32, #tpu.memory_space<vmem>>, vector<8x128xf32>
      %c0_157 = arith.constant 0 : index
      %c0_158 = arith.constant 0 : index
      %330 = vector.load %arg8[%c0_157, %c0_158] : memref<8x128xf32, #tpu.memory_space<vmem>>, vector<8x128xf32>
      tpu.vector_store %arg8[%c0_157, %c0_158], %329 {strides = array<i32>} : memref<8x128xf32, #tpu.memory_space<vmem>>, vector<8x128xf32>,
    } else {
    }
    %c0 = arith.constant 0 : index
    %c0_1 = arith.constant 0 : index
    %3 = vector.load %arg7[%c0, %c0_1] : memref<8x128xf32, #tpu.memory_space<vmem>>, vector<8x128xf32>
    %c0_2 = arith.constant 0 : index
    %c0_3 = arith.constant 0 : index
    %4 = vector.load %arg8[%c0_2, %c0_3] : memref<8x128xf32, #tpu.memory_space<vmem>>, vector<8x128xf32>
    %c0_i32_4 = arith.constant 0 : i32
    %5 = arith.index_cast %c0_i32_4 : i32 to index
    %c0_5 = arith.constant 0 : index
    %c0_6 = arith.constant 0 : index
    %6 = vector.load %arg1[%5, %c0_5, %c0_6] : memref<8x8x128xf32, #tpu.memory_space<vmem>>, vector<1x8x128xf32>
    %7 = vector.shape_cast %6 : vector<1x8x128xf32> to vector<8x128xf32>
    %c0_7 = arith.constant 0 : index
    %c0_8 = arith.constant 0 : index
    %8 = vector.load %arg9[%c0_7, %c0_8] : memref<8x256xf32, #tpu.memory_space<vmem>>, vector<8x128xf32>
    tpu.vector_store %arg9[%c0_7, %c0_8], %7 {strides = array<i32>} : memref<8x256xf32, #tpu.memory_space<vmem>>, vector<8x128xf32>,
    %c0_9 = arith.constant 0 : index
    %c128 = arith.constant 128 : index
    %9 = vector.load %arg9[%c0_9, %c128] : memref<8x256xf32, #tpu.memory_space<vmem>>, vector<8x128xf32>
    tpu.vector_store %arg9[%c0_9, %c128], %3 {strides = array<i32>} : memref<8x256xf32, #tpu.memory_space<vmem>>, vector<8x128xf32>,
    %c0_10 = arith.constant 0 : index
    %c0_11 = arith.constant 0 : index
    %10 = vector.load %arg9[%c0_10, %c0_11] : memref<8x256xf32, #tpu.memory_space<vmem>>, vector<8x256xf32>
    %c0_12 = arith.constant 0 : index
    %c0_13 = arith.constant 0 : index
    %11 = vector.load %arg2[%c0_12, %c0_13] : memref<256x512xf32, #tpu.memory_space<vmem>>, vector<256x512xf32>
    %cst = arith.constant dense<0.000000e+00> : vector<8x512xf32>
    %12 = tpu.matmul %10, %11, %cst {dimension_numbers = #tpu.dot_dimension_numbers<[1], [0], [0], [1], [0, 0, 1, 1], [], []>} : vector<8x256xf32>, vector<256x512xf32>, vector<8x512xf32> -> vector<8x512xf32>
    %c0_14 = arith.constant 0 : index
    %c0_15 = arith.constant 0 : index
    %13 = vector.load %arg3[%c0_14, %c0_15] : memref<1x512xf32, #tpu.memory_space<vmem>>, vector<1x512xf32>
    %14 = vector.broadcast %13 : vector<1x512xf32> to vector<8x512xf32>
    %15 = arith.addf %12, %14 : vector<8x512xf32>
    %16 = vector.extract_strided_slice %15 {offsets = [0, 0], sizes = [8, 128], strides = [1, 1]} : vector<8x512xf32> to vector<8x128xf32>
    %17 = arith.negf %16 : vector<8x128xf32>
    %18 = math.exp %17 : vector<8x128xf32>
    %cst_16 = arith.constant 1.000000e+00 : f32
    %19 = vector.broadcast %cst_16 : f32 to vector<8x128xf32>
    %20 = arith.addf %19, %18 : vector<8x128xf32>
    %21 = arith.divf %19, %20 : vector<8x128xf32>
    %22 = vector.extract_strided_slice %15 {offsets = [0, 128], sizes = [8, 128], strides = [1, 1]} : vector<8x512xf32> to vector<8x128xf32>
    %23 = arith.negf %22 : vector<8x128xf32>
    %24 = math.exp %23 : vector<8x128xf32>
    %cst_17 = arith.constant 1.000000e+00 : f32
    %25 = vector.broadcast %cst_17 : f32 to vector<8x128xf32>
    %26 = arith.addf %25, %24 : vector<8x128xf32>
    %27 = arith.divf %25, %26 : vector<8x128xf32>
    %28 = vector.extract_strided_slice %15 {offsets = [0, 256], sizes = [8, 128], strides = [1, 1]} : vector<8x512xf32> to vector<8x128xf32>
    %29 = math.tanh %28 : vector<8x128xf32>
    %30 = vector.extract_strided_slice %15 {offsets = [0, 384], sizes = [8, 128], strides = [1, 1]} : vector<8x512xf32> to vector<8x128xf32>
    %31 = arith.negf %30 : vector<8x128xf32>
    %32 = math.exp %31 : vector<8x128xf32>
    %cst_18 = arith.constant 1.000000e+00 : f32
    %33 = vector.broadcast %cst_18 : f32 to vector<8x128xf32>
    %34 = arith.addf %33, %32 : vector<8x128xf32>
    %35 = arith.divf %33, %34 : vector<8x128xf32>
    %36 = arith.mulf %27, %4 : vector<8x128xf32>
    %37 = arith.mulf %21, %29 : vector<8x128xf32>
    %38 = arith.addf %36, %37 : vector<8x128xf32>
    %39 = math.tanh %38 : vector<8x128xf32>
    %40 = arith.mulf %35, %39 : vector<8x128xf32>
    %41 = arith.index_cast %c0_i32_4 : i32 to index
    %c0_19 = arith.constant 0 : index
    %c0_20 = arith.constant 0 : index
    %42 = vector.load %arg6[%41, %c0_19, %c0_20] : memref<8x8x128xf32, #tpu.memory_space<vmem>>, vector<1x8x128xf32>
    %43 = vector.shape_cast %42 : vector<1x8x128xf32> to vector<8x128xf32>
    %44 = vector.shape_cast %40 : vector<8x128xf32> to vector<1x8x128xf32>
    tpu.vector_store %arg6[%41, %c0_19, %c0_20], %44 {strides = array<i32>} : memref<8x8x128xf32, #tpu.memory_space<vmem>>, vector<1x8x128xf32>,
    %c1_i32 = arith.constant 1 : i32
    %45 = arith.index_cast %c1_i32 : i32 to index
    %c0_21 = arith.constant 0 : index
    %c0_22 = arith.constant 0 : index
    %46 = vector.load %arg1[%45, %c0_21, %c0_22] : memref<8x8x128xf32, #tpu.memory_space<vmem>>, vector<1x8x128xf32>
    %47 = vector.shape_cast %46 : vector<1x8x128xf32> to vector<8x128xf32>
    %c0_23 = arith.constant 0 : index
    %c0_24 = arith.constant 0 : index
    %48 = vector.load %arg9[%c0_23, %c0_24] : memref<8x256xf32, #tpu.memory_space<vmem>>, vector<8x128xf32>
    tpu.vector_store %arg9[%c0_23, %c0_24], %47 {strides = array<i32>} : memref<8x256xf32, #tpu.memory_space<vmem>>, vector<8x128xf32>,
    %c0_25 = arith.constant 0 : index
    %c128_26 = arith.constant 128 : index
    %49 = vector.load %arg9[%c0_25, %c128_26] : memref<8x256xf32, #tpu.memory_space<vmem>>, vector<8x128xf32>
    tpu.vector_store %arg9[%c0_25, %c128_26], %40 {strides = array<i32>} : memref<8x256xf32, #tpu.memory_space<vmem>>, vector<8x128xf32>,
    %c0_27 = arith.constant 0 : index
    %c0_28 = arith.constant 0 : index
    %50 = vector.load %arg9[%c0_27, %c0_28] : memref<8x256xf32, #tpu.memory_space<vmem>>, vector<8x256xf32>
    %c0_29 = arith.constant 0 : index
    %c0_30 = arith.constant 0 : index
    %51 = vector.load %arg2[%c0_29, %c0_30] : memref<256x512xf32, #tpu.memory_space<vmem>>, vector<256x512xf32>
    %cst_31 = arith.constant dense<0.000000e+00> : vector<8x512xf32>
    %52 = tpu.matmul %50, %51, %cst_31 {dimension_numbers = #tpu.dot_dimension_numbers<[1], [0], [0], [1], [0, 0, 1, 1], [], []>} : vector<8x256xf32>, vector<256x512xf32>, vector<8x512xf32> -> vector<8x512xf32>
    %c0_32 = arith.constant 0 : index
    %c0_33 = arith.constant 0 : index
    %53 = vector.load %arg3[%c0_32, %c0_33] : memref<1x512xf32, #tpu.memory_space<vmem>>, vector<1x512xf32>
    %54 = vector.broadcast %53 : vector<1x512xf32> to vector<8x512xf32>
    %55 = arith.addf %52, %54 : vector<8x512xf32>
    %56 = vector.extract_strided_slice %55 {offsets = [0, 0], sizes = [8, 128], strides = [1, 1]} : vector<8x512xf32> to vector<8x128xf32>
    %57 = arith.negf %56 : vector<8x128xf32>
    %58 = math.exp %57 : vector<8x128xf32>
    %cst_34 = arith.constant 1.000000e+00 : f32
    %59 = vector.broadcast %cst_34 : f32 to vector<8x128xf32>
    %60 = arith.addf %59, %58 : vector<8x128xf32>
    %61 = arith.divf %59, %60 : vector<8x128xf32>
    %62 = vector.extract_strided_slice %55 {offsets = [0, 128], sizes = [8, 128], strides = [1, 1]} : vector<8x512xf32> to vector<8x128xf32>
    %63 = arith.negf %62 : vector<8x128xf32>
    %64 = math.exp %63 : vector<8x128xf32>
    %cst_35 = arith.constant 1.000000e+00 : f32
    %65 = vector.broadcast %cst_35 : f32 to vector<8x128xf32>
    %66 = arith.addf %65, %64 : vector<8x128xf32>
    %67 = arith.divf %65, %66 : vector<8x128xf32>
    %68 = vector.extract_strided_slice %55 {offsets = [0, 256], sizes = [8, 128], strides = [1, 1]} : vector<8x512xf32> to vector<8x128xf32>
    %69 = math.tanh %68 : vector<8x128xf32>
    %70 = vector.extract_strided_slice %55 {offsets = [0, 384], sizes = [8, 128], strides = [1, 1]} : vector<8x512xf32> to vector<8x128xf32>
    %71 = arith.negf %70 : vector<8x128xf32>
    %72 = math.exp %71 : vector<8x128xf32>
    %cst_36 = arith.constant 1.000000e+00 : f32
    %73 = vector.broadcast %cst_36 : f32 to vector<8x128xf32>
    %74 = arith.addf %73, %72 : vector<8x128xf32>
    %75 = arith.divf %73, %74 : vector<8x128xf32>
    %76 = arith.mulf %67, %38 : vector<8x128xf32>
    %77 = arith.mulf %61, %69 : vector<8x128xf32>
    %78 = arith.addf %76, %77 : vector<8x128xf32>
    %79 = math.tanh %78 : vector<8x128xf32>
    %80 = arith.mulf %75, %79 : vector<8x128xf32>
    %81 = arith.index_cast %c1_i32 : i32 to index
    %c0_37 = arith.constant 0 : index
    %c0_38 = arith.constant 0 : index
    %82 = vector.load %arg6[%81, %c0_37, %c0_38] : memref<8x8x128xf32, #tpu.memory_space<vmem>>, vector<1x8x128xf32>
    %83 = vector.shape_cast %82 : vector<1x8x128xf32> to vector<8x128xf32>
    %84 = vector.shape_cast %80 : vector<8x128xf32> to vector<1x8x128xf32>
    tpu.vector_store %arg6[%81, %c0_37, %c0_38], %84 {strides = array<i32>} : memref<8x8x128xf32, #tpu.memory_space<vmem>>, vector<1x8x128xf32>,
    %c2_i32 = arith.constant 2 : i32
    %85 = arith.index_cast %c2_i32 : i32 to index
    %c0_39 = arith.constant 0 : index
    %c0_40 = arith.constant 0 : index
    %86 = vector.load %arg1[%85, %c0_39, %c0_40] : memref<8x8x128xf32, #tpu.memory_space<vmem>>, vector<1x8x128xf32>
    %87 = vector.shape_cast %86 : vector<1x8x128xf32> to vector<8x128xf32>
    %c0_41 = arith.constant 0 : index
    %c0_42 = arith.constant 0 : index
    %88 = vector.load %arg9[%c0_41, %c0_42] : memref<8x256xf32, #tpu.memory_space<vmem>>, vector<8x128xf32>
    tpu.vector_store %arg9[%c0_41, %c0_42], %87 {strides = array<i32>} : memref<8x256xf32, #tpu.memory_space<vmem>>, vector<8x128xf32>,
    %c0_43 = arith.constant 0 : index
    %c128_44 = arith.constant 128 : index
    %89 = vector.load %arg9[%c0_43, %c128_44] : memref<8x256xf32, #tpu.memory_space<vmem>>, vector<8x128xf32>
    tpu.vector_store %arg9[%c0_43, %c128_44], %80 {strides = array<i32>} : memref<8x256xf32, #tpu.memory_space<vmem>>, vector<8x128xf32>,
    %c0_45 = arith.constant 0 : index
    %c0_46 = arith.constant 0 : index
    %90 = vector.load %arg9[%c0_45, %c0_46] : memref<8x256xf32, #tpu.memory_space<vmem>>, vector<8x256xf32>
    %c0_47 = arith.constant 0 : index
    %c0_48 = arith.constant 0 : index
    %91 = vector.load %arg2[%c0_47, %c0_48] : memref<256x512xf32, #tpu.memory_space<vmem>>, vector<256x512xf32>
    %cst_49 = arith.constant dense<0.000000e+00> : vector<8x512xf32>
    %92 = tpu.matmul %90, %91, %cst_49 {dimension_numbers = #tpu.dot_dimension_numbers<[1], [0], [0], [1], [0, 0, 1, 1], [], []>} : vector<8x256xf32>, vector<256x512xf32>, vector<8x512xf32> -> vector<8x512xf32>
    %c0_50 = arith.constant 0 : index
    %c0_51 = arith.constant 0 : index
    %93 = vector.load %arg3[%c0_50, %c0_51] : memref<1x512xf32, #tpu.memory_space<vmem>>, vector<1x512xf32>
    %94 = vector.broadcast %93 : vector<1x512xf32> to vector<8x512xf32>
    %95 = arith.addf %92, %94 : vector<8x512xf32>
    %96 = vector.extract_strided_slice %95 {offsets = [0, 0], sizes = [8, 128], strides = [1, 1]} : vector<8x512xf32> to vector<8x128xf32>
    %97 = arith.negf %96 : vector<8x128xf32>
    %98 = math.exp %97 : vector<8x128xf32>
    %cst_52 = arith.constant 1.000000e+00 : f32
    %99 = vector.broadcast %cst_52 : f32 to vector<8x128xf32>
    %100 = arith.addf %99, %98 : vector<8x128xf32>
    %101 = arith.divf %99, %100 : vector<8x128xf32>
    %102 = vector.extract_strided_slice %95 {offsets = [0, 128], sizes = [8, 128], strides = [1, 1]} : vector<8x512xf32> to vector<8x128xf32>
    %103 = arith.negf %102 : vector<8x128xf32>
    %104 = math.exp %103 : vector<8x128xf32>
    %cst_53 = arith.constant 1.000000e+00 : f32
    %105 = vector.broadcast %cst_53 : f32 to vector<8x128xf32>
    %106 = arith.addf %105, %104 : vector<8x128xf32>
    %107 = arith.divf %105, %106 : vector<8x128xf32>
    %108 = vector.extract_strided_slice %95 {offsets = [0, 256], sizes = [8, 128], strides = [1, 1]} : vector<8x512xf32> to vector<8x128xf32>
    %109 = math.tanh %108 : vector<8x128xf32>
    %110 = vector.extract_strided_slice %95 {offsets = [0, 384], sizes = [8, 128], strides = [1, 1]} : vector<8x512xf32> to vector<8x128xf32>
    %111 = arith.negf %110 : vector<8x128xf32>
    %112 = math.exp %111 : vector<8x128xf32>
    %cst_54 = arith.constant 1.000000e+00 : f32
    %113 = vector.broadcast %cst_54 : f32 to vector<8x128xf32>
    %114 = arith.addf %113, %112 : vector<8x128xf32>
    %115 = arith.divf %113, %114 : vector<8x128xf32>
    %116 = arith.mulf %107, %78 : vector<8x128xf32>
    %117 = arith.mulf %101, %109 : vector<8x128xf32>
    %118 = arith.addf %116, %117 : vector<8x128xf32>
    %119 = math.tanh %118 : vector<8x128xf32>
    %120 = arith.mulf %115, %119 : vector<8x128xf32>
    %121 = arith.index_cast %c2_i32 : i32 to index
    %c0_55 = arith.constant 0 : index
    %c0_56 = arith.constant 0 : index
    %122 = vector.load %arg6[%121, %c0_55, %c0_56] : memref<8x8x128xf32, #tpu.memory_space<vmem>>, vector<1x8x128xf32>
    %123 = vector.shape_cast %122 : vector<1x8x128xf32> to vector<8x128xf32>
    %124 = vector.shape_cast %120 : vector<8x128xf32> to vector<1x8x128xf32>
    tpu.vector_store %arg6[%121, %c0_55, %c0_56], %124 {strides = array<i32>} : memref<8x8x128xf32, #tpu.memory_space<vmem>>, vector<1x8x128xf32>,
    %c3_i32 = arith.constant 3 : i32
    %125 = arith.index_cast %c3_i32 : i32 to index
    %c0_57 = arith.constant 0 : index
    %c0_58 = arith.constant 0 : index
    %126 = vector.load %arg1[%125, %c0_57, %c0_58] : memref<8x8x128xf32, #tpu.memory_space<vmem>>, vector<1x8x128xf32>
    %127 = vector.shape_cast %126 : vector<1x8x128xf32> to vector<8x128xf32>
    %c0_59 = arith.constant 0 : index
    %c0_60 = arith.constant 0 : index
    %128 = vector.load %arg9[%c0_59, %c0_60] : memref<8x256xf32, #tpu.memory_space<vmem>>, vector<8x128xf32>
    tpu.vector_store %arg9[%c0_59, %c0_60], %127 {strides = array<i32>} : memref<8x256xf32, #tpu.memory_space<vmem>>, vector<8x128xf32>,
    %c0_61 = arith.constant 0 : index
    %c128_62 = arith.constant 128 : index
    %129 = vector.load %arg9[%c0_61, %c128_62] : memref<8x256xf32, #tpu.memory_space<vmem>>, vector<8x128xf32>
    tpu.vector_store %arg9[%c0_61, %c128_62], %120 {strides = array<i32>} : memref<8x256xf32, #tpu.memory_space<vmem>>, vector<8x128xf32>,
    %c0_63 = arith.constant 0 : index
    %c0_64 = arith.constant 0 : index
    %130 = vector.load %arg9[%c0_63, %c0_64] : memref<8x256xf32, #tpu.memory_space<vmem>>, vector<8x256xf32>
    %c0_65 = arith.constant 0 : index
    %c0_66 = arith.constant 0 : index
    %131 = vector.load %arg2[%c0_65, %c0_66] : memref<256x512xf32, #tpu.memory_space<vmem>>, vector<256x512xf32>
    %cst_67 = arith.constant dense<0.000000e+00> : vector<8x512xf32>
    %132 = tpu.matmul %130, %131, %cst_67 {dimension_numbers = #tpu.dot_dimension_numbers<[1], [0], [0], [1], [0, 0, 1, 1], [], []>} : vector<8x256xf32>, vector<256x512xf32>, vector<8x512xf32> -> vector<8x512xf32>
    %c0_68 = arith.constant 0 : index
    %c0_69 = arith.constant 0 : index
    %133 = vector.load %arg3[%c0_68, %c0_69] : memref<1x512xf32, #tpu.memory_space<vmem>>, vector<1x512xf32>
    %134 = vector.broadcast %133 : vector<1x512xf32> to vector<8x512xf32>
    %135 = arith.addf %132, %134 : vector<8x512xf32>
    %136 = vector.extract_strided_slice %135 {offsets = [0, 0], sizes = [8, 128], strides = [1, 1]} : vector<8x512xf32> to vector<8x128xf32>
    %137 = arith.negf %136 : vector<8x128xf32>
    %138 = math.exp %137 : vector<8x128xf32>
    %cst_70 = arith.constant 1.000000e+00 : f32
    %139 = vector.broadcast %cst_70 : f32 to vector<8x128xf32>
    %140 = arith.addf %139, %138 : vector<8x128xf32>
    %141 = arith.divf %139, %140 : vector<8x128xf32>
    %142 = vector.extract_strided_slice %135 {offsets = [0, 128], sizes = [8, 128], strides = [1, 1]} : vector<8x512xf32> to vector<8x128xf32>
    %143 = arith.negf %142 : vector<8x128xf32>
    %144 = math.exp %143 : vector<8x128xf32>
    %cst_71 = arith.constant 1.000000e+00 : f32
    %145 = vector.broadcast %cst_71 : f32 to vector<8x128xf32>
    %146 = arith.addf %145, %144 : vector<8x128xf32>
    %147 = arith.divf %145, %146 : vector<8x128xf32>
    %148 = vector.extract_strided_slice %135 {offsets = [0, 256], sizes = [8, 128], strides = [1, 1]} : vector<8x512xf32> to vector<8x128xf32>
    %149 = math.tanh %148 : vector<8x128xf32>
    %150 = vector.extract_strided_slice %135 {offsets = [0, 384], sizes = [8, 128], strides = [1, 1]} : vector<8x512xf32> to vector<8x128xf32>
    %151 = arith.negf %150 : vector<8x128xf32>
    %152 = math.exp %151 : vector<8x128xf32>
    %cst_72 = arith.constant 1.000000e+00 : f32
    %153 = vector.broadcast %cst_72 : f32 to vector<8x128xf32>
    %154 = arith.addf %153, %152 : vector<8x128xf32>
    %155 = arith.divf %153, %154 : vector<8x128xf32>
    %156 = arith.mulf %147, %118 : vector<8x128xf32>
    %157 = arith.mulf %141, %149 : vector<8x128xf32>
    %158 = arith.addf %156, %157 : vector<8x128xf32>
    %159 = math.tanh %158 : vector<8x128xf32>
    %160 = arith.mulf %155, %159 : vector<8x128xf32>
    %161 = arith.index_cast %c3_i32 : i32 to index
    %c0_73 = arith.constant 0 : index
    %c0_74 = arith.constant 0 : index
    %162 = vector.load %arg6[%161, %c0_73, %c0_74] : memref<8x8x128xf32, #tpu.memory_space<vmem>>, vector<1x8x128xf32>
    %163 = vector.shape_cast %162 : vector<1x8x128xf32> to vector<8x128xf32>
    %164 = vector.shape_cast %160 : vector<8x128xf32> to vector<1x8x128xf32>
    tpu.vector_store %arg6[%161, %c0_73, %c0_74], %164 {strides = array<i32>} : memref<8x8x128xf32, #tpu.memory_space<vmem>>, vector<1x8x128xf32>,
    %c4_i32 = arith.constant 4 : i32
    %165 = arith.index_cast %c4_i32 : i32 to index
    %c0_75 = arith.constant 0 : index
    %c0_76 = arith.constant 0 : index
    %166 = vector.load %arg1[%165, %c0_75, %c0_76] : memref<8x8x128xf32, #tpu.memory_space<vmem>>, vector<1x8x128xf32>
    %167 = vector.shape_cast %166 : vector<1x8x128xf32> to vector<8x128xf32>
    %c0_77 = arith.constant 0 : index
    %c0_78 = arith.constant 0 : index
    %168 = vector.load %arg9[%c0_77, %c0_78] : memref<8x256xf32, #tpu.memory_space<vmem>>, vector<8x128xf32>
    tpu.vector_store %arg9[%c0_77, %c0_78], %167 {strides = array<i32>} : memref<8x256xf32, #tpu.memory_space<vmem>>, vector<8x128xf32>,
    %c0_79 = arith.constant 0 : index
    %c128_80 = arith.constant 128 : index
    %169 = vector.load %arg9[%c0_79, %c128_80] : memref<8x256xf32, #tpu.memory_space<vmem>>, vector<8x128xf32>
    tpu.vector_store %arg9[%c0_79, %c128_80], %160 {strides = array<i32>} : memref<8x256xf32, #tpu.memory_space<vmem>>, vector<8x128xf32>,
    %c0_81 = arith.constant 0 : index
    %c0_82 = arith.constant 0 : index
    %170 = vector.load %arg9[%c0_81, %c0_82] : memref<8x256xf32, #tpu.memory_space<vmem>>, vector<8x256xf32>
    %c0_83 = arith.constant 0 : index
    %c0_84 = arith.constant 0 : index
    %171 = vector.load %arg2[%c0_83, %c0_84] : memref<256x512xf32, #tpu.memory_space<vmem>>, vector<256x512xf32>
    %cst_85 = arith.constant dense<0.000000e+00> : vector<8x512xf32>
    %172 = tpu.matmul %170, %171, %cst_85 {dimension_numbers = #tpu.dot_dimension_numbers<[1], [0], [0], [1], [0, 0, 1, 1], [], []>} : vector<8x256xf32>, vector<256x512xf32>, vector<8x512xf32> -> vector<8x512xf32>
    %c0_86 = arith.constant 0 : index
    %c0_87 = arith.constant 0 : index
    %173 = vector.load %arg3[%c0_86, %c0_87] : memref<1x512xf32, #tpu.memory_space<vmem>>, vector<1x512xf32>
    %174 = vector.broadcast %173 : vector<1x512xf32> to vector<8x512xf32>
    %175 = arith.addf %172, %174 : vector<8x512xf32>
    %176 = vector.extract_strided_slice %175 {offsets = [0, 0], sizes = [8, 128], strides = [1, 1]} : vector<8x512xf32> to vector<8x128xf32>
    %177 = arith.negf %176 : vector<8x128xf32>
    %178 = math.exp %177 : vector<8x128xf32>
    %cst_88 = arith.constant 1.000000e+00 : f32
    %179 = vector.broadcast %cst_88 : f32 to vector<8x128xf32>
    %180 = arith.addf %179, %178 : vector<8x128xf32>
    %181 = arith.divf %179, %180 : vector<8x128xf32>
    %182 = vector.extract_strided_slice %175 {offsets = [0, 128], sizes = [8, 128], strides = [1, 1]} : vector<8x512xf32> to vector<8x128xf32>
    %183 = arith.negf %182 : vector<8x128xf32>
    %184 = math.exp %183 : vector<8x128xf32>
    %cst_89 = arith.constant 1.000000e+00 : f32
    %185 = vector.broadcast %cst_89 : f32 to vector<8x128xf32>
    %186 = arith.addf %185, %184 : vector<8x128xf32>
    %187 = arith.divf %185, %186 : vector<8x128xf32>
    %188 = vector.extract_strided_slice %175 {offsets = [0, 256], sizes = [8, 128], strides = [1, 1]} : vector<8x512xf32> to vector<8x128xf32>
    %189 = math.tanh %188 : vector<8x128xf32>
    %190 = vector.extract_strided_slice %175 {offsets = [0, 384], sizes = [8, 128], strides = [1, 1]} : vector<8x512xf32> to vector<8x128xf32>
    %191 = arith.negf %190 : vector<8x128xf32>
    %192 = math.exp %191 : vector<8x128xf32>
    %cst_90 = arith.constant 1.000000e+00 : f32
    %193 = vector.broadcast %cst_90 : f32 to vector<8x128xf32>
    %194 = arith.addf %193, %192 : vector<8x128xf32>
    %195 = arith.divf %193, %194 : vector<8x128xf32>
    %196 = arith.mulf %187, %158 : vector<8x128xf32>
    %197 = arith.mulf %181, %189 : vector<8x128xf32>
    %198 = arith.addf %196, %197 : vector<8x128xf32>
    %199 = math.tanh %198 : vector<8x128xf32>
    %200 = arith.mulf %195, %199 : vector<8x128xf32>
    %201 = arith.index_cast %c4_i32 : i32 to index
    %c0_91 = arith.constant 0 : index
    %c0_92 = arith.constant 0 : index
    %202 = vector.load %arg6[%201, %c0_91, %c0_92] : memref<8x8x128xf32, #tpu.memory_space<vmem>>, vector<1x8x128xf32>
    %203 = vector.shape_cast %202 : vector<1x8x128xf32> to vector<8x128xf32>
    %204 = vector.shape_cast %200 : vector<8x128xf32> to vector<1x8x128xf32>
    tpu.vector_store %arg6[%201, %c0_91, %c0_92], %204 {strides = array<i32>} : memref<8x8x128xf32, #tpu.memory_space<vmem>>, vector<1x8x128xf32>,
    %c5_i32 = arith.constant 5 : i32
    %205 = arith.index_cast %c5_i32 : i32 to index
    %c0_93 = arith.constant 0 : index
    %c0_94 = arith.constant 0 : index
    %206 = vector.load %arg1[%205, %c0_93, %c0_94] : memref<8x8x128xf32, #tpu.memory_space<vmem>>, vector<1x8x128xf32>
    %207 = vector.shape_cast %206 : vector<1x8x128xf32> to vector<8x128xf32>
    %c0_95 = arith.constant 0 : index
    %c0_96 = arith.constant 0 : index
    %208 = vector.load %arg9[%c0_95, %c0_96] : memref<8x256xf32, #tpu.memory_space<vmem>>, vector<8x128xf32>
    tpu.vector_store %arg9[%c0_95, %c0_96], %207 {strides = array<i32>} : memref<8x256xf32, #tpu.memory_space<vmem>>, vector<8x128xf32>,
    %c0_97 = arith.constant 0 : index
    %c128_98 = arith.constant 128 : index
    %209 = vector.load %arg9[%c0_97, %c128_98] : memref<8x256xf32, #tpu.memory_space<vmem>>, vector<8x128xf32>
    tpu.vector_store %arg9[%c0_97, %c128_98], %200 {strides = array<i32>} : memref<8x256xf32, #tpu.memory_space<vmem>>, vector<8x128xf32>,
    %c0_99 = arith.constant 0 : index
    %c0_100 = arith.constant 0 : index
    %210 = vector.load %arg9[%c0_99, %c0_100] : memref<8x256xf32, #tpu.memory_space<vmem>>, vector<8x256xf32>
    %c0_101 = arith.constant 0 : index
    %c0_102 = arith.constant 0 : index
    %211 = vector.load %arg2[%c0_101, %c0_102] : memref<256x512xf32, #tpu.memory_space<vmem>>, vector<256x512xf32>
    %cst_103 = arith.constant dense<0.000000e+00> : vector<8x512xf32>
    %212 = tpu.matmul %210, %211, %cst_103 {dimension_numbers = #tpu.dot_dimension_numbers<[1], [0], [0], [1], [0, 0, 1, 1], [], []>} : vector<8x256xf32>, vector<256x512xf32>, vector<8x512xf32> -> vector<8x512xf32>
    %c0_104 = arith.constant 0 : index
    %c0_105 = arith.constant 0 : index
    %213 = vector.load %arg3[%c0_104, %c0_105] : memref<1x512xf32, #tpu.memory_space<vmem>>, vector<1x512xf32>
    %214 = vector.broadcast %213 : vector<1x512xf32> to vector<8x512xf32>
    %215 = arith.addf %212, %214 : vector<8x512xf32>
    %216 = vector.extract_strided_slice %215 {offsets = [0, 0], sizes = [8, 128], strides = [1, 1]} : vector<8x512xf32> to vector<8x128xf32>
    %217 = arith.negf %216 : vector<8x128xf32>
    %218 = math.exp %217 : vector<8x128xf32>
    %cst_106 = arith.constant 1.000000e+00 : f32
    %219 = vector.broadcast %cst_106 : f32 to vector<8x128xf32>
    %220 = arith.addf %219, %218 : vector<8x128xf32>
    %221 = arith.divf %219, %220 : vector<8x128xf32>
    %222 = vector.extract_strided_slice %215 {offsets = [0, 128], sizes = [8, 128], strides = [1, 1]} : vector<8x512xf32> to vector<8x128xf32>
    %223 = arith.negf %222 : vector<8x128xf32>
    %224 = math.exp %223 : vector<8x128xf32>
    %cst_107 = arith.constant 1.000000e+00 : f32
    %225 = vector.broadcast %cst_107 : f32 to vector<8x128xf32>
    %226 = arith.addf %225, %224 : vector<8x128xf32>
    %227 = arith.divf %225, %226 : vector<8x128xf32>
    %228 = vector.extract_strided_slice %215 {offsets = [0, 256], sizes = [8, 128], strides = [1, 1]} : vector<8x512xf32> to vector<8x128xf32>
    %229 = math.tanh %228 : vector<8x128xf32>
    %230 = vector.extract_strided_slice %215 {offsets = [0, 384], sizes = [8, 128], strides = [1, 1]} : vector<8x512xf32> to vector<8x128xf32>
    %231 = arith.negf %230 : vector<8x128xf32>
    %232 = math.exp %231 : vector<8x128xf32>
    %cst_108 = arith.constant 1.000000e+00 : f32
    %233 = vector.broadcast %cst_108 : f32 to vector<8x128xf32>
    %234 = arith.addf %233, %232 : vector<8x128xf32>
    %235 = arith.divf %233, %234 : vector<8x128xf32>
    %236 = arith.mulf %227, %198 : vector<8x128xf32>
    %237 = arith.mulf %221, %229 : vector<8x128xf32>
    %238 = arith.addf %236, %237 : vector<8x128xf32>
    %239 = math.tanh %238 : vector<8x128xf32>
    %240 = arith.mulf %235, %239 : vector<8x128xf32>
    %241 = arith.index_cast %c5_i32 : i32 to index
    %c0_109 = arith.constant 0 : index
    %c0_110 = arith.constant 0 : index
    %242 = vector.load %arg6[%241, %c0_109, %c0_110] : memref<8x8x128xf32, #tpu.memory_space<vmem>>, vector<1x8x128xf32>
    %243 = vector.shape_cast %242 : vector<1x8x128xf32> to vector<8x128xf32>
    %244 = vector.shape_cast %240 : vector<8x128xf32> to vector<1x8x128xf32>
    tpu.vector_store %arg6[%241, %c0_109, %c0_110], %244 {strides = array<i32>} : memref<8x8x128xf32, #tpu.memory_space<vmem>>, vector<1x8x128xf32>,
    %c6_i32 = arith.constant 6 : i32
    %245 = arith.index_cast %c6_i32 : i32 to index
    %c0_111 = arith.constant 0 : index
    %c0_112 = arith.constant 0 : index
    %246 = vector.load %arg1[%245, %c0_111, %c0_112] : memref<8x8x128xf32, #tpu.memory_space<vmem>>, vector<1x8x128xf32>
    %247 = vector.shape_cast %246 : vector<1x8x128xf32> to vector<8x128xf32>
    %c0_113 = arith.constant 0 : index
    %c0_114 = arith.constant 0 : index
    %248 = vector.load %arg9[%c0_113, %c0_114] : memref<8x256xf32, #tpu.memory_space<vmem>>, vector<8x128xf32>
    tpu.vector_store %arg9[%c0_113, %c0_114], %247 {strides = array<i32>} : memref<8x256xf32, #tpu.memory_space<vmem>>, vector<8x128xf32>,
    %c0_115 = arith.constant 0 : index
    %c128_116 = arith.constant 128 : index
    %249 = vector.load %arg9[%c0_115, %c128_116] : memref<8x256xf32, #tpu.memory_space<vmem>>, vector<8x128xf32>
    tpu.vector_store %arg9[%c0_115, %c128_116], %240 {strides = array<i32>} : memref<8x256xf32, #tpu.memory_space<vmem>>, vector<8x128xf32>,
    %c0_117 = arith.constant 0 : index
    %c0_118 = arith.constant 0 : index
    %250 = vector.load %arg9[%c0_117, %c0_118] : memref<8x256xf32, #tpu.memory_space<vmem>>, vector<8x256xf32>
    %c0_119 = arith.constant 0 : index
    %c0_120 = arith.constant 0 : index
    %251 = vector.load %arg2[%c0_119, %c0_120] : memref<256x512xf32, #tpu.memory_space<vmem>>, vector<256x512xf32>
    %cst_121 = arith.constant dense<0.000000e+00> : vector<8x512xf32>
    %252 = tpu.matmul %250, %251, %cst_121 {dimension_numbers = #tpu.dot_dimension_numbers<[1], [0], [0], [1], [0, 0, 1, 1], [], []>} : vector<8x256xf32>, vector<256x512xf32>, vector<8x512xf32> -> vector<8x512xf32>
    %c0_122 = arith.constant 0 : index
    %c0_123 = arith.constant 0 : index
    %253 = vector.load %arg3[%c0_122, %c0_123] : memref<1x512xf32, #tpu.memory_space<vmem>>, vector<1x512xf32>
    %254 = vector.broadcast %253 : vector<1x512xf32> to vector<8x512xf32>
    %255 = arith.addf %252, %254 : vector<8x512xf32>
    %256 = vector.extract_strided_slice %255 {offsets = [0, 0], sizes = [8, 128], strides = [1, 1]} : vector<8x512xf32> to vector<8x128xf32>
    %257 = arith.negf %256 : vector<8x128xf32>
    %258 = math.exp %257 : vector<8x128xf32>
    %cst_124 = arith.constant 1.000000e+00 : f32
    %259 = vector.broadcast %cst_124 : f32 to vector<8x128xf32>
    %260 = arith.addf %259, %258 : vector<8x128xf32>
    %261 = arith.divf %259, %260 : vector<8x128xf32>
    %262 = vector.extract_strided_slice %255 {offsets = [0, 128], sizes = [8, 128], strides = [1, 1]} : vector<8x512xf32> to vector<8x128xf32>
    %263 = arith.negf %262 : vector<8x128xf32>
    %264 = math.exp %263 : vector<8x128xf32>
    %cst_125 = arith.constant 1.000000e+00 : f32
    %265 = vector.broadcast %cst_125 : f32 to vector<8x128xf32>
    %266 = arith.addf %265, %264 : vector<8x128xf32>
    %267 = arith.divf %265, %266 : vector<8x128xf32>
    %268 = vector.extract_strided_slice %255 {offsets = [0, 256], sizes = [8, 128], strides = [1, 1]} : vector<8x512xf32> to vector<8x128xf32>
    %269 = math.tanh %268 : vector<8x128xf32>
    %270 = vector.extract_strided_slice %255 {offsets = [0, 384], sizes = [8, 128], strides = [1, 1]} : vector<8x512xf32> to vector<8x128xf32>
    %271 = arith.negf %270 : vector<8x128xf32>
    %272 = math.exp %271 : vector<8x128xf32>
    %cst_126 = arith.constant 1.000000e+00 : f32
    %273 = vector.broadcast %cst_126 : f32 to vector<8x128xf32>
    %274 = arith.addf %273, %272 : vector<8x128xf32>
    %275 = arith.divf %273, %274 : vector<8x128xf32>
    %276 = arith.mulf %267, %238 : vector<8x128xf32>
    %277 = arith.mulf %261, %269 : vector<8x128xf32>
    %278 = arith.addf %276, %277 : vector<8x128xf32>
    %279 = math.tanh %278 : vector<8x128xf32>
    %280 = arith.mulf %275, %279 : vector<8x128xf32>
    %281 = arith.index_cast %c6_i32 : i32 to index
    %c0_127 = arith.constant 0 : index
    %c0_128 = arith.constant 0 : index
    %282 = vector.load %arg6[%281, %c0_127, %c0_128] : memref<8x8x128xf32, #tpu.memory_space<vmem>>, vector<1x8x128xf32>
    %283 = vector.shape_cast %282 : vector<1x8x128xf32> to vector<8x128xf32>
    %284 = vector.shape_cast %280 : vector<8x128xf32> to vector<1x8x128xf32>
    tpu.vector_store %arg6[%281, %c0_127, %c0_128], %284 {strides = array<i32>} : memref<8x8x128xf32, #tpu.memory_space<vmem>>, vector<1x8x128xf32>,
    %c7_i32 = arith.constant 7 : i32
    %285 = arith.index_cast %c7_i32 : i32 to index
    %c0_129 = arith.constant 0 : index
    %c0_130 = arith.constant 0 : index
    %286 = vector.load %arg1[%285, %c0_129, %c0_130] : memref<8x8x128xf32, #tpu.memory_space<vmem>>, vector<1x8x128xf32>
    %287 = vector.shape_cast %286 : vector<1x8x128xf32> to vector<8x128xf32>
    %c0_131 = arith.constant 0 : index
    %c0_132 = arith.constant 0 : index
    %288 = vector.load %arg9[%c0_131, %c0_132] : memref<8x256xf32, #tpu.memory_space<vmem>>, vector<8x128xf32>
    tpu.vector_store %arg9[%c0_131, %c0_132], %287 {strides = array<i32>} : memref<8x256xf32, #tpu.memory_space<vmem>>, vector<8x128xf32>,
    %c0_133 = arith.constant 0 : index
    %c128_134 = arith.constant 128 : index
    %289 = vector.load %arg9[%c0_133, %c128_134] : memref<8x256xf32, #tpu.memory_space<vmem>>, vector<8x128xf32>
    tpu.vector_store %arg9[%c0_133, %c128_134], %280 {strides = array<i32>} : memref<8x256xf32, #tpu.memory_space<vmem>>, vector<8x128xf32>,
    %c0_135 = arith.constant 0 : index
    %c0_136 = arith.constant 0 : index
    %290 = vector.load %arg9[%c0_135, %c0_136] : memref<8x256xf32, #tpu.memory_space<vmem>>, vector<8x256xf32>
    %c0_137 = arith.constant 0 : index
    %c0_138 = arith.constant 0 : index
    %291 = vector.load %arg2[%c0_137, %c0_138] : memref<256x512xf32, #tpu.memory_space<vmem>>, vector<256x512xf32>
    %cst_139 = arith.constant dense<0.000000e+00> : vector<8x512xf32>
    %292 = tpu.matmul %290, %291, %cst_139 {dimension_numbers = #tpu.dot_dimension_numbers<[1], [0], [0], [1], [0, 0, 1, 1], [], []>} : vector<8x256xf32>, vector<256x512xf32>, vector<8x512xf32> -> vector<8x512xf32>
    %c0_140 = arith.constant 0 : index
    %c0_141 = arith.constant 0 : index
    %293 = vector.load %arg3[%c0_140, %c0_141] : memref<1x512xf32, #tpu.memory_space<vmem>>, vector<1x512xf32>
    %294 = vector.broadcast %293 : vector<1x512xf32> to vector<8x512xf32>
    %295 = arith.addf %292, %294 : vector<8x512xf32>
    %296 = vector.extract_strided_slice %295 {offsets = [0, 0], sizes = [8, 128], strides = [1, 1]} : vector<8x512xf32> to vector<8x128xf32>
    %297 = arith.negf %296 : vector<8x128xf32>
    %298 = math.exp %297 : vector<8x128xf32>
    %cst_142 = arith.constant 1.000000e+00 : f32
    %299 = vector.broadcast %cst_142 : f32 to vector<8x128xf32>
    %300 = arith.addf %299, %298 : vector<8x128xf32>
    %301 = arith.divf %299, %300 : vector<8x128xf32>
    %302 = vector.extract_strided_slice %295 {offsets = [0, 128], sizes = [8, 128], strides = [1, 1]} : vector<8x512xf32> to vector<8x128xf32>
    %303 = arith.negf %302 : vector<8x128xf32>
    %304 = math.exp %303 : vector<8x128xf32>
    %cst_143 = arith.constant 1.000000e+00 : f32
    %305 = vector.broadcast %cst_143 : f32 to vector<8x128xf32>
    %306 = arith.addf %305, %304 : vector<8x128xf32>
    %307 = arith.divf %305, %306 : vector<8x128xf32>
    %308 = vector.extract_strided_slice %295 {offsets = [0, 256], sizes = [8, 128], strides = [1, 1]} : vector<8x512xf32> to vector<8x128xf32>
    %309 = math.tanh %308 : vector<8x128xf32>
    %310 = vector.extract_strided_slice %295 {offsets = [0, 384], sizes = [8, 128], strides = [1, 1]} : vector<8x512xf32> to vector<8x128xf32>
    %311 = arith.negf %310 : vector<8x128xf32>
    %312 = math.exp %311 : vector<8x128xf32>
    %cst_144 = arith.constant 1.000000e+00 : f32
    %313 = vector.broadcast %cst_144 : f32 to vector<8x128xf32>
    %314 = arith.addf %313, %312 : vector<8x128xf32>
    %315 = arith.divf %313, %314 : vector<8x128xf32>
    %316 = arith.mulf %307, %278 : vector<8x128xf32>
    %317 = arith.mulf %301, %309 : vector<8x128xf32>
    %318 = arith.addf %316, %317 : vector<8x128xf32>
    %319 = math.tanh %318 : vector<8x128xf32>
    %320 = arith.mulf %315, %319 : vector<8x128xf32>
    %321 = arith.index_cast %c7_i32 : i32 to index
    %c0_145 = arith.constant 0 : index
    %c0_146 = arith.constant 0 : index
    %322 = vector.load %arg6[%321, %c0_145, %c0_146] : memref<8x8x128xf32, #tpu.memory_space<vmem>>, vector<1x8x128xf32>
    %323 = vector.shape_cast %322 : vector<1x8x128xf32> to vector<8x128xf32>
    %324 = vector.shape_cast %320 : vector<8x128xf32> to vector<1x8x128xf32>
    tpu.vector_store %arg6[%321, %c0_145, %c0_146], %324 {strides = array<i32>} : memref<8x8x128xf32, #tpu.memory_space<vmem>>, vector<1x8x128xf32>,
    %c8_i32 = arith.constant 8 : i32
    %c0_147 = arith.constant 0 : index
    %c0_148 = arith.constant 0 : index
    %325 = vector.load %arg7[%c0_147, %c0_148] : memref<8x128xf32, #tpu.memory_space<vmem>>, vector<8x128xf32>
    tpu.vector_store %arg7[%c0_147, %c0_148], %320 {strides = array<i32>} : memref<8x128xf32, #tpu.memory_space<vmem>>, vector<8x128xf32>,
    %c0_149 = arith.constant 0 : index
    %c0_150 = arith.constant 0 : index
    %326 = vector.load %arg8[%c0_149, %c0_150] : memref<8x128xf32, #tpu.memory_space<vmem>>, vector<8x128xf32>
    tpu.vector_store %arg8[%c0_149, %c0_150], %318 {strides = array<i32>} : memref<8x128xf32, #tpu.memory_space<vmem>>, vector<8x128xf32>,
    return
  }
  func.func @transform_0(%arg0: i32) -> (i32, i32, i32) {
    %c0_i32 = arith.constant 0 : i32
    %c0_i32_0 = arith.constant 0 : i32
    %c0_i32_1 = arith.constant 0 : i32
    return %arg0, %c0_i32, %c0_i32_0 : i32, i32, i32
  }
  func.func @transform_1(%arg0: i32) -> (i32, i32) {
    %c0_i32 = arith.constant 0 : i32
    %c0_i32_0 = arith.constant 0 : i32
    %c0_i32_1 = arith.constant 0 : i32
    return %c0_i32, %c0_i32_0 : i32, i32
  }
  func.func @transform_2(%arg0: i32) -> (i32, i32) {
    %c0_i32 = arith.constant 0 : i32
    %c0_i32_0 = arith.constant 0 : i32
    %c0_i32_1 = arith.constant 0 : i32
    return %c0_i32, %c0_i32_0 : i32, i32
  }
  func.func @transform_3(%arg0: i32) -> (i32, i32) {
    %c0_i32 = arith.constant 0 : i32
    %c0_i32_0 = arith.constant 0 : i32
    %c0_i32_1 = arith.constant 0 : i32
    return %c0_i32, %c0_i32_0 : i32, i32
  }
  func.func @transform_4(%arg0: i32) -> (i32, i32) {
    %c0_i32 = arith.constant 0 : i32
    %c0_i32_0 = arith.constant 0 : i32
    %c0_i32_1 = arith.constant 0 : i32
    return %c0_i32, %c0_i32_0 : i32, i32
  }
  func.func @transform_5(%arg0: i32) -> (i32, i32, i32) {
    %c0_i32 = arith.constant 0 : i32
    %c0_i32_0 = arith.constant 0 : i32
    %c0_i32_1 = arith.constant 0 : i32
    return %arg0, %c0_i32, %c0_i32_0 : i32, i32, i32
  }
  func.func @transform_6(%arg0: i32) -> (i32, i32) {
    %c0_i32 = arith.constant 0 : i32
    %c0_i32_0 = arith.constant 0 : i32
    %c0_i32_1 = arith.constant 0 : i32
    return %c0_i32, %c0_i32_0 : i32, i32
  }
  func.func @transform_7(%arg0: i32) -> (i32, i32) {
    %c0_i32 = arith.constant 0 : i32
    %c0_i32_0 = arith.constant 0 : i32
    %c0_i32_1 = arith.constant 0 : i32
    return %c0_i32, %c0_i32_0 : i32, i32
  }
}

</mosaic_0001>

<llo_original>
// kernel: tpu_custom_call.1
$region0: #{tpu_custom_call.1}
  #allocation0 [shape = 'u32[]', space=smem, size = 0x4, offset = 0x4, fixed_abs, tag = 'smem constant byte address 0x4 - core index']
  #allocation1 [shape = 'u32[144,128]{1,0:T(1,128)}', space=vmem, size = 0x12000, scoped, tag = 'internal scratch']
  #allocation2 [shape = 'f32[8,256]{1,0:T(8,128)}', space=vmem, size = 0x2000, scoped, tag = 'scratch operand']
  %s0 = inlined_call_operand.hbm [shape: f32[8,8,128], index: 0, kind: input, shape index: {}]
  %s1 = inlined_call_operand.hbm [shape: f32[256,512], index: 1, kind: input, shape index: {}]
  %s2 = inlined_call_operand.hbm [shape: f32[1,512], index: 2, kind: input, shape index: {}]
  %s3 = inlined_call_operand.vmem [shape: f32[8,128], index: 3, kind: input, shape index: {}]
  %s4 = inlined_call_operand.hbm [shape: f32[8,128], index: 4, kind: input, shape index: {}]
  %s5 = inlined_call_operand.hbm [shape: f32[8,8,128], index: 5, kind: output, shape index: {0}]
  %s6 = inlined_call_operand.hbm [shape: f32[8,128], index: 6, kind: output, shape index: {1}]
  %s7 = inlined_call_operand.hbm [shape: f32[8,128], index: 7, kind: output, shape index: {2}]
  %8 = xla_tuple %s5, %s6, %s7
  %s9 = sld [smem:[#allocation0]]
  $region66: #{tpu_custom_call.1} parent=0
    _
  %s11 = ssub.s32 1, %s9
  %s12 = scalar_select 0, %s11, %s9
  $region1: #{tpu_custom_call.1} parent=0
    #allocation3 [shape = 'u8[32768]{0}', space=vmem, size = 0x8000, scoped, tag = 'input window, operand 0, single buffered']
    #allocation4 [shape = 's32[1]{0}', space=sflag, size = 0x4, scoped, tag = 'scoped memory for tpu_custom_call.1']
    #allocation5 [shape = 's32[1]{0}', space=sflag, size = 0x4, scoped, tag = 'scoped memory for tpu_custom_call.1']
    #allocation6 [shape = 'u8[524288]{0}', space=vmem, size = 0x80000, scoped, tag = 'input window, operand 1, single buffered']
    #allocation7 [shape = 's32[1]{0}', space=sflag, size = 0x4, scoped, tag = 'scoped memory for tpu_custom_call.1']
    #allocation8 [shape = 'u8[2048]{0}', space=vmem, size = 0x800, scoped, tag = 'input window, operand 2, single buffered']
    #allocation9 [shape = 'u8[4096]{0}', space=vmem, size = 0x1000, scoped, tag = 'input window, operand 4, single buffered']
    #allocation10 [shape = 's32[1]{0}', space=sflag, size = 0x4, scoped, tag = 'scoped memory for tpu_custom_call.1']
    #allocation11 [shape = 'u8[32768]{0}', space=vmem, size = 0x8000, scoped, tag = 'output window, operand 0, single buffered']
    #allocation12 [shape = 'u8[4096]{0}', space=vmem, size = 0x1000, scoped, tag = 'output window, operand 1, single buffered']
    #allocation13 [shape = 's32[1]{0}', space=sflag, size = 0x4, scoped, tag = 'scoped memory for tpu_custom_call.1']
    #allocation14 [shape = 'u8[4096]{0}', space=vmem, size = 0x1000, scoped, tag = 'output window, operand 2, single buffered']
    %13 = vsyncpa [#allocation4], 0
    %14 = vsyncpa [#allocation7], 0
    %15 = vsyncpa [#allocation10], 0
    %16 = vsyncpa [#allocation5], 0
    %17 = vsyncpa [#allocation13], 0
    // Predicated region
    $region2: #{tpu_custom_call.1} parent=1 // pred_check
      _
    $region3: #{tpu_custom_call.1} parent=1 // pred_check_branch
      %19 = sbr.rel (0) target = $region5
    $region4: #{tpu_custom_call.1} parent=1 // pred_region
      %s21 = ssub.s32 1024, 1024
      %22 = vsyncadd [#allocation4], %s21
      %s23 = sshll.u32 [#allocation3], 4
      %s24 = int_to_ptr.vmem [resolvable:$true] %s23
      %29 = dma.hbm_to_vmem [thread:$0]  %s0, 1024, %s24, [#allocation4], 128, 128, 8
    $region5: #{tpu_custom_call.1} parent=1 // pred_fallthru
      _
    // Predicated region
    $region6: #{tpu_custom_call.1} parent=1 // pred_check
      _
    $region7: #{tpu_custom_call.1} parent=1 // pred_check_branch
      %31 = sbr.rel (0) target = $region9
    $region8: #{tpu_custom_call.1} parent=1 // pred_region
      %s33 = ssub.s32 16384, 16384
      %34 = vsyncadd [#allocation7], %s33
      %s35 = sshll.u32 [#allocation6], 4
      %s36 = int_to_ptr.vmem [resolvable:$true] %s35
      %41 = dma.hbm_to_vmem [thread:$0]  %s1, 16384, %s36, [#allocation7], 512, 512, 32
    $region9: #{tpu_custom_call.1} parent=1 // pred_fallthru
      _
    // Predicated region
    $region10: #{tpu_custom_call.1} parent=1 // pred_check
      _
    $region11: #{tpu_custom_call.1} parent=1 // pred_check_branch
      %43 = sbr.rel (0) target = $region13
    $region12: #{tpu_custom_call.1} parent=1 // pred_region
      %s45 = ssub.s32 64, 64
      %46 = vsyncadd [#allocation7], %s45
      %s48 = sshll.u32 [#allocation8], 4
      %s49 = int_to_ptr.vmem [resolvable:$true] %s48
      %51 = dma.hbm_to_vmem [thread:$0]  %s2, 64, %s49, [#allocation7]
    $region13: #{tpu_custom_call.1} parent=1 // pred_fallthru
      _
    // Predicated region
    $region14: #{tpu_custom_call.1} parent=1 // pred_check
      _
    $region15: #{tpu_custom_call.1} parent=1 // pred_check_branch
      %53 = sbr.rel (0) target = $region17
    $region16: #{tpu_custom_call.1} parent=1 // pred_region
      _
    $region17: #{tpu_custom_call.1} parent=1 // pred_fallthru
      _
    // Predicated region
    $region18: #{tpu_custom_call.1} parent=1 // pred_check
      _
    $region19: #{tpu_custom_call.1} parent=1 // pred_check_branch
      %55 = sbr.rel (0) target = $region21
    $region20: #{tpu_custom_call.1} parent=1 // pred_region
      %s57 = ssub.s32 128, 128
      %58 = vsyncadd [#allocation10], %s57
      %s60 = sshll.u32 [#allocation9], 4
      %s61 = int_to_ptr.vmem [resolvable:$true] %s60
      %63 = dma.hbm_to_vmem [thread:$0]  %s4, 128, %s61, [#allocation10]
    $region21: #{tpu_custom_call.1} parent=1 // pred_fallthru
      _
    // Predicated region
    $region22: #{tpu_custom_call.1} parent=1 // pred_check
      _
    $region23: #{tpu_custom_call.1} parent=1 // pred_check_branch
      %65 = sbr.rel (0) target = $region25
    $region24: #{tpu_custom_call.1} parent=1 // pred_region
      %66 = dma.done [#allocation4], 1024
    $region25: #{tpu_custom_call.1} parent=1 // pred_fallthru
      _
    // Predicated region
    $region26: #{tpu_custom_call.1} parent=1 // pred_check
      _
    $region27: #{tpu_custom_call.1} parent=1 // pred_check_branch
      %68 = sbr.rel (0) target = $region29
    $region28: #{tpu_custom_call.1} parent=1 // pred_region
      %69 = dma.done [#allocation7], 16384
    $region29: #{tpu_custom_call.1} parent=1 // pred_fallthru
      _
    // Predicated region
    $region30: #{tpu_custom_call.1} parent=1 // pred_check
      _
    $region31: #{tpu_custom_call.1} parent=1 // pred_check_branch
      %71 = sbr.rel (0) target = $region33
    $region32: #{tpu_custom_call.1} parent=1 // pred_region
      %72 = dma.done [#allocation7], 64
    $region33: #{tpu_custom_call.1} parent=1 // pred_fallthru
      _
    // Predicated region
    $region34: #{tpu_custom_call.1} parent=1 // pred_check
      _
    $region35: #{tpu_custom_call.1} parent=1 // pred_check_branch
      %74 = sbr.rel (0) target = $region37
    $region36: #{tpu_custom_call.1} parent=1 // pred_region
      %75 = dma.done [#allocation10], 128
    $region37: #{tpu_custom_call.1} parent=1 // pred_fallthru
      _
    %p76 = scmp.eq.s32.totalorder 0, 0
    // Predicated region
    $region38: #{tpu_custom_call.1} parent=1 // pred_check
      %p77 = pneg %p76
    $region39: #{tpu_custom_call.1} parent=1 // pred_check_branch
      %79 = sbr.rel (%p77) target = $region41
    $region40: #{tpu_custom_call.1} parent=1 // pred_region
      %v80 = vld [vmem:[%s3] sm:$0xff]
      %81 = vst [vmem:[#allocation12] sm:$0xff] %v80
      %v82 = vld [vmem:[#allocation9] sm:$0xff]
      %83 = vst [vmem:[#allocation14] sm:$0xff] %v82
    $region41: #{tpu_custom_call.1} parent=1 // pred_fallthru
      _
    %v84 = vld [vmem:[#allocation12] sm:$0xff]
    %v85 = vld [vmem:[#allocation14] sm:$0xff]
    %v86 = vld [vmem:[#allocation3] sm:$0xff]
    %87 = vst [vmem:[#allocation2] sm:$0xff] %v86
    %88 = vst [vmem:[#allocation2 + $0x8] sm:$0xff] %v84
    %v89 = vld [vmem:[#allocation2] sm:$0xff]
    %v90 = vld [vmem:[#allocation2 + $0x8] sm:$0xff]
    %v91 = vld [vmem:[#allocation6] sm:$0xff]
    %v92 = vld [vmem:[#allocation6 + $0x8] sm:$0xff]
    %v93 = vld [vmem:[#allocation6 + $0x10] sm:$0xff]
    %v94 = vld [vmem:[#allocation6 + $0x18] sm:$0xff]
    %v95 = vld [vmem:[#allocation6 + $0x20] sm:$0xff]
    %v96 = vld [vmem:[#allocation6 + $0x28] sm:$0xff]
    %v97 = vld [vmem:[#allocation6 + $0x30] sm:$0xff]
    %v98 = vld [vmem:[#allocation6 + $0x38] sm:$0xff]
    %v99 = vld [vmem:[#allocation6 + $0x40] sm:$0xff]
    %v100 = vld [vmem:[#allocation6 + $0x48] sm:$0xff]
    %v101 = vld [vmem:[#allocation6 + $0x50] sm:$0xff]
    %v102 = vld [vmem:[#allocation6 + $0x58] sm:$0xff]
    %v103 = vld [vmem:[#allocation6 + $0x60] sm:$0xff]
    %v104 = vld [vmem:[#allocation6 + $0x68] sm:$0xff]
    %v105 = vld [vmem:[#allocation6 + $0x70] sm:$0xff]
    %v106 = vld [vmem:[#allocation6 + $0x78] sm:$0xff]
    %v107 = vld [vmem:[#allocation6 + $0x80] sm:$0xff]
    %v108 = vld [vmem:[#allocation6 + $0x88] sm:$0xff]
    %v109 = vld [vmem:[#allocation6 + $0x90] sm:$0xff]
    %v110 = vld [vmem:[#allocation6 + $0x98] sm:$0xff]
    %v111 = vld [vmem:[#allocation6 + $0xa0] sm:$0xff]
    %v112 = vld [vmem:[#allocation6 + $0xa8] sm:$0xff]
    %v113 = vld [vmem:[#allocation6 + $0xb0] sm:$0xff]
    %v114 = vld [vmem:[#allocation6 + $0xb8] sm:$0xff]
    %v115 = vld [vmem:[#allocation6 + $0xc0] sm:$0xff]
    %v116 = vld [vmem:[#allocation6 + $0xc8] sm:$0xff]
    %v117 = vld [vmem:[#allocation6 + $0xd0] sm:$0xff]
    %v118 = vld [vmem:[#allocation6 + $0xd8] sm:$0xff]
    %v119 = vld [vmem:[#allocation6 + $0xe0] sm:$0xff]
    %v120 = vld [vmem:[#allocation6 + $0xe8] sm:$0xff]
    %v121 = vld [vmem:[#allocation6 + $0xf0] sm:$0xff]
    %v122 = vld [vmem:[#allocation6 + $0xf8] sm:$0xff]
    %v123 = vld [vmem:[#allocation6 + $0x100] sm:$0xff]
    %v124 = vld [vmem:[#allocation6 + $0x108] sm:$0xff]
    %v125 = vld [vmem:[#allocation6 + $0x110] sm:$0xff]
    %v126 = vld [vmem:[#allocation6 + $0x118] sm:$0xff]
    %v127 = vld [vmem:[#allocation6 + $0x120] sm:$0xff]
    %v128 = vld [vmem:[#allocation6 + $0x128] sm:$0xff]
    %v129 = vld [vmem:[#allocation6 + $0x130] sm:$0xff]
    %v130 = vld [vmem:[#allocation6 + $0x138] sm:$0xff]
    %v131 = vld [vmem:[#allocation6 + $0x140] sm:$0xff]
    %v132 = vld [vmem:[#allocation6 + $0x148] sm:$0xff]
    %v133 = vld [vmem:[#allocation6 + $0x150] sm:$0xff]
    %v134 = vld [vmem:[#allocation6 + $0x158] sm:$0xff]
    %v135 = vld [vmem:[#allocation6 + $0x160] sm:$0xff]
    %v136 = vld [vmem:[#allocation6 + $0x168] sm:$0xff]
    %v137 = vld [vmem:[#allocation6 + $0x170] sm:$0xff]
    %v138 = vld [vmem:[#allocation6 + $0x178] sm:$0xff]
    %v139 = vld [vmem:[#allocation6 + $0x180] sm:$0xff]
    %v140 = vld [vmem:[#allocation6 + $0x188] sm:$0xff]
    %v141 = vld [vmem:[#allocation6 + $0x190] sm:$0xff]
    %v142 = vld [vmem:[#allocation6 + $0x198] sm:$0xff]
    %v143 = vld [vmem:[#allocation6 + $0x1a0] sm:$0xff]
    %v144 = vld [vmem:[#allocation6 + $0x1a8] sm:$0xff]
    %v145 = vld [vmem:[#allocation6 + $0x1b0] sm:$0xff]
    %v146 = vld [vmem:[#allocation6 + $0x1b8] sm:$0xff]
    %v147 = vld [vmem:[#allocation6 + $0x1c0] sm:$0xff]
    %v148 = vld [vmem:[#allocation6 + $0x1c8] sm:$0xff]
    %v149 = vld [vmem:[#allocation6 + $0x1d0] sm:$0xff]
    %v150 = vld [vmem:[#allocation6 + $0x1d8] sm:$0xff]
    %v151 = vld [vmem:[#allocation6 + $0x1e0] sm:$0xff]
    %v152 = vld [vmem:[#allocation6 + $0x1e8] sm:$0xff]
    %v153 = vld [vmem:[#allocation6 + $0x1f0] sm:$0xff]
    %v154 = vld [vmem:[#allocation6 + $0x1f8] sm:$0xff]
    %v155 = vld [vmem:[#allocation6 + $0x200] sm:$0xff]
    %v156 = vld [vmem:[#allocation6 + $0x208] sm:$0xff]
    %v157 = vld [vmem:[#allocation6 + $0x210] sm:$0xff]
    %v158 = vld [vmem:[#allocation6 + $0x218] sm:$0xff]
    %v159 = vld [vmem:[#allocation6 + $0x220] sm:$0xff]
    %v160 = vld [vmem:[#allocation6 + $0x228] sm:$0xff]
    %v161 = vld [vmem:[#allocation6 + $0x230] sm:$0xff]
    %v162 = vld [vmem:[#allocation6 + $0x238] sm:$0xff]
    %v163 = vld [vmem:[#allocation6 + $0x240] sm:$0xff]
    %v164 = vld [vmem:[#allocation6 + $0x248] sm:$0xff]
    %v165 = vld [vmem:[#allocation6 + $0x250] sm:$0xff]
    %v166 = vld [vmem:[#allocation6 + $0x258] sm:$0xff]
    %v167 = vld [vmem:[#allocation6 + $0x260] sm:$0xff]
    %v168 = vld [vmem:[#allocation6 + $0x268] sm:$0xff]
    %v169 = vld [vmem:[#allocation6 + $0x270] sm:$0xff]
    %v170 = vld [vmem:[#allocation6 + $0x278] sm:$0xff]
    %v171 = vld [vmem:[#allocation6 + $0x280] sm:$0xff]
    %v172 = vld [vmem:[#allocation6 + $0x288] sm:$0xff]
    %v173 = vld [vmem:[#allocation6 + $0x290] sm:$0xff]
    %v174 = vld [vmem:[#allocation6 + $0x298] sm:$0xff]
    %v175 = vld [vmem:[#allocation6 + $0x2a0] sm:$0xff]
    %v176 = vld [vmem:[#allocation6 + $0x2a8] sm:$0xff]
    %v177 = vld [vmem:[#allocation6 + $0x2b0] sm:$0xff]
    %v178 = vld [vmem:[#allocation6 + $0x2b8] sm:$0xff]
    %v179 = vld [vmem:[#allocation6 + $0x2c0] sm:$0xff]
    %v180 = vld [vmem:[#allocation6 + $0x2c8] sm:$0xff]
    %v181 = vld [vmem:[#allocation6 + $0x2d0] sm:$0xff]
    %v182 = vld [vmem:[#allocation6 + $0x2d8] sm:$0xff]
    %v183 = vld [vmem:[#allocation6 + $0x2e0] sm:$0xff]
    %v184 = vld [vmem:[#allocation6 + $0x2e8] sm:$0xff]
    %v185 = vld [vmem:[#allocation6 + $0x2f0] sm:$0xff]
    %v186 = vld [vmem:[#allocation6 + $0x2f8] sm:$0xff]
    %v187 = vld [vmem:[#allocation6 + $0x300] sm:$0xff]
    %v188 = vld [vmem:[#allocation6 + $0x308] sm:$0xff]
    %v189 = vld [vmem:[#allocation6 + $0x310] sm:$0xff]
    %v190 = vld [vmem:[#allocation6 + $0x318] sm:$0xff]
    %v191 = vld [vmem:[#allocation6 + $0x320] sm:$0xff]
    %v192 = vld [vmem:[#allocation6 + $0x328] sm:$0xff]
    %v193 = vld [vmem:[#allocation6 + $0x330] sm:$0xff]
    %v194 = vld [vmem:[#allocation6 + $0x338] sm:$0xff]
    %v195 = vld [vmem:[#allocation6 + $0x340] sm:$0xff]
    %v196 = vld [vmem:[#allocation6 + $0x348] sm:$0xff]
    %v197 = vld [vmem:[#allocation6 + $0x350] sm:$0xff]
    %v198 = vld [vmem:[#allocation6 + $0x358] sm:$0xff]
    %v199 = vld [vmem:[#allocation6 + $0x360] sm:$0xff]
    %v200 = vld [vmem:[#allocation6 + $0x368] sm:$0xff]
    %v201 = vld [vmem:[#allocation6 + $0x370] sm:$0xff]
    %v202 = vld [vmem:[#allocation6 + $0x378] sm:$0xff]
    %v203 = vld [vmem:[#allocation6 + $0x380] sm:$0xff]
    %v204 = vld [vmem:[#allocation6 + $0x388] sm:$0xff]
    %v205 = vld [vmem:[#allocation6 + $0x390] sm:$0xff]
    %v206 = vld [vmem:[#allocation6 + $0x398] sm:$0xff]
    %v207 = vld [vmem:[#allocation6 + $0x3a0] sm:$0xff]
    %v208 = vld [vmem:[#allocation6 + $0x3a8] sm:$0xff]
    %v209 = vld [vmem:[#allocation6 + $0x3b0] sm:$0xff]
    %v210 = vld [vmem:[#allocation6 + $0x3b8] sm:$0xff]
    %v211 = vld [vmem:[#allocation6 + $0x3c0] sm:$0xff]
    %v212 = vld [vmem:[#allocation6 + $0x3c8] sm:$0xff]
    %v213 = vld [vmem:[#allocation6 + $0x3d0] sm:$0xff]
    %v214 = vld [vmem:[#allocation6 + $0x3d8] sm:$0xff]
    %v215 = vld [vmem:[#allocation6 + $0x3e0] sm:$0xff]
    %v216 = vld [vmem:[#allocation6 + $0x3e8] sm:$0xff]
    %v217 = vld [vmem:[#allocation6 + $0x3f0] sm:$0xff]
    %v218 = vld [vmem:[#allocation6 + $0x3f8] sm:$0xff]
    %v219 = vld [vmem:[#allocation8] sm:$0xf]
    %v221 = vlaneseq
    %v222 = vshrl.u32 %v221, 7
    %v223 = vsub.s32 0, %v222
    %v224 = vrot.slane %v219, %v223
    %v225 = vlaneseq
    %v226 = vshrl.u32 %v225, 7
    %v227 = vsub.s32 1, %v226
    %v228 = vrot.slane %v219, %v227
    %v229 = vlaneseq
    %v230 = vshrl.u32 %v229, 7
    %v231 = vsub.s32 2, %v230
    %v232 = vrot.slane %v219, %v231
    %v233 = vlaneseq
    %v234 = vshrl.u32 %v233, 7
    %v235 = vsub.s32 3, %v234
    %v236 = vrot.slane %v219, %v235
    %241 = vmatprep.subr.mxu0 %v92
    %242 = vmatpush1.msra.mxu0 %v91
    %243 = vmatprep.subr.mxu0 %v96
    %244 = vmatpush1.msra.mxu0 %v95
    %245 = vmatprep.subr.mxu0 %v100
    %246 = vmatpush1.msra.mxu0 %v99
    %247 = vmatprep.subr.mxu0 %v104
    %248 = vmatpush1.msra.mxu0 %v103
    %249 = vmatprep.subr.mxu0 %v108
    %250 = vmatpush1.msra.mxu0 %v107
    %251 = vmatprep.subr.mxu0 %v112
    %252 = vmatpush1.msra.mxu0 %v111
    %253 = vmatprep.subr.mxu0 %v116
    %254 = vmatpush1.msra.mxu0 %v115
    %255 = vmatprep.subr.mxu0 %v120
    %256 = vmatpush1.msra.mxu0 %v119
    %257 = vmatprep.subr.mxu0 %v124
    %258 = vmatpush1.msra.mxu0 %v123
    %259 = vmatprep.subr.mxu0 %v128
    %260 = vmatpush1.msra.mxu0 %v127
    %261 = vmatprep.subr.mxu0 %v132
    %262 = vmatpush1.msra.mxu0 %v131
    %263 = vmatprep.subr.mxu0 %v136
    %264 = vmatpush1.msra.mxu0 %v135
    %265 = vmatprep.subr.mxu0 %v140
    %266 = vmatpush1.msra.mxu0 %v139
    %267 = vmatprep.subr.mxu0 %v144
    %268 = vmatpush1.msra.mxu0 %v143
    %269 = vmatprep.subr.mxu0 %v148
    %270 = vmatpush1.msra.mxu0 %v147
    %271 = vmatprep.subr.mxu0 %v152
    %272 = vmatpush1.msra.mxu0 %v151
    %273 = vmatprep.subr.mxu0 %v156
    %274 = vmatpush1.msra.mxu0 %v155
    %275 = vmatprep.subr.mxu0 %v160
    %276 = vmatpush1.msra.mxu0 %v159
    %277 = vmatprep.subr.mxu0 %v164
    %278 = vmatpush1.msra.mxu0 %v163
    %279 = vmatprep.subr.mxu0 %v168
    %280 = vmatpush1.msra.mxu0 %v167
    %281 = vmatprep.subr.mxu0 %v172
    %282 = vmatpush1.msra.mxu0 %v171
    %283 = vmatprep.subr.mxu0 %v176
    %284 = vmatpush1.msra.mxu0 %v175
    %285 = vmatprep.subr.mxu0 %v180
    %286 = vmatpush1.msra.mxu0 %v179
    %287 = vmatprep.subr.mxu0 %v184
    %288 = vmatpush1.msra.mxu0 %v183
    %289 = vmatprep.subr.mxu0 %v188
    %290 = vmatpush1.msra.mxu0 %v187
    %291 = vmatprep.subr.mxu0 %v192
    %292 = vmatpush1.msra.mxu0 %v191
    %293 = vmatprep.subr.mxu0 %v196
    %294 = vmatpush1.msra.mxu0 %v195
    %295 = vmatprep.subr.mxu0 %v200
    %296 = vmatpush1.msra.mxu0 %v199
    %297 = vmatprep.subr.mxu0 %v204
    %298 = vmatpush1.msra.mxu0 %v203
    %299 = vmatprep.subr.mxu0 %v208
    %300 = vmatpush1.msra.mxu0 %v207
    %301 = vmatprep.subr.mxu0 %v212
    %302 = vmatpush1.msra.mxu0 %v211
    %303 = vmatprep.subr.mxu0 %v216
    %304 = vmatpush1.msra.mxu0 %v215
    %305 = vmatprep.mubr.f32.mxu0 %v90
    %306 = vmatmul.mubr.f32.gmra.mrb[0].mxu0 %v89
    %v307 = vpop.f32.mrb[0].mxu0
    %v308 = vadd.f32 %v224, %v307
    %v309 = vpop.f32.mrb[0].mxu0
    %v310 = vadd.f32 %v228, %v309
    %311 = vdwg.mxu0
    %312 = vmatprep.subr.mxu0 %v94
    %313 = vmatpush1.msra.mxu0 %v93
    %314 = vmatprep.subr.mxu0 %v98
    %315 = vmatpush1.msra.mxu0 %v97
    %316 = vmatprep.subr.mxu0 %v102
    %317 = vmatpush1.msra.mxu0 %v101
    %318 = vmatprep.subr.mxu0 %v106
    %319 = vmatpush1.msra.mxu0 %v105
    %320 = vmatprep.subr.mxu0 %v110
    %321 = vmatpush1.msra.mxu0 %v109
    %322 = vmatprep.subr.mxu0 %v114
    %323 = vmatpush1.msra.mxu0 %v113
    %324 = vmatprep.subr.mxu0 %v118
    %325 = vmatpush1.msra.mxu0 %v117
    %326 = vmatprep.subr.mxu0 %v122
    %327 = vmatpush1.msra.mxu0 %v121
    %328 = vmatprep.subr.mxu0 %v126
    %329 = vmatpush1.msra.mxu0 %v125
    %330 = vmatprep.subr.mxu0 %v130
    %331 = vmatpush1.msra.mxu0 %v129
    %332 = vmatprep.subr.mxu0 %v134
    %333 = vmatpush1.msra.mxu0 %v133
    %334 = vmatprep.subr.mxu0 %v138
    %335 = vmatpush1.msra.mxu0 %v137
    %336 = vmatprep.subr.mxu0 %v142
    %337 = vmatpush1.msra.mxu0 %v141
    %338 = vmatprep.subr.mxu0 %v146
    %339 = vmatpush1.msra.mxu0 %v145
    %340 = vmatprep.subr.mxu0 %v150
    %341 = vmatpush1.msra.mxu0 %v149
    %342 = vmatprep.subr.mxu0 %v154
    %343 = vmatpush1.msra.mxu0 %v153
    %344 = vmatprep.subr.mxu0 %v158
    %345 = vmatpush1.msra.mxu0 %v157
    %346 = vmatprep.subr.mxu0 %v162
    %347 = vmatpush1.msra.mxu0 %v161
    %348 = vmatprep.subr.mxu0 %v166
    %349 = vmatpush1.msra.mxu0 %v165
    %350 = vmatprep.subr.mxu0 %v170
    %351 = vmatpush1.msra.mxu0 %v169
    %352 = vmatprep.subr.mxu0 %v174
    %353 = vmatpush1.msra.mxu0 %v173
    %354 = vmatprep.subr.mxu0 %v178
    %355 = vmatpush1.msra.mxu0 %v177
    %356 = vmatprep.subr.mxu0 %v182
    %357 = vmatpush1.msra.mxu0 %v181
    %358 = vmatprep.subr.mxu0 %v186
    %359 = vmatpush1.msra.mxu0 %v185
    %360 = vmatprep.subr.mxu0 %v190
    %361 = vmatpush1.msra.mxu0 %v189
    %362 = vmatprep.subr.mxu0 %v194
    %363 = vmatpush1.msra.mxu0 %v193
    %364 = vmatprep.subr.mxu0 %v198
    %365 = vmatpush1.msra.mxu0 %v197
    %366 = vmatprep.subr.mxu0 %v202
    %367 = vmatpush1.msra.mxu0 %v201
    %368 = vmatprep.subr.mxu0 %v206
    %369 = vmatpush1.msra.mxu0 %v205
    %370 = vmatprep.subr.mxu0 %v210
    %371 = vmatpush1.msra.mxu0 %v209
    %372 = vmatprep.subr.mxu0 %v214
    %373 = vmatpush1.msra.mxu0 %v213
    %374 = vmatprep.subr.mxu0 %v218
    %375 = vmatpush1.msra.mxu0 %v217
    %376 = vmatprep.mubr.f32.mxu0 %v90
    %377 = vmatmul.mubr.f32.gmra.mrb[0].mxu0 %v89
    %v378 = vpop.f32.mrb[0].mxu0
    %v379 = vadd.f32 %v232, %v378
    %v380 = vpop.f32.mrb[0].mxu0
    %v381 = vadd.f32 %v236, %v380
    %382 = vdwg.mxu0
    %v383 = vxor.u32 %v308, 2147483648
    %v384 = vmul.f32 %v383, 1.442695
    %v385 = vpow.pop %v384
    %v386 = vadd.f32 %v385, 1.0
    %v387 = vrcp.pop %v386
    %v388 = vmul.f32 1.0, %v387
    %v389 = vxor.u32 %v310, 2147483648
    %v390 = vmul.f32 %v389, 1.442695
    %v391 = vpow.pop %v390
    %v392 = vadd.f32 %v391, 1.0
    %v393 = vrcp.pop %v392
    %v394 = vmul.f32 1.0, %v393
    %v395 = vtanh.pop %v379
    %v396 = vxor.u32 %v381, 2147483648
    %v397 = vmul.f32 %v396, 1.442695
    %v398 = vpow.pop %v397
    %v399 = vadd.f32 %v398, 1.0
    %v400 = vrcp.pop %v399
    %v401 = vmul.f32 1.0, %v400
    %v402 = vmul.f32 %v394, %v85
    %v403 = vmul.f32 %v388, %v395
    %v404 = vadd.f32 %v402, %v403
    %v405 = vtanh.pop %v404
    %v406 = vmul.f32 %v401, %v405
    %407 = vst [vmem:[#allocation11] sm:$0xff] %v406
    %s408 = scalar_lea.vmem [#allocation3], 8
    %v409 = vld [vmem:[%s408] sm:$0xff]
    %410 = vst [vmem:[#allocation2] sm:$0xff] %v409
    %411 = vst [vmem:[#allocation2 + $0x8] sm:$0xff] %v406
    %v412 = vld [vmem:[#allocation2] sm:$0xff]
    %v413 = vld [vmem:[#allocation2 + $0x8] sm:$0xff]
    %v414 = vld [vmem:[#allocation6] sm:$0xff]
    %v415 = vld [vmem:[#allocation6 + $0x8] sm:$0xff]
    %v416 = vld [vmem:[#allocation6 + $0x10] sm:$0xff]
    %v417 = vld [vmem:[#allocation6 + $0x18] sm:$0xff]
    %v418 = vld [vmem:[#allocation6 + $0x20] sm:$0xff]
    %v419 = vld [vmem:[#allocation6 + $0x28] sm:$0xff]
    %v420 = vld [vmem:[#allocation6 + $0x30] sm:$0xff]
    %v421 = vld [vmem:[#allocation6 + $0x38] sm:$0xff]
    %v422 = vld [vmem:[#allocation6 + $0x40] sm:$0xff]
    %v423 = vld [vmem:[#allocation6 + $0x48] sm:$0xff]
    %v424 = vld [vmem:[#allocation6 + $0x50] sm:$0xff]
    %v425 = vld [vmem:[#allocation6 + $0x58] sm:$0xff]
    %v426 = vld [vmem:[#allocation6 + $0x60] sm:$0xff]
    %v427 = vld [vmem:[#allocation6 + $0x68] sm:$0xff]
    %v428 = vld [vmem:[#allocation6 + $0x70] sm:$0xff]
    %v429 = vld [vmem:[#allocation6 + $0x78] sm:$0xff]
    %v430 = vld [vmem:[#allocation6 + $0x80] sm:$0xff]
    %v431 = vld [vmem:[#allocation6 + $0x88] sm:$0xff]
    %v432 = vld [vmem:[#allocation6 + $0x90] sm:$0xff]
    %v433 = vld [vmem:[#allocation6 + $0x98] sm:$0xff]
    %v434 = vld [vmem:[#allocation6 + $0xa0] sm:$0xff]
    %v435 = vld [vmem:[#allocation6 + $0xa8] sm:$0xff]
    %v436 = vld [vmem:[#allocation6 + $0xb0] sm:$0xff]
    %v437 = vld [vmem:[#allocation6 + $0xb8] sm:$0xff]
    %v438 = vld [vmem:[#allocation6 + $0xc0] sm:$0xff]
    %v439 = vld [vmem:[#allocation6 + $0xc8] sm:$0xff]
    %v440 = vld [vmem:[#allocation6 + $0xd0] sm:$0xff]
    %v441 = vld [vmem:[#allocation6 + $0xd8] sm:$0xff]
    %v442 = vld [vmem:[#allocation6 + $0xe0] sm:$0xff]
    %v443 = vld [vmem:[#allocation6 + $0xe8] sm:$0xff]
    %v444 = vld [vmem:[#allocation6 + $0xf0] sm:$0xff]
    %v445 = vld [vmem:[#allocation6 + $0xf8] sm:$0xff]
    %v446 = vld [vmem:[#allocation6 + $0x100] sm:$0xff]
    %v447 = vld [vmem:[#allocation6 + $0x108] sm:$0xff]
    %v448 = vld [vmem:[#allocation6 + $0x110] sm:$0xff]
    %v449 = vld [vmem:[#allocation6 + $0x118] sm:$0xff]
    %v450 = vld [vmem:[#allocation6 + $0x120] sm:$0xff]
    %v451 = vld [vmem:[#allocation6 + $0x128] sm:$0xff]
    %v452 = vld [vmem:[#allocation6 + $0x130] sm:$0xff]
    %v453 = vld [vmem:[#allocation6 + $0x138] sm:$0xff]
    %v454 = vld [vmem:[#allocation6 + $0x140] sm:$0xff]
    %v455 = vld [vmem:[#allocation6 + $0x148] sm:$0xff]
    %v456 = vld [vmem:[#allocation6 + $0x150] sm:$0xff]
    %v457 = vld [vmem:[#allocation6 + $0x158] sm:$0xff]
    %v458 = vld [vmem:[#allocation6 + $0x160] sm:$0xff]
    %v459 = vld [vmem:[#allocation6 + $0x168] sm:$0xff]
    %v460 = vld [vmem:[#allocation6 + $0x170] sm:$0xff]
    %v461 = vld [vmem:[#allocation6 + $0x178] sm:$0xff]
    %v462 = vld [vmem:[#allocation6 + $0x180] sm:$0xff]
    %v463 = vld [vmem:[#allocation6 + $0x188] sm:$0xff]
    %v464 = vld [vmem:[#allocation6 + $0x190] sm:$0xff]
    %v465 = vld [vmem:[#allocation6 + $0x198] sm:$0xff]
    %v466 = vld [vmem:[#allocation6 + $0x1a0] sm:$0xff]
    %v467 = vld [vmem:[#allocation6 + $0x1a8] sm:$0xff]
    %v468 = vld [vmem:[#allocation6 + $0x1b0] sm:$0xff]
    %v469 = vld [vmem:[#allocation6 + $0x1b8] sm:$0xff]
    %v470 = vld [vmem:[#allocation6 + $0x1c0] sm:$0xff]
    %v471 = vld [vmem:[#allocation6 + $0x1c8] sm:$0xff]
    %v472 = vld [vmem:[#allocation6 + $0x1d0] sm:$0xff]
    %v473 = vld [vmem:[#allocation6 + $0x1d8] sm:$0xff]
    %v474 = vld [vmem:[#allocation6 + $0x1e0] sm:$0xff]
    %v475 = vld [vmem:[#allocation6 + $0x1e8] sm:$0xff]
    %v476 = vld [vmem:[#allocation6 + $0x1f0] sm:$0xff]
    %v477 = vld [vmem:[#allocation6 + $0x1f8] sm:$0xff]
    %v478 = vld [vmem:[#allocation6 + $0x200] sm:$0xff]
    %v479 = vld [vmem:[#allocation6 + $0x208] sm:$0xff]
    %v480 = vld [vmem:[#allocation6 + $0x210] sm:$0xff]
    %v481 = vld [vmem:[#allocation6 + $0x218] sm:$0xff]
    %v482 = vld [vmem:[#allocation6 + $0x220] sm:$0xff]
    %v483 = vld [vmem:[#allocation6 + $0x228] sm:$0xff]
    %v484 = vld [vmem:[#allocation6 + $0x230] sm:$0xff]
    %v485 = vld [vmem:[#allocation6 + $0x238] sm:$0xff]
    %v486 = vld [vmem:[#allocation6 + $0x240] sm:$0xff]
    %v487 = vld [vmem:[#allocation6 + $0x248] sm:$0xff]
    %v488 = vld [vmem:[#allocation6 + $0x250] sm:$0xff]
    %v489 = vld [vmem:[#allocation6 + $0x258] sm:$0xff]
    %v490 = vld [vmem:[#allocation6 + $0x260] sm:$0xff]
    %v491 = vld [vmem:[#allocation6 + $0x268] sm:$0xff]
    %v492 = vld [vmem:[#allocation6 + $0x270] sm:$0xff]
    %v493 = vld [vmem:[#allocation6 + $0x278] sm:$0xff]
    %v494 = vld [vmem:[#allocation6 + $0x280] sm:$0xff]
    %v495 = vld [vmem:[#allocation6 + $0x288] sm:$0xff]
    %v496 = vld [vmem:[#allocation6 + $0x290] sm:$0xff]
    %v497 = vld [vmem:[#allocation6 + $0x298] sm:$0xff]
    %v498 = vld [vmem:[#allocation6 + $0x2a0] sm:$0xff]
    %v499 = vld [vmem:[#allocation6 + $0x2a8] sm:$0xff]
    %v500 = vld [vmem:[#allocation6 + $0x2b0] sm:$0xff]
    %v501 = vld [vmem:[#allocation6 + $0x2b8] sm:$0xff]
    %v502 = vld [vmem:[#allocation6 + $0x2c0] sm:$0xff]
    %v503 = vld [vmem:[#allocation6 + $0x2c8] sm:$0xff]
    %v504 = vld [vmem:[#allocation6 + $0x2d0] sm:$0xff]
    %v505 = vld [vmem:[#allocation6 + $0x2d8] sm:$0xff]
    %v506 = vld [vmem:[#allocation6 + $0x2e0] sm:$0xff]
    %v507 = vld [vmem:[#allocation6 + $0x2e8] sm:$0xff]
    %v508 = vld [vmem:[#allocation6 + $0x2f0] sm:$0xff]
    %v509 = vld [vmem:[#allocation6 + $0x2f8] sm:$0xff]
    %v510 = vld [vmem:[#allocation6 + $0x300] sm:$0xff]
    %v511 = vld [vmem:[#allocation6 + $0x308] sm:$0xff]
    %v512 = vld [vmem:[#allocation6 + $0x310] sm:$0xff]
    %v513 = vld [vmem:[#allocation6 + $0x318] sm:$0xff]
    %v514 = vld [vmem:[#allocation6 + $0x320] sm:$0xff]
    %v515 = vld [vmem:[#allocation6 + $0x328] sm:$0xff]
    %v516 = vld [vmem:[#allocation6 + $0x330] sm:$0xff]
    %v517 = vld [vmem:[#allocation6 + $0x338] sm:$0xff]
    %v518 = vld [vmem:[#allocation6 + $0x340] sm:$0xff]
    %v519 = vld [vmem:[#allocation6 + $0x348] sm:$0xff]
    %v520 = vld [vmem:[#allocation6 + $0x350] sm:$0xff]
    %v521 = vld [vmem:[#allocation6 + $0x358] sm:$0xff]
    %v522 = vld [vmem:[#allocation6 + $0x360] sm:$0xff]
    %v523 = vld [vmem:[#allocation6 + $0x368] sm:$0xff]
    %v524 = vld [vmem:[#allocation6 + $0x370] sm:$0xff]
    %v525 = vld [vmem:[#allocation6 + $0x378] sm:$0xff]
    %v526 = vld [vmem:[#allocation6 + $0x380] sm:$0xff]
    %v527 = vld [vmem:[#allocation6 + $0x388] sm:$0xff]
    %v528 = vld [vmem:[#allocation6 + $0x390] sm:$0xff]
    %v529 = vld [vmem:[#allocation6 + $0x398] sm:$0xff]
    %v530 = vld [vmem:[#allocation6 + $0x3a0] sm:$0xff]
    %v531 = vld [vmem:[#allocation6 + $0x3a8] sm:$0xff]
    %v532 = vld [vmem:[#allocation6 + $0x3b0] sm:$0xff]
    %v533 = vld [vmem:[#allocation6 + $0x3b8] sm:$0xff]
    %v534 = vld [vmem:[#allocation6 + $0x3c0] sm:$0xff]
    %v535 = vld [vmem:[#allocation6 + $0x3c8] sm:$0xff]
    %v536 = vld [vmem:[#allocation6 + $0x3d0] sm:$0xff]
    %v537 = vld [vmem:[#allocation6 + $0x3d8] sm:$0xff]
    %v538 = vld [vmem:[#allocation6 + $0x3e0] sm:$0xff]
    %v539 = vld [vmem:[#allocation6 + $0x3e8] sm:$0xff]
    %v540 = vld [vmem:[#allocation6 + $0x3f0] sm:$0xff]
    %v541 = vld [vmem:[#allocation6 + $0x3f8] sm:$0xff]
    %v542 = vld [vmem:[#allocation8] sm:$0xf]
    %v544 = vlaneseq
    %v545 = vshrl.u32 %v544, 7
    %v546 = vsub.s32 0, %v545
    %v547 = vrot.slane %v542, %v546
    %v548 = vlaneseq
    %v549 = vshrl.u32 %v548, 7
    %v550 = vsub.s32 1, %v549
    %v551 = vrot.slane %v542, %v550
    %v552 = vlaneseq
    %v553 = vshrl.u32 %v552, 7
    %v554 = vsub.s32 2, %v553
    %v555 = vrot.slane %v542, %v554
    %v556 = vlaneseq
    %v557 = vshrl.u32 %v556, 7
    %v558 = vsub.s32 3, %v557
    %v559 = vrot.slane %v542, %v558
    %564 = vmatprep.subr.mxu0 %v415
    %565 = vmatpush1.msra.mxu0 %v414
    %566 = vmatprep.subr.mxu0 %v419
    %567 = vmatpush1.msra.mxu0 %v418
    %568 = vmatprep.subr.mxu0 %v423
    %569 = vmatpush1.msra.mxu0 %v422
    %570 = vmatprep.subr.mxu0 %v427
    %571 = vmatpush1.msra.mxu0 %v426
    %572 = vmatprep.subr.mxu0 %v431
    %573 = vmatpush1.msra.mxu0 %v430
    %574 = vmatprep.subr.mxu0 %v435
    %575 = vmatpush1.msra.mxu0 %v434
    %576 = vmatprep.subr.mxu0 %v439
    %577 = vmatpush1.msra.mxu0 %v438
    %578 = vmatprep.subr.mxu0 %v443
    %579 = vmatpush1.msra.mxu0 %v442
    %580 = vmatprep.subr.mxu0 %v447
    %581 = vmatpush1.msra.mxu0 %v446
    %582 = vmatprep.subr.mxu0 %v451
    %583 = vmatpush1.msra.mxu0 %v450
    %584 = vmatprep.subr.mxu0 %v455
    %585 = vmatpush1.msra.mxu0 %v454
    %586 = vmatprep.subr.mxu0 %v459
    %587 = vmatpush1.msra.mxu0 %v458
    %588 = vmatprep.subr.mxu0 %v463
    %589 = vmatpush1.msra.mxu0 %v462
    %590 = vmatprep.subr.mxu0 %v467
    %591 = vmatpush1.msra.mxu0 %v466
    %592 = vmatprep.subr.mxu0 %v471
    %593 = vmatpush1.msra.mxu0 %v470
    %594 = vmatprep.subr.mxu0 %v475
    %595 = vmatpush1.msra.mxu0 %v474
    %596 = vmatprep.subr.mxu0 %v479
    %597 = vmatpush1.msra.mxu0 %v478
    %598 = vmatprep.subr.mxu0 %v483
    %599 = vmatpush1.msra.mxu0 %v482
    %600 = vmatprep.subr.mxu0 %v487
    %601 = vmatpush1.msra.mxu0 %v486
    %602 = vmatprep.subr.mxu0 %v491
    %603 = vmatpush1.msra.mxu0 %v490
    %604 = vmatprep.subr.mxu0 %v495
    %605 = vmatpush1.msra.mxu0 %v494
    %606 = vmatprep.subr.mxu0 %v499
    %607 = vmatpush1.msra.mxu0 %v498
    %608 = vmatprep.subr.mxu0 %v503
    %609 = vmatpush1.msra.mxu0 %v502
    %610 = vmatprep.subr.mxu0 %v507
    %611 = vmatpush1.msra.mxu0 %v506
    %612 = vmatprep.subr.mxu0 %v511
    %613 = vmatpush1.msra.mxu0 %v510
    %614 = vmatprep.subr.mxu0 %v515
    %615 = vmatpush1.msra.mxu0 %v514
    %616 = vmatprep.subr.mxu0 %v519
    %617 = vmatpush1.msra.mxu0 %v518
    %618 = vmatprep.subr.mxu0 %v523
    %619 = vmatpush1.msra.mxu0 %v522
    %620 = vmatprep.subr.mxu0 %v527
    %621 = vmatpush1.msra.mxu0 %v526
    %622 = vmatprep.subr.mxu0 %v531
    %623 = vmatpush1.msra.mxu0 %v530
    %624 = vmatprep.subr.mxu0 %v535
    %625 = vmatpush1.msra.mxu0 %v534
    %626 = vmatprep.subr.mxu0 %v539
    %627 = vmatpush1.msra.mxu0 %v538
    %628 = vmatprep.mubr.f32.mxu0 %v413
    %629 = vmatmul.mubr.f32.gmra.mrb[0].mxu0 %v412
    %v630 = vpop.f32.mrb[0].mxu0
    %v631 = vadd.f32 %v547, %v630
    %v632 = vpop.f32.mrb[0].mxu0
    %v633 = vadd.f32 %v551, %v632
    %634 = vdwg.mxu0
    %635 = vmatprep.subr.mxu0 %v417
    %636 = vmatpush1.msra.mxu0 %v416
    %637 = vmatprep.subr.mxu0 %v421
    %638 = vmatpush1.msra.mxu0 %v420
    %639 = vmatprep.subr.mxu0 %v425
    %640 = vmatpush1.msra.mxu0 %v424
    %641 = vmatprep.subr.mxu0 %v429
    %642 = vmatpush1.msra.mxu0 %v428
    %643 = vmatprep.subr.mxu0 %v433
    %644 = vmatpush1.msra.mxu0 %v432
    %645 = vmatprep.subr.mxu0 %v437
    %646 = vmatpush1.msra.mxu0 %v436
    %647 = vmatprep.subr.mxu0 %v441
    %648 = vmatpush1.msra.mxu0 %v440
    %649 = vmatprep.subr.mxu0 %v445
    %650 = vmatpush1.msra.mxu0 %v444
    %651 = vmatprep.subr.mxu0 %v449
    %652 = vmatpush1.msra.mxu0 %v448
    %653 = vmatprep.subr.mxu0 %v453
    %654 = vmatpush1.msra.mxu0 %v452
    %655 = vmatprep.subr.mxu0 %v457
    %656 = vmatpush1.msra.mxu0 %v456
    %657 = vmatprep.subr.mxu0 %v461
    %658 = vmatpush1.msra.mxu0 %v460
    %659 = vmatprep.subr.mxu0 %v465
    %660 = vmatpush1.msra.mxu0 %v464
    %661 = vmatprep.subr.mxu0 %v469
    %662 = vmatpush1.msra.mxu0 %v468
    %663 = vmatprep.subr.mxu0 %v473
    %664 = vmatpush1.msra.mxu0 %v472
    %665 = vmatprep.subr.mxu0 %v477
    %666 = vmatpush1.msra.mxu0 %v476
    %667 = vmatprep.subr.mxu0 %v481
    %668 = vmatpush1.msra.mxu0 %v480
    %669 = vmatprep.subr.mxu0 %v485
    %670 = vmatpush1.msra.mxu0 %v484
    %671 = vmatprep.subr.mxu0 %v489
    %672 = vmatpush1.msra.mxu0 %v488
    %673 = vmatprep.subr.mxu0 %v493
    %674 = vmatpush1.msra.mxu0 %v492
    %675 = vmatprep.subr.mxu0 %v497
    %676 = vmatpush1.msra.mxu0 %v496
    %677 = vmatprep.subr.mxu0 %v501
    %678 = vmatpush1.msra.mxu0 %v500
    %679 = vmatprep.subr.mxu0 %v505
    %680 = vmatpush1.msra.mxu0 %v504
    %681 = vmatprep.subr.mxu0 %v509
    %682 = vmatpush1.msra.mxu0 %v508
    %683 = vmatprep.subr.mxu0 %v513
    %684 = vmatpush1.msra.mxu0 %v512
    %685 = vmatprep.subr.mxu0 %v517
    %686 = vmatpush1.msra.mxu0 %v516
    %687 = vmatprep.subr.mxu0 %v521
    %688 = vmatpush1.msra.mxu0 %v520
    %689 = vmatprep.subr.mxu0 %v525
    %690 = vmatpush1.msra.mxu0 %v524
    %691 = vmatprep.subr.mxu0 %v529
    %692 = vmatpush1.msra.mxu0 %v528
    %693 = vmatprep.subr.mxu0 %v533
    %694 = vmatpush1.msra.mxu0 %v532
    %695 = vmatprep.subr.mxu0 %v537
    %696 = vmatpush1.msra.mxu0 %v536
    %697 = vmatprep.subr.mxu0 %v541
    %698 = vmatpush1.msra.mxu0 %v540
    %699 = vmatprep.mubr.f32.mxu0 %v413
    %700 = vmatmul.mubr.f32.gmra.mrb[0].mxu0 %v412
    %v701 = vpop.f32.mrb[0].mxu0
    %v702 = vadd.f32 %v555, %v701
    %v703 = vpop.f32.mrb[0].mxu0
    %v704 = vadd.f32 %v559, %v703
    %705 = vdwg.mxu0
    %v706 = vxor.u32 %v631, 2147483648
    %v707 = vmul.f32 %v706, 1.442695
    %v708 = vpow.pop %v707
    %v709 = vadd.f32 %v708, 1.0
    %v710 = vrcp.pop %v709
    %v711 = vmul.f32 1.0, %v710
    %v712 = vxor.u32 %v633, 2147483648
    %v713 = vmul.f32 %v712, 1.442695
    %v714 = vpow.pop %v713
    %v715 = vadd.f32 %v714, 1.0
    %v716 = vrcp.pop %v715
    %v717 = vmul.f32 1.0, %v716
    %v718 = vtanh.pop %v702
    %v719 = vxor.u32 %v704, 2147483648
    %v720 = vmul.f32 %v719, 1.442695
    %v721 = vpow.pop %v720
    %v722 = vadd.f32 %v721, 1.0
    %v723 = vrcp.pop %v722
    %v724 = vmul.f32 1.0, %v723
    %v725 = vmul.f32 %v717, %v404
    %v726 = vmul.f32 %v711, %v718
    %v727 = vadd.f32 %v725, %v726
    %v728 = vtanh.pop %v727
    %v729 = vmul.f32 %v724, %v728
    %s730 = scalar_lea.vmem [#allocation11], 8
    %731 = vst [vmem:[%s730] sm:$0xff] %v729
    %s732 = scalar_lea.vmem [#allocation3], 16
    %v733 = vld [vmem:[%s732] sm:$0xff]
    %734 = vst [vmem:[#allocation2] sm:$0xff] %v733
    %735 = vst [vmem:[#allocation2 + $0x8] sm:$0xff] %v729
    %v736 = vld [vmem:[#allocation2] sm:$0xff]
    %v737 = vld [vmem:[#allocation2 + $0x8] sm:$0xff]
    %v738 = vld [vmem:[#allocation6] sm:$0xff]
    %v739 = vld [vmem:[#allocation6 + $0x8] sm:$0xff]
    %v740 = vld [vmem:[#allocation6 + $0x10] sm:$0xff]
    %v741 = vld [vmem:[#allocation6 + $0x18] sm:$0xff]
    %v742 = vld [vmem:[#allocation6 + $0x20] sm:$0xff]
    %v743 = vld [vmem:[#allocation6 + $0x28] sm:$0xff]
    %v744 = vld [vmem:[#allocation6 + $0x30] sm:$0xff]
    %v745 = vld [vmem:[#allocation6 + $0x38] sm:$0xff]
    %v746 = vld [vmem:[#allocation6 + $0x40] sm:$0xff]
    %v747 = vld [vmem:[#allocation6 + $0x48] sm:$0xff]
    %v748 = vld [vmem:[#allocation6 + $0x50] sm:$0xff]
    %v749 = vld [vmem:[#allocation6 + $0x58] sm:$0xff]
    %v750 = vld [vmem:[#allocation6 + $0x60] sm:$0xff]
    %v751 = vld [vmem:[#allocation6 + $0x68] sm:$0xff]
    %v752 = vld [vmem:[#allocation6 + $0x70] sm:$0xff]
    %v753 = vld [vmem:[#allocation6 + $0x78] sm:$0xff]
    %v754 = vld [vmem:[#allocation6 + $0x80] sm:$0xff]
    %v755 = vld [vmem:[#allocation6 + $0x88] sm:$0xff]
    %v756 = vld [vmem:[#allocation6 + $0x90] sm:$0xff]
    %v757 = vld [vmem:[#allocation6 + $0x98] sm:$0xff]
    %v758 = vld [vmem:[#allocation6 + $0xa0] sm:$0xff]
    %v759 = vld [vmem:[#allocation6 + $0xa8] sm:$0xff]
    %v760 = vld [vmem:[#allocation6 + $0xb0] sm:$0xff]
    %v761 = vld [vmem:[#allocation6 + $0xb8] sm:$0xff]
    %v762 = vld [vmem:[#allocation6 + $0xc0] sm:$0xff]
    %v763 = vld [vmem:[#allocation6 + $0xc8] sm:$0xff]
    %v764 = vld [vmem:[#allocation6 + $0xd0] sm:$0xff]
    %v765 = vld [vmem:[#allocation6 + $0xd8] sm:$0xff]
    %v766 = vld [vmem:[#allocation6 + $0xe0] sm:$0xff]
    %v767 = vld [vmem:[#allocation6 + $0xe8] sm:$0xff]
    %v768 = vld [vmem:[#allocation6 + $0xf0] sm:$0xff]
    %v769 = vld [vmem:[#allocation6 + $0xf8] sm:$0xff]
    %v770 = vld [vmem:[#allocation6 + $0x100] sm:$0xff]
    %v771 = vld [vmem:[#allocation6 + $0x108] sm:$0xff]
    %v772 = vld [vmem:[#allocation6 + $0x110] sm:$0xff]
    %v773 = vld [vmem:[#allocation6 + $0x118] sm:$0xff]
    %v774 = vld [vmem:[#allocation6 + $0x120] sm:$0xff]
    %v775 = vld [vmem:[#allocation6 + $0x128] sm:$0xff]
    %v776 = vld [vmem:[#allocation6 + $0x130] sm:$0xff]
    %v777 = vld [vmem:[#allocation6 + $0x138] sm:$0xff]
    %v778 = vld [vmem:[#allocation6 + $0x140] sm:$0xff]
    %v779 = vld [vmem:[#allocation6 + $0x148] sm:$0xff]
    %v780 = vld [vmem:[#allocation6 + $0x150] sm:$0xff]
    %v781 = vld [vmem:[#allocation6 + $0x158] sm:$0xff]
    %v782 = vld [vmem:[#allocation6 + $0x160] sm:$0xff]
    %v783 = vld [vmem:[#allocation6 + $0x168] sm:$0xff]
    %v784 = vld [vmem:[#allocation6 + $0x170] sm:$0xff]
    %v785 = vld [vmem:[#allocation6 + $0x178] sm:$0xff]
    %v786 = vld [vmem:[#allocation6 + $0x180] sm:$0xff]
    %v787 = vld [vmem:[#allocation6 + $0x188] sm:$0xff]
    %v788 = vld [vmem:[#allocation6 + $0x190] sm:$0xff]
    %v789 = vld [vmem:[#allocation6 + $0x198] sm:$0xff]
    %v790 = vld [vmem:[#allocation6 + $0x1a0] sm:$0xff]
    %v791 = vld [vmem:[#allocation6 + $0x1a8] sm:$0xff]
    %v792 = vld [vmem:[#allocation6 + $0x1b0] sm:$0xff]
    %v793 = vld [vmem:[#allocation6 + $0x1b8] sm:$0xff]
    %v794 = vld [vmem:[#allocation6 + $0x1c0] sm:$0xff]
    %v795 = vld [vmem:[#allocation6 + $0x1c8] sm:$0xff]
    %v796 = vld [vmem:[#allocation6 + $0x1d0] sm:$0xff]
    %v797 = vld [vmem:[#allocation6 + $0x1d8] sm:$0xff]
    %v798 = vld [vmem:[#allocation6 + $0x1e0] sm:$0xff]
    %v799 = vld [vmem:[#allocation6 + $0x1e8] sm:$0xff]
    %v800 = vld [vmem:[#allocation6 + $0x1f0] sm:$0xff]
    %v801 = vld [vmem:[#allocation6 + $0x1f8] sm:$0xff]
    %v802 = vld [vmem:[#allocation6 + $0x200] sm:$0xff]
    %v803 = vld [vmem:[#allocation6 + $0x208] sm:$0xff]
    %v804 = vld [vmem:[#allocation6 + $0x210] sm:$0xff]
    %v805 = vld [vmem:[#allocation6 + $0x218] sm:$0xff]
    %v806 = vld [vmem:[#allocation6 + $0x220] sm:$0xff]
    %v807 = vld [vmem:[#allocation6 + $0x228] sm:$0xff]
    %v808 = vld [vmem:[#allocation6 + $0x230] sm:$0xff]
    %v809 = vld [vmem:[#allocation6 + $0x238] sm:$0xff]
    %v810 = vld [vmem:[#allocation6 + $0x240] sm:$0xff]
    %v811 = vld [vmem:[#allocation6 + $0x248] sm:$0xff]
    %v812 = vld [vmem:[#allocation6 + $0x250] sm:$0xff]
    %v813 = vld [vmem:[#allocation6 + $0x258] sm:$0xff]
    %v814 = vld [vmem:[#allocation6 + $0x260] sm:$0xff]
    %v815 = vld [vmem:[#allocation6 + $0x268] sm:$0xff]
    %v816 = vld [vmem:[#allocation6 + $0x270] sm:$0xff]
    %v817 = vld [vmem:[#allocation6 + $0x278] sm:$0xff]
    %v818 = vld [vmem:[#allocation6 + $0x280] sm:$0xff]
    %v819 = vld [vmem:[#allocation6 + $0x288] sm:$0xff]
    %v820 = vld [vmem:[#allocation6 + $0x290] sm:$0xff]
    %v821 = vld [vmem:[#allocation6 + $0x298] sm:$0xff]
    %v822 = vld [vmem:[#allocation6 + $0x2a0] sm:$0xff]
    %v823 = vld [vmem:[#allocation6 + $0x2a8] sm:$0xff]
    %v824 = vld [vmem:[#allocation6 + $0x2b0] sm:$0xff]
    %v825 = vld [vmem:[#allocation6 + $0x2b8] sm:$0xff]
    %v826 = vld [vmem:[#allocation6 + $0x2c0] sm:$0xff]
    %v827 = vld [vmem:[#allocation6 + $0x2c8] sm:$0xff]
    %v828 = vld [vmem:[#allocation6 + $0x2d0] sm:$0xff]
    %v829 = vld [vmem:[#allocation6 + $0x2d8] sm:$0xff]
    %v830 = vld [vmem:[#allocation6 + $0x2e0] sm:$0xff]
    %v831 = vld [vmem:[#allocation6 + $0x2e8] sm:$0xff]
    %v832 = vld [vmem:[#allocation6 + $0x2f0] sm:$0xff]
    %v833 = vld [vmem:[#allocation6 + $0x2f8] sm:$0xff]
    %v834 = vld [vmem:[#allocation6 + $0x300] sm:$0xff]
    %v835 = vld [vmem:[#allocation6 + $0x308] sm:$0xff]
    %v836 = vld [vmem:[#allocation6 + $0x310] sm:$0xff]
    %v837 = vld [vmem:[#allocation6 + $0x318] sm:$0xff]
    %v838 = vld [vmem:[#allocation6 + $0x320] sm:$0xff]
    %v839 = vld [vmem:[#allocation6 + $0x328] sm:$0xff]
    %v840 = vld [vmem:[#allocation6 + $0x330] sm:$0xff]
    %v841 = vld [vmem:[#allocation6 + $0x338] sm:$0xff]
    %v842 = vld [vmem:[#allocation6 + $0x340] sm:$0xff]
    %v843 = vld [vmem:[#allocation6 + $0x348] sm:$0xff]
    %v844 = vld [vmem:[#allocation6 + $0x350] sm:$0xff]
    %v845 = vld [vmem:[#allocation6 + $0x358] sm:$0xff]
    %v846 = vld [vmem:[#allocation6 + $0x360] sm:$0xff]
    %v847 = vld [vmem:[#allocation6 + $0x368] sm:$0xff]
    %v848 = vld [vmem:[#allocation6 + $0x370] sm:$0xff]
    %v849 = vld [vmem:[#allocation6 + $0x378] sm:$0xff]
    %v850 = vld [vmem:[#allocation6 + $0x380] sm:$0xff]
    %v851 = vld [vmem:[#allocation6 + $0x388] sm:$0xff]
    %v852 = vld [vmem:[#allocation6 + $0x390] sm:$0xff]
    %v853 = vld [vmem:[#allocation6 + $0x398] sm:$0xff]
    %v854 = vld [vmem:[#allocation6 + $0x3a0] sm:$0xff]
    %v855 = vld [vmem:[#allocation6 + $0x3a8] sm:$0xff]
    %v856 = vld [vmem:[#allocation6 + $0x3b0] sm:$0xff]
    %v857 = vld [vmem:[#allocation6 + $0x3b8] sm:$0xff]
    %v858 = vld [vmem:[#allocation6 + $0x3c0] sm:$0xff]
    %v859 = vld [vmem:[#allocation6 + $0x3c8] sm:$0xff]
    %v860 = vld [vmem:[#allocation6 + $0x3d0] sm:$0xff]
    %v861 = vld [vmem:[#allocation6 + $0x3d8] sm:$0xff]
    %v862 = vld [vmem:[#allocation6 + $0x3e0] sm:$0xff]
    %v863 = vld [vmem:[#allocation6 + $0x3e8] sm:$0xff]
    %v864 = vld [vmem:[#allocation6 + $0x3f0] sm:$0xff]
    %v865 = vld [vmem:[#allocation6 + $0x3f8] sm:$0xff]
    %v866 = vld [vmem:[#allocation8] sm:$0xf]
    %v868 = vlaneseq
    %v869 = vshrl.u32 %v868, 7
    %v870 = vsub.s32 0, %v869
    %v871 = vrot.slane %v866, %v870
    %v872 = vlaneseq
    %v873 = vshrl.u32 %v872, 7
    %v874 = vsub.s32 1, %v873
    %v875 = vrot.slane %v866, %v874
    %v876 = vlaneseq
    %v877 = vshrl.u32 %v876, 7
    %v878 = vsub.s32 2, %v877
    %v879 = vrot.slane %v866, %v878
    %v880 = vlaneseq
    %v881 = vshrl.u32 %v880, 7
    %v882 = vsub.s32 3, %v881
    %v883 = vrot.slane %v866, %v882
    %888 = vmatprep.subr.mxu0 %v739
    %889 = vmatpush1.msra.mxu0 %v738
    %890 = vmatprep.subr.mxu0 %v743
    %891 = vmatpush1.msra.mxu0 %v742
    %892 = vmatprep.subr.mxu0 %v747
    %893 = vmatpush1.msra.mxu0 %v746
    %894 = vmatprep.subr.mxu0 %v751
    %895 = vmatpush1.msra.mxu0 %v750
    %896 = vmatprep.subr.mxu0 %v755
    %897 = vmatpush1.msra.mxu0 %v754
    %898 = vmatprep.subr.mxu0 %v759
    %899 = vmatpush1.msra.mxu0 %v758
    %900 = vmatprep.subr.mxu0 %v763
    %901 = vmatpush1.msra.mxu0 %v762
    %902 = vmatprep.subr.mxu0 %v767
    %903 = vmatpush1.msra.mxu0 %v766
    %904 = vmatprep.subr.mxu0 %v771
    %905 = vmatpush1.msra.mxu0 %v770
    %906 = vmatprep.subr.mxu0 %v775
    %907 = vmatpush1.msra.mxu0 %v774
    %908 = vmatprep.subr.mxu0 %v779
    %909 = vmatpush1.msra.mxu0 %v778
    %910 = vmatprep.subr.mxu0 %v783
    %911 = vmatpush1.msra.mxu0 %v782
    %912 = vmatprep.subr.mxu0 %v787
    %913 = vmatpush1.msra.mxu0 %v786
    %914 = vmatprep.subr.mxu0 %v791
    %915 = vmatpush1.msra.mxu0 %v790
    %916 = vmatprep.subr.mxu0 %v795
    %917 = vmatpush1.msra.mxu0 %v794
    %918 = vmatprep.subr.mxu0 %v799
    %919 = vmatpush1.msra.mxu0 %v798
    %920 = vmatprep.subr.mxu0 %v803
    %921 = vmatpush1.msra.mxu0 %v802
    %922 = vmatprep.subr.mxu0 %v807
    %923 = vmatpush1.msra.mxu0 %v806
    %924 = vmatprep.subr.mxu0 %v811
    %925 = vmatpush1.msra.mxu0 %v810
    %926 = vmatprep.subr.mxu0 %v815
    %927 = vmatpush1.msra.mxu0 %v814
    %928 = vmatprep.subr.mxu0 %v819
    %929 = vmatpush1.msra.mxu0 %v818
    %930 = vmatprep.subr.mxu0 %v823
    %931 = vmatpush1.msra.mxu0 %v822
    %932 = vmatprep.subr.mxu0 %v827
    %933 = vmatpush1.msra.mxu0 %v826
    %934 = vmatprep.subr.mxu0 %v831
    %935 = vmatpush1.msra.mxu0 %v830
    %936 = vmatprep.subr.mxu0 %v835
    %937 = vmatpush1.msra.mxu0 %v834
    %938 = vmatprep.subr.mxu0 %v839
    %939 = vmatpush1.msra.mxu0 %v838
    %940 = vmatprep.subr.mxu0 %v843
    %941 = vmatpush1.msra.mxu0 %v842
    %942 = vmatprep.subr.mxu0 %v847
    %943 = vmatpush1.msra.mxu0 %v846
    %944 = vmatprep.subr.mxu0 %v851
    %945 = vmatpush1.msra.mxu0 %v850
    %946 = vmatprep.subr.mxu0 %v855
    %947 = vmatpush1.msra.mxu0 %v854
    %948 = vmatprep.subr.mxu0 %v859
    %949 = vmatpush1.msra.mxu0 %v858
    %950 = vmatprep.subr.mxu0 %v863
    %951 = vmatpush1.msra.mxu0 %v862
    %952 = vmatprep.mubr.f32.mxu0 %v737
    %953 = vmatmul.mubr.f32.gmra.mrb[0].mxu0 %v736
    %v954 = vpop.f32.mrb[0].mxu0
    %v955 = vadd.f32 %v871, %v954
    %v956 = vpop.f32.mrb[0].mxu0
    %v957 = vadd.f32 %v875, %v956
    %958 = vdwg.mxu0
    %959 = vmatprep.subr.mxu0 %v741
    %960 = vmatpush1.msra.mxu0 %v740
    %961 = vmatprep.subr.mxu0 %v745
    %962 = vmatpush1.msra.mxu0 %v744
    %963 = vmatprep.subr.mxu0 %v749
    %964 = vmatpush1.msra.mxu0 %v748
    %965 = vmatprep.subr.mxu0 %v753
    %966 = vmatpush1.msra.mxu0 %v752
    %967 = vmatprep.subr.mxu0 %v757
    %968 = vmatpush1.msra.mxu0 %v756
    %969 = vmatprep.subr.mxu0 %v761
    %970 = vmatpush1.msra.mxu0 %v760
    %971 = vmatprep.subr.mxu0 %v765
    %972 = vmatpush1.msra.mxu0 %v764
    %973 = vmatprep.subr.mxu0 %v769
    %974 = vmatpush1.msra.mxu0 %v768
    %975 = vmatprep.subr.mxu0 %v773
    %976 = vmatpush1.msra.mxu0 %v772
    %977 = vmatprep.subr.mxu0 %v777
    %978 = vmatpush1.msra.mxu0 %v776
    %979 = vmatprep.subr.mxu0 %v781
    %980 = vmatpush1.msra.mxu0 %v780
    %981 = vmatprep.subr.mxu0 %v785
    %982 = vmatpush1.msra.mxu0 %v784
    %983 = vmatprep.subr.mxu0 %v789
    %984 = vmatpush1.msra.mxu0 %v788
    %985 = vmatprep.subr.mxu0 %v793
    %986 = vmatpush1.msra.mxu0 %v792
    %987 = vmatprep.subr.mxu0 %v797
    %988 = vmatpush1.msra.mxu0 %v796
    %989 = vmatprep.subr.mxu0 %v801
    %990 = vmatpush1.msra.mxu0 %v800
    %991 = vmatprep.subr.mxu0 %v805
    %992 = vmatpush1.msra.mxu0 %v804
    %993 = vmatprep.subr.mxu0 %v809
    %994 = vmatpush1.msra.mxu0 %v808
    %995 = vmatprep.subr.mxu0 %v813
    %996 = vmatpush1.msra.mxu0 %v812
    %997 = vmatprep.subr.mxu0 %v817
    %998 = vmatpush1.msra.mxu0 %v816
    %999 = vmatprep.subr.mxu0 %v821
    %1000 = vmatpush1.msra.mxu0 %v820
    %1001 = vmatprep.subr.mxu0 %v825
    %1002 = vmatpush1.msra.mxu0 %v824
    %1003 = vmatprep.subr.mxu0 %v829
    %1004 = vmatpush1.msra.mxu0 %v828
    %1005 = vmatprep.subr.mxu0 %v833
    %1006 = vmatpush1.msra.mxu0 %v832
    %1007 = vmatprep.subr.mxu0 %v837
    %1008 = vmatpush1.msra.mxu0 %v836
    %1009 = vmatprep.subr.mxu0 %v841
    %1010 = vmatpush1.msra.mxu0 %v840
    %1011 = vmatprep.subr.mxu0 %v845
    %1012 = vmatpush1.msra.mxu0 %v844
    %1013 = vmatprep.subr.mxu0 %v849
    %1014 = vmatpush1.msra.mxu0 %v848
    %1015 = vmatprep.subr.mxu0 %v853
    %1016 = vmatpush1.msra.mxu0 %v852
    %1017 = vmatprep.subr.mxu0 %v857
    %1018 = vmatpush1.msra.mxu0 %v856
    %1019 = vmatprep.subr.mxu0 %v861
    %1020 = vmatpush1.msra.mxu0 %v860
    %1021 = vmatprep.subr.mxu0 %v865
    %1022 = vmatpush1.msra.mxu0 %v864
    %1023 = vmatprep.mubr.f32.mxu0 %v737
    %1024 = vmatmul.mubr.f32.gmra.mrb[0].mxu0 %v736
    %v1025 = vpop.f32.mrb[0].mxu0
    %v1026 = vadd.f32 %v879, %v1025
    %v1027 = vpop.f32.mrb[0].mxu0
    %v1028 = vadd.f32 %v883, %v1027
    %1029 = vdwg.mxu0
    %v1030 = vxor.u32 %v955, 2147483648
    %v1031 = vmul.f32 %v1030, 1.442695
    %v1032 = vpow.pop %v1031
    %v1033 = vadd.f32 %v1032, 1.0
    %v1034 = vrcp.pop %v1033
    %v1035 = vmul.f32 1.0, %v1034
    %v1036 = vxor.u32 %v957, 2147483648
    %v1037 = vmul.f32 %v1036, 1.442695
    %v1038 = vpow.pop %v1037
    %v1039 = vadd.f32 %v1038, 1.0
    %v1040 = vrcp.pop %v1039
    %v1041 = vmul.f32 1.0, %v1040
    %v1042 = vtanh.pop %v1026
    %v1043 = vxor.u32 %v1028, 2147483648
    %v1044 = vmul.f32 %v1043, 1.442695
    %v1045 = vpow.pop %v1044
    %v1046 = vadd.f32 %v1045, 1.0
    %v1047 = vrcp.pop %v1046
    %v1048 = vmul.f32 1.0, %v1047
    %v1049 = vmul.f32 %v1041, %v727
    %v1050 = vmul.f32 %v1035, %v1042
    %v1051 = vadd.f32 %v1049, %v1050
    %v1052 = vtanh.pop %v1051
    %v1053 = vmul.f32 %v1048, %v1052
    %s1054 = scalar_lea.vmem [#allocation11], 16
    %1055 = vst [vmem:[%s1054] sm:$0xff] %v1053
    %s1056 = scalar_lea.vmem [#allocation3], 24
    %v1057 = vld [vmem:[%s1056] sm:$0xff]
    %1058 = vst [vmem:[#allocation2] sm:$0xff] %v1057
    %1059 = vst [vmem:[#allocation2 + $0x8] sm:$0xff] %v1053
    %v1060 = vld [vmem:[#allocation2] sm:$0xff]
    %v1061 = vld [vmem:[#allocation2 + $0x8] sm:$0xff]
    %v1062 = vld [vmem:[#allocation6] sm:$0xff]
    %v1063 = vld [vmem:[#allocation6 + $0x8] sm:$0xff]
    %v1064 = vld [vmem:[#allocation6 + $0x10] sm:$0xff]
    %v1065 = vld [vmem:[#allocation6 + $0x18] sm:$0xff]
    %v1066 = vld [vmem:[#allocation6 + $0x20] sm:$0xff]
    %v1067 = vld [vmem:[#allocation6 + $0x28] sm:$0xff]
    %v1068 = vld [vmem:[#allocation6 + $0x30] sm:$0xff]
    %v1069 = vld [vmem:[#allocation6 + $0x38] sm:$0xff]
    %v1070 = vld [vmem:[#allocation6 + $0x40] sm:$0xff]
    %v1071 = vld [vmem:[#allocation6 + $0x48] sm:$0xff]
    %v1072 = vld [vmem:[#allocation6 + $0x50] sm:$0xff]
    %v1073 = vld [vmem:[#allocation6 + $0x58] sm:$0xff]
    %v1074 = vld [vmem:[#allocation6 + $0x60] sm:$0xff]
    %v1075 = vld [vmem:[#allocation6 + $0x68] sm:$0xff]
    %v1076 = vld [vmem:[#allocation6 + $0x70] sm:$0xff]
    %v1077 = vld [vmem:[#allocation6 + $0x78] sm:$0xff]
    %v1078 = vld [vmem:[#allocation6 + $0x80] sm:$0xff]
    %v1079 = vld [vmem:[#allocation6 + $0x88] sm:$0xff]
    %v1080 = vld [vmem:[#allocation6 + $0x90] sm:$0xff]
    %v1081 = vld [vmem:[#allocation6 + $0x98] sm:$0xff]
    %v1082 = vld [vmem:[#allocation6 + $0xa0] sm:$0xff]
    %v1083 = vld [vmem:[#allocation6 + $0xa8] sm:$0xff]
    %v1084 = vld [vmem:[#allocation6 + $0xb0] sm:$0xff]
    %v1085 = vld [vmem:[#allocation6 + $0xb8] sm:$0xff]
    %v1086 = vld [vmem:[#allocation6 + $0xc0] sm:$0xff]
    %v1087 = vld [vmem:[#allocation6 + $0xc8] sm:$0xff]
    %v1088 = vld [vmem:[#allocation6 + $0xd0] sm:$0xff]
    %v1089 = vld [vmem:[#allocation6 + $0xd8] sm:$0xff]
    %v1090 = vld [vmem:[#allocation6 + $0xe0] sm:$0xff]
    %v1091 = vld [vmem:[#allocation6 + $0xe8] sm:$0xff]
    %v1092 = vld [vmem:[#allocation6 + $0xf0] sm:$0xff]
    %v1093 = vld [vmem:[#allocation6 + $0xf8] sm:$0xff]
    %v1094 = vld [vmem:[#allocation6 + $0x100] sm:$0xff]
    %v1095 = vld [vmem:[#allocation6 + $0x108] sm:$0xff]
    %v1096 = vld [vmem:[#allocation6 + $0x110] sm:$0xff]
    %v1097 = vld [vmem:[#allocation6 + $0x118] sm:$0xff]
    %v1098 = vld [vmem:[#allocation6 + $0x120] sm:$0xff]
    %v1099 = vld [vmem:[#allocation6 + $0x128] sm:$0xff]
    %v1100 = vld [vmem:[#allocation6 + $0x130] sm:$0xff]
    %v1101 = vld [vmem:[#allocation6 + $0x138] sm:$0xff]
    %v1102 = vld [vmem:[#allocation6 + $0x140] sm:$0xff]
    %v1103 = vld [vmem:[#allocation6 + $0x148] sm:$0xff]
    %v1104 = vld [vmem:[#allocation6 + $0x150] sm:$0xff]
    %v1105 = vld [vmem:[#allocation6 + $0x158] sm:$0xff]
    %v1106 = vld [vmem:[#allocation6 + $0x160] sm:$0xff]
    %v1107 = vld [vmem:[#allocation6 + $0x168] sm:$0xff]
    %v1108 = vld [vmem:[#allocation6 + $0x170] sm:$0xff]
    %v1109 = vld [vmem:[#allocation6 + $0x178] sm:$0xff]
    %v1110 = vld [vmem:[#allocation6 + $0x180] sm:$0xff]
    %v1111 = vld [vmem:[#allocation6 + $0x188] sm:$0xff]
    %v1112 = vld [vmem:[#allocation6 + $0x190] sm:$0xff]
    %v1113 = vld [vmem:[#allocation6 + $0x198] sm:$0xff]
    %v1114 = vld [vmem:[#allocation6 + $0x1a0] sm:$0xff]
    %v1115 = vld [vmem:[#allocation6 + $0x1a8] sm:$0xff]
    %v1116 = vld [vmem:[#allocation6 + $0x1b0] sm:$0xff]
    %v1117 = vld [vmem:[#allocation6 + $0x1b8] sm:$0xff]
    %v1118 = vld [vmem:[#allocation6 + $0x1c0] sm:$0xff]
    %v1119 = vld [vmem:[#allocation6 + $0x1c8] sm:$0xff]
    %v1120 = vld [vmem:[#allocation6 + $0x1d0] sm:$0xff]
    %v1121 = vld [vmem:[#allocation6 + $0x1d8] sm:$0xff]
    %v1122 = vld [vmem:[#allocation6 + $0x1e0] sm:$0xff]
    %v1123 = vld [vmem:[#allocation6 + $0x1e8] sm:$0xff]
    %v1124 = vld [vmem:[#allocation6 + $0x1f0] sm:$0xff]
    %v1125 = vld [vmem:[#allocation6 + $0x1f8] sm:$0xff]
    %v1126 = vld [vmem:[#allocation6 + $0x200] sm:$0xff]
    %v1127 = vld [vmem:[#allocation6 + $0x208] sm:$0xff]
    %v1128 = vld [vmem:[#allocation6 + $0x210] sm:$0xff]
    %v1129 = vld [vmem:[#allocation6 + $0x218] sm:$0xff]
    %v1130 = vld [vmem:[#allocation6 + $0x220] sm:$0xff]
    %v1131 = vld [vmem:[#allocation6 + $0x228] sm:$0xff]
    %v1132 = vld [vmem:[#allocation6 + $0x230] sm:$0xff]
    %v1133 = vld [vmem:[#allocation6 + $0x238] sm:$0xff]
    %v1134 = vld [vmem:[#allocation6 + $0x240] sm:$0xff]
    %v1135 = vld [vmem:[#allocation6 + $0x248] sm:$0xff]
    %v1136 = vld [vmem:[#allocation6 + $0x250] sm:$0xff]
    %v1137 = vld [vmem:[#allocation6 + $0x258] sm:$0xff]
    %v1138 = vld [vmem:[#allocation6 + $0x260] sm:$0xff]
    %v1139 = vld [vmem:[#allocation6 + $0x268] sm:$0xff]
    %v1140 = vld [vmem:[#allocation6 + $0x270] sm:$0xff]
    %v1141 = vld [vmem:[#allocation6 + $0x278] sm:$0xff]
    %v1142 = vld [vmem:[#allocation6 + $0x280] sm:$0xff]
    %v1143 = vld [vmem:[#allocation6 + $0x288] sm:$0xff]
    %v1144 = vld [vmem:[#allocation6 + $0x290] sm:$0xff]
    %v1145 = vld [vmem:[#allocation6 + $0x298] sm:$0xff]
    %v1146 = vld [vmem:[#allocation6 + $0x2a0] sm:$0xff]
    %v1147 = vld [vmem:[#allocation6 + $0x2a8] sm:$0xff]
    %v1148 = vld [vmem:[#allocation6 + $0x2b0] sm:$0xff]
    %v1149 = vld [vmem:[#allocation6 + $0x2b8] sm:$0xff]
    %v1150 = vld [vmem:[#allocation6 + $0x2c0] sm:$0xff]
    %v1151 = vld [vmem:[#allocation6 + $0x2c8] sm:$0xff]
    %v1152 = vld [vmem:[#allocation6 + $0x2d0] sm:$0xff]
    %v1153 = vld [vmem:[#allocation6 + $0x2d8] sm:$0xff]
    %v1154 = vld [vmem:[#allocation6 + $0x2e0] sm:$0xff]
    %v1155 = vld [vmem:[#allocation6 + $0x2e8] sm:$0xff]
    %v1156 = vld [vmem:[#allocation6 + $0x2f0] sm:$0xff]
    %v1157 = vld [vmem:[#allocation6 + $0x2f8] sm:$0xff]
    %v1158 = vld [vmem:[#allocation6 + $0x300] sm:$0xff]
    %v1159 = vld [vmem:[#allocation6 + $0x308] sm:$0xff]
    %v1160 = vld [vmem:[#allocation6 + $0x310] sm:$0xff]
    %v1161 = vld [vmem:[#allocation6 + $0x318] sm:$0xff]
    %v1162 = vld [vmem:[#allocation6 + $0x320] sm:$0xff]
    %v1163 = vld [vmem:[#allocation6 + $0x328] sm:$0xff]
    %v1164 = vld [vmem:[#allocation6 + $0x330] sm:$0xff]
    %v1165 = vld [vmem:[#allocation6 + $0x338] sm:$0xff]
    %v1166 = vld [vmem:[#allocation6 + $0x340] sm:$0xff]
    %v1167 = vld [vmem:[#allocation6 + $0x348] sm:$0xff]
    %v1168 = vld [vmem:[#allocation6 + $0x350] sm:$0xff]
    %v1169 = vld [vmem:[#allocation6 + $0x358] sm:$0xff]
    %v1170 = vld [vmem:[#allocation6 + $0x360] sm:$0xff]
    %v1171 = vld [vmem:[#allocation6 + $0x368] sm:$0xff]
    %v1172 = vld [vmem:[#allocation6 + $0x370] sm:$0xff]
    %v1173 = vld [vmem:[#allocation6 + $0x378] sm:$0xff]
    %v1174 = vld [vmem:[#allocation6 + $0x380] sm:$0xff]
    %v1175 = vld [vmem:[#allocation6 + $0x388] sm:$0xff]
    %v1176 = vld [vmem:[#allocation6 + $0x390] sm:$0xff]
    %v1177 = vld [vmem:[#allocation6 + $0x398] sm:$0xff]
    %v1178 = vld [vmem:[#allocation6 + $0x3a0] sm:$0xff]
    %v1179 = vld [vmem:[#allocation6 + $0x3a8] sm:$0xff]
    %v1180 = vld [vmem:[#allocation6 + $0x3b0] sm:$0xff]
    %v1181 = vld [vmem:[#allocation6 + $0x3b8] sm:$0xff]
    %v1182 = vld [vmem:[#allocation6 + $0x3c0] sm:$0xff]
    %v1183 = vld [vmem:[#allocation6 + $0x3c8] sm:$0xff]
    %v1184 = vld [vmem:[#allocation6 + $0x3d0] sm:$0xff]
    %v1185 = vld [vmem:[#allocation6 + $0x3d8] sm:$0xff]
    %v1186 = vld [vmem:[#allocation6 + $0x3e0] sm:$0xff]
    %v1187 = vld [vmem:[#allocation6 + $0x3e8] sm:$0xff]
    %v1188 = vld [vmem:[#allocation6 + $0x3f0] sm:$0xff]
    %v1189 = vld [vmem:[#allocation6 + $0x3f8] sm:$0xff]
    %v1190 = vld [vmem:[#allocation8] sm:$0xf]
    %v1192 = vlaneseq
    %v1193 = vshrl.u32 %v1192, 7
    %v1194 = vsub.s32 0, %v1193
    %v1195 = vrot.slane %v1190, %v1194
    %v1196 = vlaneseq
    %v1197 = vshrl.u32 %v1196, 7
    %v1198 = vsub.s32 1, %v1197
    %v1199 = vrot.slane %v1190, %v1198
    %v1200 = vlaneseq
    %v1201 = vshrl.u32 %v1200, 7
    %v1202 = vsub.s32 2, %v1201
    %v1203 = vrot.slane %v1190, %v1202
    %v1204 = vlaneseq
    %v1205 = vshrl.u32 %v1204, 7
    %v1206 = vsub.s32 3, %v1205
    %v1207 = vrot.slane %v1190, %v1206
    %1212 = vmatprep.subr.mxu0 %v1063
    %1213 = vmatpush1.msra.mxu0 %v1062
    %1214 = vmatprep.subr.mxu0 %v1067
    %1215 = vmatpush1.msra.mxu0 %v1066
    %1216 = vmatprep.subr.mxu0 %v1071
    %1217 = vmatpush1.msra.mxu0 %v1070
    %1218 = vmatprep.subr.mxu0 %v1075
    %1219 = vmatpush1.msra.mxu0 %v1074
    %1220 = vmatprep.subr.mxu0 %v1079
    %1221 = vmatpush1.msra.mxu0 %v1078
    %1222 = vmatprep.subr.mxu0 %v1083
    %1223 = vmatpush1.msra.mxu0 %v1082
    %1224 = vmatprep.subr.mxu0 %v1087
    %1225 = vmatpush1.msra.mxu0 %v1086
    %1226 = vmatprep.subr.mxu0 %v1091
    %1227 = vmatpush1.msra.mxu0 %v1090
    %1228 = vmatprep.subr.mxu0 %v1095
    %1229 = vmatpush1.msra.mxu0 %v1094
    %1230 = vmatprep.subr.mxu0 %v1099
    %1231 = vmatpush1.msra.mxu0 %v1098
    %1232 = vmatprep.subr.mxu0 %v1103
    %1233 = vmatpush1.msra.mxu0 %v1102
    %1234 = vmatprep.subr.mxu0 %v1107
    %1235 = vmatpush1.msra.mxu0 %v1106
    %1236 = vmatprep.subr.mxu0 %v1111
    %1237 = vmatpush1.msra.mxu0 %v1110
    %1238 = vmatprep.subr.mxu0 %v1115
    %1239 = vmatpush1.msra.mxu0 %v1114
    %1240 = vmatprep.subr.mxu0 %v1119
    %1241 = vmatpush1.msra.mxu0 %v1118
    %1242 = vmatprep.subr.mxu0 %v1123
    %1243 = vmatpush1.msra.mxu0 %v1122
    %1244 = vmatprep.subr.mxu0 %v1127
    %1245 = vmatpush1.msra.mxu0 %v1126
    %1246 = vmatprep.subr.mxu0 %v1131
    %1247 = vmatpush1.msra.mxu0 %v1130
    %1248 = vmatprep.subr.mxu0 %v1135
    %1249 = vmatpush1.msra.mxu0 %v1134
    %1250 = vmatprep.subr.mxu0 %v1139
    %1251 = vmatpush1.msra.mxu0 %v1138
    %1252 = vmatprep.subr.mxu0 %v1143
    %1253 = vmatpush1.msra.mxu0 %v1142
    %1254 = vmatprep.subr.mxu0 %v1147
    %1255 = vmatpush1.msra.mxu0 %v1146
    %1256 = vmatprep.subr.mxu0 %v1151
    %1257 = vmatpush1.msra.mxu0 %v1150
    %1258 = vmatprep.subr.mxu0 %v1155
    %1259 = vmatpush1.msra.mxu0 %v1154
    %1260 = vmatprep.subr.mxu0 %v1159
    %1261 = vmatpush1.msra.mxu0 %v1158
    %1262 = vmatprep.subr.mxu0 %v1163
    %1263 = vmatpush1.msra.mxu0 %v1162
    %1264 = vmatprep.subr.mxu0 %v1167
    %1265 = vmatpush1.msra.mxu0 %v1166
    %1266 = vmatprep.subr.mxu0 %v1171
    %1267 = vmatpush1.msra.mxu0 %v1170
    %1268 = vmatprep.subr.mxu0 %v1175
    %1269 = vmatpush1.msra.mxu0 %v1174
    %1270 = vmatprep.subr.mxu0 %v1179
    %1271 = vmatpush1.msra.mxu0 %v1178
    %1272 = vmatprep.subr.mxu0 %v1183
    %1273 = vmatpush1.msra.mxu0 %v1182
    %1274 = vmatprep.subr.mxu0 %v1187
    %1275 = vmatpush1.msra.mxu0 %v1186
    %1276 = vmatprep.mubr.f32.mxu0 %v1061
    %1277 = vmatmul.mubr.f32.gmra.mrb[0].mxu0 %v1060
    %v1278 = vpop.f32.mrb[0].mxu0
    %v1279 = vadd.f32 %v1195, %v1278
    %v1280 = vpop.f32.mrb[0].mxu0
    %v1281 = vadd.f32 %v1199, %v1280
    %1282 = vdwg.mxu0
    %1283 = vmatprep.subr.mxu0 %v1065
    %1284 = vmatpush1.msra.mxu0 %v1064
    %1285 = vmatprep.subr.mxu0 %v1069
    %1286 = vmatpush1.msra.mxu0 %v1068
    %1287 = vmatprep.subr.mxu0 %v1073
    %1288 = vmatpush1.msra.mxu0 %v1072
    %1289 = vmatprep.subr.mxu0 %v1077
    %1290 = vmatpush1.msra.mxu0 %v1076
    %1291 = vmatprep.subr.mxu0 %v1081
    %1292 = vmatpush1.msra.mxu0 %v1080
    %1293 = vmatprep.subr.mxu0 %v1085
    %1294 = vmatpush1.msra.mxu0 %v1084
    %1295 = vmatprep.subr.mxu0 %v1089
    %1296 = vmatpush1.msra.mxu0 %v1088
    %1297 = vmatprep.subr.mxu0 %v1093
    %1298 = vmatpush1.msra.mxu0 %v1092
    %1299 = vmatprep.subr.mxu0 %v1097
    %1300 = vmatpush1.msra.mxu0 %v1096
    %1301 = vmatprep.subr.mxu0 %v1101
    %1302 = vmatpush1.msra.mxu0 %v1100
    %1303 = vmatprep.subr.mxu0 %v1105
    %1304 = vmatpush1.msra.mxu0 %v1104
    %1305 = vmatprep.subr.mxu0 %v1109
    %1306 = vmatpush1.msra.mxu0 %v1108
    %1307 = vmatprep.subr.mxu0 %v1113
    %1308 = vmatpush1.msra.mxu0 %v1112
    %1309 = vmatprep.subr.mxu0 %v1117
    %1310 = vmatpush1.msra.mxu0 %v1116
    %1311 = vmatprep.subr.mxu0 %v1121
    %1312 = vmatpush1.msra.mxu0 %v1120
    %1313 = vmatprep.subr.mxu0 %v1125
    %1314 = vmatpush1.msra.mxu0 %v1124
    %1315 = vmatprep.subr.mxu0 %v1129
    %1316 = vmatpush1.msra.mxu0 %v1128
    %1317 = vmatprep.subr.mxu0 %v1133
    %1318 = vmatpush1.msra.mxu0 %v1132
    %1319 = vmatprep.subr.mxu0 %v1137
    %1320 = vmatpush1.msra.mxu0 %v1136
    %1321 = vmatprep.subr.mxu0 %v1141
    %1322 = vmatpush1.msra.mxu0 %v1140
    %1323 = vmatprep.subr.mxu0 %v1145
    %1324 = vmatpush1.msra.mxu0 %v1144
    %1325 = vmatprep.subr.mxu0 %v1149
    %1326 = vmatpush1.msra.mxu0 %v1148
    %1327 = vmatprep.subr.mxu0 %v1153
    %1328 = vmatpush1.msra.mxu0 %v1152
    %1329 = vmatprep.subr.mxu0 %v1157
    %1330 = vmatpush1.msra.mxu0 %v1156
    %1331 = vmatprep.subr.mxu0 %v1161
    %1332 = vmatpush1.msra.mxu0 %v1160
    %1333 = vmatprep.subr.mxu0 %v1165
    %1334 = vmatpush1.msra.mxu0 %v1164
    %1335 = vmatprep.subr.mxu0 %v1169
    %1336 = vmatpush1.msra.mxu0 %v1168
    %1337 = vmatprep.subr.mxu0 %v1173
    %1338 = vmatpush1.msra.mxu0 %v1172
    %1339 = vmatprep.subr.mxu0 %v1177
    %1340 = vmatpush1.msra.mxu0 %v1176
    %1341 = vmatprep.subr.mxu0 %v1181
    %1342 = vmatpush1.msra.mxu0 %v1180
    %1343 = vmatprep.subr.mxu0 %v1185
    %1344 = vmatpush1.msra.mxu0 %v1184
    %1345 = vmatprep.subr.mxu0 %v1189
    %1346 = vmatpush1.msra.mxu0 %v1188
    %1347 = vmatprep.mubr.f32.mxu0 %v1061
    %1348 = vmatmul.mubr.f32.gmra.mrb[0].mxu0 %v1060
    %v1349 = vpop.f32.mrb[0].mxu0
    %v1350 = vadd.f32 %v1203, %v1349
    %v1351 = vpop.f32.mrb[0].mxu0
    %v1352 = vadd.f32 %v1207, %v1351
    %1353 = vdwg.mxu0
    %v1354 = vxor.u32 %v1279, 2147483648
    %v1355 = vmul.f32 %v1354, 1.442695
    %v1356 = vpow.pop %v1355
    %v1357 = vadd.f32 %v1356, 1.0
    %v1358 = vrcp.pop %v1357
    %v1359 = vmul.f32 1.0, %v1358
    %v1360 = vxor.u32 %v1281, 2147483648
    %v1361 = vmul.f32 %v1360, 1.442695
    %v1362 = vpow.pop %v1361
    %v1363 = vadd.f32 %v1362, 1.0
    %v1364 = vrcp.pop %v1363
    %v1365 = vmul.f32 1.0, %v1364
    %v1366 = vtanh.pop %v1350
    %v1367 = vxor.u32 %v1352, 2147483648
    %v1368 = vmul.f32 %v1367, 1.442695
    %v1369 = vpow.pop %v1368
    %v1370 = vadd.f32 %v1369, 1.0
    %v1371 = vrcp.pop %v1370
    %v1372 = vmul.f32 1.0, %v1371
    %v1373 = vmul.f32 %v1365, %v1051
    %v1374 = vmul.f32 %v1359, %v1366
    %v1375 = vadd.f32 %v1373, %v1374
    %v1376 = vtanh.pop %v1375
    %v1377 = vmul.f32 %v1372, %v1376
    %s1378 = scalar_lea.vmem [#allocation11], 24
    %1379 = vst [vmem:[%s1378] sm:$0xff] %v1377
    %s1380 = scalar_lea.vmem [#allocation3], 32
    %v1381 = vld [vmem:[%s1380] sm:$0xff]
    %1382 = vst [vmem:[#allocation2] sm:$0xff] %v1381
    %1383 = vst [vmem:[#allocation2 + $0x8] sm:$0xff] %v1377
    %v1384 = vld [vmem:[#allocation2] sm:$0xff]
    %v1385 = vld [vmem:[#allocation2 + $0x8] sm:$0xff]
    %v1386 = vld [vmem:[#allocation6] sm:$0xff]
    %v1387 = vld [vmem:[#allocation6 + $0x8] sm:$0xff]
    %v1388 = vld [vmem:[#allocation6 + $0x10] sm:$0xff]
    %v1389 = vld [vmem:[#allocation6 + $0x18] sm:$0xff]
    %v1390 = vld [vmem:[#allocation6 + $0x20] sm:$0xff]
    %v1391 = vld [vmem:[#allocation6 + $0x28] sm:$0xff]
    %v1392 = vld [vmem:[#allocation6 + $0x30] sm:$0xff]
    %v1393 = vld [vmem:[#allocation6 + $0x38] sm:$0xff]
    %v1394 = vld [vmem:[#allocation6 + $0x40] sm:$0xff]
    %v1395 = vld [vmem:[#allocation6 + $0x48] sm:$0xff]
    %v1396 = vld [vmem:[#allocation6 + $0x50] sm:$0xff]
    %v1397 = vld [vmem:[#allocation6 + $0x58] sm:$0xff]
    %v1398 = vld [vmem:[#allocation6 + $0x60] sm:$0xff]
    %v1399 = vld [vmem:[#allocation6 + $0x68] sm:$0xff]
    %v1400 = vld [vmem:[#allocation6 + $0x70] sm:$0xff]
    %v1401 = vld [vmem:[#allocation6 + $0x78] sm:$0xff]
    %v1402 = vld [vmem:[#allocation6 + $0x80] sm:$0xff]
    %v1403 = vld [vmem:[#allocation6 + $0x88] sm:$0xff]
    %v1404 = vld [vmem:[#allocation6 + $0x90] sm:$0xff]
    %v1405 = vld [vmem:[#allocation6 + $0x98] sm:$0xff]
    %v1406 = vld [vmem:[#allocation6 + $0xa0] sm:$0xff]
    %v1407 = vld [vmem:[#allocation6 + $0xa8] sm:$0xff]
    %v1408 = vld [vmem:[#allocation6 + $0xb0] sm:$0xff]
    %v1409 = vld [vmem:[#allocation6 + $0xb8] sm:$0xff]
    %v1410 = vld [vmem:[#allocation6 + $0xc0] sm:$0xff]
    %v1411 = vld [vmem:[#allocation6 + $0xc8] sm:$0xff]
    %v1412 = vld [vmem:[#allocation6 + $0xd0] sm:$0xff]
    %v1413 = vld [vmem:[#allocation6 + $0xd8] sm:$0xff]
    %v1414 = vld [vmem:[#allocation6 + $0xe0] sm:$0xff]
    %v1415 = vld [vmem:[#allocation6 + $0xe8] sm:$0xff]
    %v1416 = vld [vmem:[#allocation6 + $0xf0] sm:$0xff]
    %v1417 = vld [vmem:[#allocation6 + $0xf8] sm:$0xff]
    %v1418 = vld [vmem:[#allocation6 + $0x100] sm:$0xff]
    %v1419 = vld [vmem:[#allocation6 + $0x108] sm:$0xff]
    %v1420 = vld [vmem:[#allocation6 + $0x110] sm:$0xff]
    %v1421 = vld [vmem:[#allocation6 + $0x118] sm:$0xff]
    %v1422 = vld [vmem:[#allocation6 + $0x120] sm:$0xff]
    %v1423 = vld [vmem:[#allocation6 + $0x128] sm:$0xff]
    %v1424 = vld [vmem:[#allocation6 + $0x130] sm:$0xff]
    %v1425 = vld [vmem:[#allocation6 + $0x138] sm:$0xff]
    %v1426 = vld [vmem:[#allocation6 + $0x140] sm:$0xff]
    %v1427 = vld [vmem:[#allocation6 + $0x148] sm:$0xff]
    %v1428 = vld [vmem:[#allocation6 + $0x150] sm:$0xff]
    %v1429 = vld [vmem:[#allocation6 + $0x158] sm:$0xff]
    %v1430 = vld [vmem:[#allocation6 + $0x160] sm:$0xff]
    %v1431 = vld [vmem:[#allocation6 + $0x168] sm:$0xff]
    %v1432 = vld [vmem:[#allocation6 + $0x170] sm:$0xff]
    %v1433 = vld [vmem:[#allocation6 + $0x178] sm:$0xff]
    %v1434 = vld [vmem:[#allocation6 + $0x180] sm:$0xff]
    %v1435 = vld [vmem:[#allocation6 + $0x188] sm:$0xff]
    %v1436 = vld [vmem:[#allocation6 + $0x190] sm:$0xff]
    %v1437 = vld [vmem:[#allocation6 + $0x198] sm:$0xff]
    %v1438 = vld [vmem:[#allocation6 + $0x1a0] sm:$0xff]
    %v1439 = vld [vmem:[#allocation6 + $0x1a8] sm:$0xff]
    %v1440 = vld [vmem:[#allocation6 + $0x1b0] sm:$0xff]
    %v1441 = vld [vmem:[#allocation6 + $0x1b8] sm:$0xff]
    %v1442 = vld [vmem:[#allocation6 + $0x1c0] sm:$0xff]
    %v1443 = vld [vmem:[#allocation6 + $0x1c8] sm:$0xff]
    %v1444 = vld [vmem:[#allocation6 + $0x1d0] sm:$0xff]
    %v1445 = vld [vmem:[#allocation6 + $0x1d8] sm:$0xff]
    %v1446 = vld [vmem:[#allocation6 + $0x1e0] sm:$0xff]
    %v1447 = vld [vmem:[#allocation6 + $0x1e8] sm:$0xff]
    %v1448 = vld [vmem:[#allocation6 + $0x1f0] sm:$0xff]
    %v1449 = vld [vmem:[#allocation6 + $0x1f8] sm:$0xff]
    %v1450 = vld [vmem:[#allocation6 + $0x200] sm:$0xff]
    %v1451 = vld [vmem:[#allocation6 + $0x208] sm:$0xff]
    %v1452 = vld [vmem:[#allocation6 + $0x210] sm:$0xff]
    %v1453 = vld [vmem:[#allocation6 + $0x218] sm:$0xff]
    %v1454 = vld [vmem:[#allocation6 + $0x220] sm:$0xff]
    %v1455 = vld [vmem:[#allocation6 + $0x228] sm:$0xff]
    %v1456 = vld [vmem:[#allocation6 + $0x230] sm:$0xff]
    %v1457 = vld [vmem:[#allocation6 + $0x238] sm:$0xff]
    %v1458 = vld [vmem:[#allocation6 + $0x240] sm:$0xff]
    %v1459 = vld [vmem:[#allocation6 + $0x248] sm:$0xff]
    %v1460 = vld [vmem:[#allocation6 + $0x250] sm:$0xff]
    %v1461 = vld [vmem:[#allocation6 + $0x258] sm:$0xff]
    %v1462 = vld [vmem:[#allocation6 + $0x260] sm:$0xff]
    %v1463 = vld [vmem:[#allocation6 + $0x268] sm:$0xff]
    %v1464 = vld [vmem:[#allocation6 + $0x270] sm:$0xff]
    %v1465 = vld [vmem:[#allocation6 + $0x278] sm:$0xff]
    %v1466 = vld [vmem:[#allocation6 + $0x280] sm:$0xff]
    %v1467 = vld [vmem:[#allocation6 + $0x288] sm:$0xff]
    %v1468 = vld [vmem:[#allocation6 + $0x290] sm:$0xff]
    %v1469 = vld [vmem:[#allocation6 + $0x298] sm:$0xff]
    %v1470 = vld [vmem:[#allocation6 + $0x2a0] sm:$0xff]
    %v1471 = vld [vmem:[#allocation6 + $0x2a8] sm:$0xff]
    %v1472 = vld [vmem:[#allocation6 + $0x2b0] sm:$0xff]
    %v1473 = vld [vmem:[#allocation6 + $0x2b8] sm:$0xff]
    %v1474 = vld [vmem:[#allocation6 + $0x2c0] sm:$0xff]
    %v1475 = vld [vmem:[#allocation6 + $0x2c8] sm:$0xff]
    %v1476 = vld [vmem:[#allocation6 + $0x2d0] sm:$0xff]
    %v1477 = vld [vmem:[#allocation6 + $0x2d8] sm:$0xff]
    %v1478 = vld [vmem:[#allocation6 + $0x2e0] sm:$0xff]
    %v1479 = vld [vmem:[#allocation6 + $0x2e8] sm:$0xff]
    %v1480 = vld [vmem:[#allocation6 + $0x2f0] sm:$0xff]
    %v1481 = vld [vmem:[#allocation6 + $0x2f8] sm:$0xff]
    %v1482 = vld [vmem:[#allocation6 + $0x300] sm:$0xff]
    %v1483 = vld [vmem:[#allocation6 + $0x308] sm:$0xff]
    %v1484 = vld [vmem:[#allocation6 + $0x310] sm:$0xff]
    %v1485 = vld [vmem:[#allocation6 + $0x318] sm:$0xff]
    %v1486 = vld [vmem:[#allocation6 + $0x320] sm:$0xff]
    %v1487 = vld [vmem:[#allocation6 + $0x328] sm:$0xff]
    %v1488 = vld [vmem:[#allocation6 + $0x330] sm:$0xff]
    %v1489 = vld [vmem:[#allocation6 + $0x338] sm:$0xff]
    %v1490 = vld [vmem:[#allocation6 + $0x340] sm:$0xff]
    %v1491 = vld [vmem:[#allocation6 + $0x348] sm:$0xff]
    %v1492 = vld [vmem:[#allocation6 + $0x350] sm:$0xff]
    %v1493 = vld [vmem:[#allocation6 + $0x358] sm:$0xff]
    %v1494 = vld [vmem:[#allocation6 + $0x360] sm:$0xff]
    %v1495 = vld [vmem:[#allocation6 + $0x368] sm:$0xff]
    %v1496 = vld [vmem:[#allocation6 + $0x370] sm:$0xff]
    %v1497 = vld [vmem:[#allocation6 + $0x378] sm:$0xff]
    %v1498 = vld [vmem:[#allocation6 + $0x380] sm:$0xff]
    %v1499 = vld [vmem:[#allocation6 + $0x388] sm:$0xff]
    %v1500 = vld [vmem:[#allocation6 + $0x390] sm:$0xff]
    %v1501 = vld [vmem:[#allocation6 + $0x398] sm:$0xff]
    %v1502 = vld [vmem:[#allocation6 + $0x3a0] sm:$0xff]
    %v1503 = vld [vmem:[#allocation6 + $0x3a8] sm:$0xff]
    %v1504 = vld [vmem:[#allocation6 + $0x3b0] sm:$0xff]
    %v1505 = vld [vmem:[#allocation6 + $0x3b8] sm:$0xff]
    %v1506 = vld [vmem:[#allocation6 + $0x3c0] sm:$0xff]
    %v1507 = vld [vmem:[#allocation6 + $0x3c8] sm:$0xff]
    %v1508 = vld [vmem:[#allocation6 + $0x3d0] sm:$0xff]
    %v1509 = vld [vmem:[#allocation6 + $0x3d8] sm:$0xff]
    %v1510 = vld [vmem:[#allocation6 + $0x3e0] sm:$0xff]
    %v1511 = vld [vmem:[#allocation6 + $0x3e8] sm:$0xff]
    %v1512 = vld [vmem:[#allocation6 + $0x3f0] sm:$0xff]
    %v1513 = vld [vmem:[#allocation6 + $0x3f8] sm:$0xff]
    %v1514 = vld [vmem:[#allocation8] sm:$0xf]
    %v1516 = vlaneseq
    %v1517 = vshrl.u32 %v1516, 7
    %v1518 = vsub.s32 0, %v1517
    %v1519 = vrot.slane %v1514, %v1518
    %v1520 = vlaneseq
    %v1521 = vshrl.u32 %v1520, 7
    %v1522 = vsub.s32 1, %v1521
    %v1523 = vrot.slane %v1514, %v1522
    %v1524 = vlaneseq
    %v1525 = vshrl.u32 %v1524, 7
    %v1526 = vsub.s32 2, %v1525
    %v1527 = vrot.slane %v1514, %v1526
    %v1528 = vlaneseq
    %v1529 = vshrl.u32 %v1528, 7
    %v1530 = vsub.s32 3, %v1529
    %v1531 = vrot.slane %v1514, %v1530
    %1536 = vmatprep.subr.mxu0 %v1387
    %1537 = vmatpush1.msra.mxu0 %v1386
    %1538 = vmatprep.subr.mxu0 %v1391
    %1539 = vmatpush1.msra.mxu0 %v1390
    %1540 = vmatprep.subr.mxu0 %v1395
    %1541 = vmatpush1.msra.mxu0 %v1394
    %1542 = vmatprep.subr.mxu0 %v1399
    %1543 = vmatpush1.msra.mxu0 %v1398
    %1544 = vmatprep.subr.mxu0 %v1403
    %1545 = vmatpush1.msra.mxu0 %v1402
    %1546 = vmatprep.subr.mxu0 %v1407
    %1547 = vmatpush1.msra.mxu0 %v1406
    %1548 = vmatprep.subr.mxu0 %v1411
    %1549 = vmatpush1.msra.mxu0 %v1410
    %1550 = vmatprep.subr.mxu0 %v1415
    %1551 = vmatpush1.msra.mxu0 %v1414
    %1552 = vmatprep.subr.mxu0 %v1419
    %1553 = vmatpush1.msra.mxu0 %v1418
    %1554 = vmatprep.subr.mxu0 %v1423
    %1555 = vmatpush1.msra.mxu0 %v1422
    %1556 = vmatprep.subr.mxu0 %v1427
    %1557 = vmatpush1.msra.mxu0 %v1426
    %1558 = vmatprep.subr.mxu0 %v1431
    %1559 = vmatpush1.msra.mxu0 %v1430
    %1560 = vmatprep.subr.mxu0 %v1435
    %1561 = vmatpush1.msra.mxu0 %v1434
    %1562 = vmatprep.subr.mxu0 %v1439
    %1563 = vmatpush1.msra.mxu0 %v1438
    %1564 = vmatprep.subr.mxu0 %v1443
    %1565 = vmatpush1.msra.mxu0 %v1442
    %1566 = vmatprep.subr.mxu0 %v1447
    %1567 = vmatpush1.msra.mxu0 %v1446
    %1568 = vmatprep.subr.mxu0 %v1451
    %1569 = vmatpush1.msra.mxu0 %v1450
    %1570 = vmatprep.subr.mxu0 %v1455
    %1571 = vmatpush1.msra.mxu0 %v1454
    %1572 = vmatprep.subr.mxu0 %v1459
    %1573 = vmatpush1.msra.mxu0 %v1458
    %1574 = vmatprep.subr.mxu0 %v1463
    %1575 = vmatpush1.msra.mxu0 %v1462
    %1576 = vmatprep.subr.mxu0 %v1467
    %1577 = vmatpush1.msra.mxu0 %v1466
    %1578 = vmatprep.subr.mxu0 %v1471
    %1579 = vmatpush1.msra.mxu0 %v1470
    %1580 = vmatprep.subr.mxu0 %v1475
    %1581 = vmatpush1.msra.mxu0 %v1474
    %1582 = vmatprep.subr.mxu0 %v1479
    %1583 = vmatpush1.msra.mxu0 %v1478
    %1584 = vmatprep.subr.mxu0 %v1483
    %1585 = vmatpush1.msra.mxu0 %v1482
    %1586 = vmatprep.subr.mxu0 %v1487
    %1587 = vmatpush1.msra.mxu0 %v1486
    %1588 = vmatprep.subr.mxu0 %v1491
    %1589 = vmatpush1.msra.mxu0 %v1490
    %1590 = vmatprep.subr.mxu0 %v1495
    %1591 = vmatpush1.msra.mxu0 %v1494
    %1592 = vmatprep.subr.mxu0 %v1499
    %1593 = vmatpush1.msra.mxu0 %v1498
    %1594 = vmatprep.subr.mxu0 %v1503
    %1595 = vmatpush1.msra.mxu0 %v1502
    %1596 = vmatprep.subr.mxu0 %v1507
    %1597 = vmatpush1.msra.mxu0 %v1506
    %1598 = vmatprep.subr.mxu0 %v1511
    %1599 = vmatpush1.msra.mxu0 %v1510
    %1600 = vmatprep.mubr.f32.mxu0 %v1385
    %1601 = vmatmul.mubr.f32.gmra.mrb[0].mxu0 %v1384
    %v1602 = vpop.f32.mrb[0].mxu0
    %v1603 = vadd.f32 %v1519, %v1602
    %v1604 = vpop.f32.mrb[0].mxu0
    %v1605 = vadd.f32 %v1523, %v1604
    %1606 = vdwg.mxu0
    %1607 = vmatprep.subr.mxu0 %v1389
    %1608 = vmatpush1.msra.mxu0 %v1388
    %1609 = vmatprep.subr.mxu0 %v1393
    %1610 = vmatpush1.msra.mxu0 %v1392
    %1611 = vmatprep.subr.mxu0 %v1397
    %1612 = vmatpush1.msra.mxu0 %v1396
    %1613 = vmatprep.subr.mxu0 %v1401
    %1614 = vmatpush1.msra.mxu0 %v1400
    %1615 = vmatprep.subr.mxu0 %v1405
    %1616 = vmatpush1.msra.mxu0 %v1404
    %1617 = vmatprep.subr.mxu0 %v1409
    %1618 = vmatpush1.msra.mxu0 %v1408
    %1619 = vmatprep.subr.mxu0 %v1413
    %1620 = vmatpush1.msra.mxu0 %v1412
    %1621 = vmatprep.subr.mxu0 %v1417
    %1622 = vmatpush1.msra.mxu0 %v1416
    %1623 = vmatprep.subr.mxu0 %v1421
    %1624 = vmatpush1.msra.mxu0 %v1420
    %1625 = vmatprep.subr.mxu0 %v1425
    %1626 = vmatpush1.msra.mxu0 %v1424
    %1627 = vmatprep.subr.mxu0 %v1429
    %1628 = vmatpush1.msra.mxu0 %v1428
    %1629 = vmatprep.subr.mxu0 %v1433
    %1630 = vmatpush1.msra.mxu0 %v1432
    %1631 = vmatprep.subr.mxu0 %v1437
    %1632 = vmatpush1.msra.mxu0 %v1436
    %1633 = vmatprep.subr.mxu0 %v1441
    %1634 = vmatpush1.msra.mxu0 %v1440
    %1635 = vmatprep.subr.mxu0 %v1445
    %1636 = vmatpush1.msra.mxu0 %v1444
    %1637 = vmatprep.subr.mxu0 %v1449
    %1638 = vmatpush1.msra.mxu0 %v1448
    %1639 = vmatprep.subr.mxu0 %v1453
    %1640 = vmatpush1.msra.mxu0 %v1452
    %1641 = vmatprep.subr.mxu0 %v1457
    %1642 = vmatpush1.msra.mxu0 %v1456
    %1643 = vmatprep.subr.mxu0 %v1461
    %1644 = vmatpush1.msra.mxu0 %v1460
    %1645 = vmatprep.subr.mxu0 %v1465
    %1646 = vmatpush1.msra.mxu0 %v1464
    %1647 = vmatprep.subr.mxu0 %v1469
    %1648 = vmatpush1.msra.mxu0 %v1468
    %1649 = vmatprep.subr.mxu0 %v1473
    %1650 = vmatpush1.msra.mxu0 %v1472
    %1651 = vmatprep.subr.mxu0 %v1477
    %1652 = vmatpush1.msra.mxu0 %v1476
    %1653 = vmatprep.subr.mxu0 %v1481
    %1654 = vmatpush1.msra.mxu0 %v1480
    %1655 = vmatprep.subr.mxu0 %v1485
    %1656 = vmatpush1.msra.mxu0 %v1484
    %1657 = vmatprep.subr.mxu0 %v1489
    %1658 = vmatpush1.msra.mxu0 %v1488
    %1659 = vmatprep.subr.mxu0 %v1493
    %1660 = vmatpush1.msra.mxu0 %v1492
    %1661 = vmatprep.subr.mxu0 %v1497
    %1662 = vmatpush1.msra.mxu0 %v1496
    %1663 = vmatprep.subr.mxu0 %v1501
    %1664 = vmatpush1.msra.mxu0 %v1500
    %1665 = vmatprep.subr.mxu0 %v1505
    %1666 = vmatpush1.msra.mxu0 %v1504
    %1667 = vmatprep.subr.mxu0 %v1509
    %1668 = vmatpush1.msra.mxu0 %v1508
    %1669 = vmatprep.subr.mxu0 %v1513
    %1670 = vmatpush1.msra.mxu0 %v1512
    %1671 = vmatprep.mubr.f32.mxu0 %v1385
    %1672 = vmatmul.mubr.f32.gmra.mrb[0].mxu0 %v1384
    %v1673 = vpop.f32.mrb[0].mxu0
    %v1674 = vadd.f32 %v1527, %v1673
    %v1675 = vpop.f32.mrb[0].mxu0
    %v1676 = vadd.f32 %v1531, %v1675
    %1677 = vdwg.mxu0
    %v1678 = vxor.u32 %v1603, 2147483648
    %v1679 = vmul.f32 %v1678, 1.442695
    %v1680 = vpow.pop %v1679
    %v1681 = vadd.f32 %v1680, 1.0
    %v1682 = vrcp.pop %v1681
    %v1683 = vmul.f32 1.0, %v1682
    %v1684 = vxor.u32 %v1605, 2147483648
    %v1685 = vmul.f32 %v1684, 1.442695
    %v1686 = vpow.pop %v1685
    %v1687 = vadd.f32 %v1686, 1.0
    %v1688 = vrcp.pop %v1687
    %v1689 = vmul.f32 1.0, %v1688
    %v1690 = vtanh.pop %v1674
    %v1691 = vxor.u32 %v1676, 2147483648
    %v1692 = vmul.f32 %v1691, 1.442695
    %v1693 = vpow.pop %v1692
    %v1694 = vadd.f32 %v1693, 1.0
    %v1695 = vrcp.pop %v1694
    %v1696 = vmul.f32 1.0, %v1695
    %v1697 = vmul.f32 %v1689, %v1375
    %v1698 = vmul.f32 %v1683, %v1690
    %v1699 = vadd.f32 %v1697, %v1698
    %v1700 = vtanh.pop %v1699
    %v1701 = vmul.f32 %v1696, %v1700
    %s1702 = scalar_lea.vmem [#allocation11], 32
    %1703 = vst [vmem:[%s1702] sm:$0xff] %v1701
    %s1704 = scalar_lea.vmem [#allocation3], 40
    %v1705 = vld [vmem:[%s1704] sm:$0xff]
    %1706 = vst [vmem:[#allocation2] sm:$0xff] %v1705
    %1707 = vst [vmem:[#allocation2 + $0x8] sm:$0xff] %v1701
    %v1708 = vld [vmem:[#allocation2] sm:$0xff]
    %v1709 = vld [vmem:[#allocation2 + $0x8] sm:$0xff]
    %v1710 = vld [vmem:[#allocation6] sm:$0xff]
    %v1711 = vld [vmem:[#allocation6 + $0x8] sm:$0xff]
    %v1712 = vld [vmem:[#allocation6 + $0x10] sm:$0xff]
    %v1713 = vld [vmem:[#allocation6 + $0x18] sm:$0xff]
    %v1714 = vld [vmem:[#allocation6 + $0x20] sm:$0xff]
    %v1715 = vld [vmem:[#allocation6 + $0x28] sm:$0xff]
    %v1716 = vld [vmem:[#allocation6 + $0x30] sm:$0xff]
    %v1717 = vld [vmem:[#allocation6 + $0x38] sm:$0xff]
    %v1718 = vld [vmem:[#allocation6 + $0x40] sm:$0xff]
    %v1719 = vld [vmem:[#allocation6 + $0x48] sm:$0xff]
    %v1720 = vld [vmem:[#allocation6 + $0x50] sm:$0xff]
    %v1721 = vld [vmem:[#allocation6 + $0x58] sm:$0xff]
    %v1722 = vld [vmem:[#allocation6 + $0x60] sm:$0xff]
    %v1723 = vld [vmem:[#allocation6 + $0x68] sm:$0xff]
    %v1724 = vld [vmem:[#allocation6 + $0x70] sm:$0xff]
    %v1725 = vld [vmem:[#allocation6 + $0x78] sm:$0xff]
    %v1726 = vld [vmem:[#allocation6 + $0x80] sm:$0xff]
    %v1727 = vld [vmem:[#allocation6 + $0x88] sm:$0xff]
    %v1728 = vld [vmem:[#allocation6 + $0x90] sm:$0xff]
    %v1729 = vld [vmem:[#allocation6 + $0x98] sm:$0xff]
    %v1730 = vld [vmem:[#allocation6 + $0xa0] sm:$0xff]
    %v1731 = vld [vmem:[#allocation6 + $0xa8] sm:$0xff]
    %v1732 = vld [vmem:[#allocation6 + $0xb0] sm:$0xff]
    %v1733 = vld [vmem:[#allocation6 + $0xb8] sm:$0xff]
    %v1734 = vld [vmem:[#allocation6 + $0xc0] sm:$0xff]
    %v1735 = vld [vmem:[#allocation6 + $0xc8] sm:$0xff]
    %v1736 = vld [vmem:[#allocation6 + $0xd0] sm:$0xff]
    %v1737 = vld [vmem:[#allocation6 + $0xd8] sm:$0xff]
    %v1738 = vld [vmem:[#allocation6 + $0xe0] sm:$0xff]
    %v1739 = vld [vmem:[#allocation6 + $0xe8] sm:$0xff]
    %v1740 = vld [vmem:[#allocation6 + $0xf0] sm:$0xff]
    %v1741 = vld [vmem:[#allocation6 + $0xf8] sm:$0xff]
    %v1742 = vld [vmem:[#allocation6 + $0x100] sm:$0xff]
    %v1743 = vld [vmem:[#allocation6 + $0x108] sm:$0xff]
    %v1744 = vld [vmem:[#allocation6 + $0x110] sm:$0xff]
    %v1745 = vld [vmem:[#allocation6 + $0x118] sm:$0xff]
    %v1746 = vld [vmem:[#allocation6 + $0x120] sm:$0xff]
    %v1747 = vld [vmem:[#allocation6 + $0x128] sm:$0xff]
    %v1748 = vld [vmem:[#allocation6 + $0x130] sm:$0xff]
    %v1749 = vld [vmem:[#allocation6 + $0x138] sm:$0xff]
    %v1750 = vld [vmem:[#allocation6 + $0x140] sm:$0xff]
    %v1751 = vld [vmem:[#allocation6 + $0x148] sm:$0xff]
    %v1752 = vld [vmem:[#allocation6 + $0x150] sm:$0xff]
    %v1753 = vld [vmem:[#allocation6 + $0x158] sm:$0xff]
    %v1754 = vld [vmem:[#allocation6 + $0x160] sm:$0xff]
    %v1755 = vld [vmem:[#allocation6 + $0x168] sm:$0xff]
    %v1756 = vld [vmem:[#allocation6 + $0x170] sm:$0xff]
    %v1757 = vld [vmem:[#allocation6 + $0x178] sm:$0xff]
    %v1758 = vld [vmem:[#allocation6 + $0x180] sm:$0xff]
    %v1759 = vld [vmem:[#allocation6 + $0x188] sm:$0xff]
    %v1760 = vld [vmem:[#allocation6 + $0x190] sm:$0xff]
    %v1761 = vld [vmem:[#allocation6 + $0x198] sm:$0xff]
    %v1762 = vld [vmem:[#allocation6 + $0x1a0] sm:$0xff]
    %v1763 = vld [vmem:[#allocation6 + $0x1a8] sm:$0xff]
    %v1764 = vld [vmem:[#allocation6 + $0x1b0] sm:$0xff]
    %v1765 = vld [vmem:[#allocation6 + $0x1b8] sm:$0xff]
    %v1766 = vld [vmem:[#allocation6 + $0x1c0] sm:$0xff]
    %v1767 = vld [vmem:[#allocation6 + $0x1c8] sm:$0xff]
    %v1768 = vld [vmem:[#allocation6 + $0x1d0] sm:$0xff]
    %v1769 = vld [vmem:[#allocation6 + $0x1d8] sm:$0xff]
    %v1770 = vld [vmem:[#allocation6 + $0x1e0] sm:$0xff]
    %v1771 = vld [vmem:[#allocation6 + $0x1e8] sm:$0xff]
    %v1772 = vld [vmem:[#allocation6 + $0x1f0] sm:$0xff]
    %v1773 = vld [vmem:[#allocation6 + $0x1f8] sm:$0xff]
    %v1774 = vld [vmem:[#allocation6 + $0x200] sm:$0xff]
    %v1775 = vld [vmem:[#allocation6 + $0x208] sm:$0xff]
    %v1776 = vld [vmem:[#allocation6 + $0x210] sm:$0xff]
    %v1777 = vld [vmem:[#allocation6 + $0x218] sm:$0xff]
    %v1778 = vld [vmem:[#allocation6 + $0x220] sm:$0xff]
    %v1779 = vld [vmem:[#allocation6 + $0x228] sm:$0xff]
    %v1780 = vld [vmem:[#allocation6 + $0x230] sm:$0xff]
    %v1781 = vld [vmem:[#allocation6 + $0x238] sm:$0xff]
    %v1782 = vld [vmem:[#allocation6 + $0x240] sm:$0xff]
    %v1783 = vld [vmem:[#allocation6 + $0x248] sm:$0xff]
    %v1784 = vld [vmem:[#allocation6 + $0x250] sm:$0xff]
    %v1785 = vld [vmem:[#allocation6 + $0x258] sm:$0xff]
    %v1786 = vld [vmem:[#allocation6 + $0x260] sm:$0xff]
    %v1787 = vld [vmem:[#allocation6 + $0x268] sm:$0xff]
    %v1788 = vld [vmem:[#allocation6 + $0x270] sm:$0xff]
    %v1789 = vld [vmem:[#allocation6 + $0x278] sm:$0xff]
    %v1790 = vld [vmem:[#allocation6 + $0x280] sm:$0xff]
    %v1791 = vld [vmem:[#allocation6 + $0x288] sm:$0xff]
    %v1792 = vld [vmem:[#allocation6 + $0x290] sm:$0xff]
    %v1793 = vld [vmem:[#allocation6 + $0x298] sm:$0xff]
    %v1794 = vld [vmem:[#allocation6 + $0x2a0] sm:$0xff]
    %v1795 = vld [vmem:[#allocation6 + $0x2a8] sm:$0xff]
    %v1796 = vld [vmem:[#allocation6 + $0x2b0] sm:$0xff]
    %v1797 = vld [vmem:[#allocation6 + $0x2b8] sm:$0xff]
    %v1798 = vld [vmem:[#allocation6 + $0x2c0] sm:$0xff]
    %v1799 = vld [vmem:[#allocation6 + $0x2c8] sm:$0xff]
    %v1800 = vld [vmem:[#allocation6 + $0x2d0] sm:$0xff]
    %v1801 = vld [vmem:[#allocation6 + $0x2d8] sm:$0xff]
    %v1802 = vld [vmem:[#allocation6 + $0x2e0] sm:$0xff]
    %v1803 = vld [vmem:[#allocation6 + $0x2e8] sm:$0xff]
    %v1804 = vld [vmem:[#allocation6 + $0x2f0] sm:$0xff]
    %v1805 = vld [vmem:[#allocation6 + $0x2f8] sm:$0xff]
    %v1806 = vld [vmem:[#allocation6 + $0x300] sm:$0xff]
    %v1807 = vld [vmem:[#allocation6 + $0x308] sm:$0xff]
    %v1808 = vld [vmem:[#allocation6 + $0x310] sm:$0xff]
    %v1809 = vld [vmem:[#allocation6 + $0x318] sm:$0xff]
    %v1810 = vld [vmem:[#allocation6 + $0x320] sm:$0xff]
    %v1811 = vld [vmem:[#allocation6 + $0x328] sm:$0xff]
    %v1812 = vld [vmem:[#allocation6 + $0x330] sm:$0xff]
    %v1813 = vld [vmem:[#allocation6 + $0x338] sm:$0xff]
    %v1814 = vld [vmem:[#allocation6 + $0x340] sm:$0xff]
    %v1815 = vld [vmem:[#allocation6 + $0x348] sm:$0xff]
    %v1816 = vld [vmem:[#allocation6 + $0x350] sm:$0xff]
    %v1817 = vld [vmem:[#allocation6 + $0x358] sm:$0xff]
    %v1818 = vld [vmem:[#allocation6 + $0x360] sm:$0xff]
    %v1819 = vld [vmem:[#allocation6 + $0x368] sm:$0xff]
    %v1820 = vld [vmem:[#allocation6 + $0x370] sm:$0xff]
    %v1821 = vld [vmem:[#allocation6 + $0x378] sm:$0xff]
    %v1822 = vld [vmem:[#allocation6 + $0x380] sm:$0xff]
    %v1823 = vld [vmem:[#allocation6 + $0x388] sm:$0xff]
    %v1824 = vld [vmem:[#allocation6 + $0x390] sm:$0xff]
    %v1825 = vld [vmem:[#allocation6 + $0x398] sm:$0xff]
    %v1826 = vld [vmem:[#allocation6 + $0x3a0] sm:$0xff]
    %v1827 = vld [vmem:[#allocation6 + $0x3a8] sm:$0xff]
    %v1828 = vld [vmem:[#allocation6 + $0x3b0] sm:$0xff]
    %v1829 = vld [vmem:[#allocation6 + $0x3b8] sm:$0xff]
    %v1830 = vld [vmem:[#allocation6 + $0x3c0] sm:$0xff]
    %v1831 = vld [vmem:[#allocation6 + $0x3c8] sm:$0xff]
    %v1832 = vld [vmem:[#allocation6 + $0x3d0] sm:$0xff]
    %v1833 = vld [vmem:[#allocation6 + $0x3d8] sm:$0xff]
    %v1834 = vld [vmem:[#allocation6 + $0x3e0] sm:$0xff]
    %v1835 = vld [vmem:[#allocation6 + $0x3e8] sm:$0xff]
    %v1836 = vld [vmem:[#allocation6 + $0x3f0] sm:$0xff]
    %v1837 = vld [vmem:[#allocation6 + $0x3f8] sm:$0xff]
    %v1838 = vld [vmem:[#allocation8] sm:$0xf]
    %v1840 = vlaneseq
    %v1841 = vshrl.u32 %v1840, 7
    %v1842 = vsub.s32 0, %v1841
    %v1843 = vrot.slane %v1838, %v1842
    %v1844 = vlaneseq
    %v1845 = vshrl.u32 %v1844, 7
    %v1846 = vsub.s32 1, %v1845
    %v1847 = vrot.slane %v1838, %v1846
    %v1848 = vlaneseq
    %v1849 = vshrl.u32 %v1848, 7
    %v1850 = vsub.s32 2, %v1849
    %v1851 = vrot.slane %v1838, %v1850
    %v1852 = vlaneseq
    %v1853 = vshrl.u32 %v1852, 7
    %v1854 = vsub.s32 3, %v1853
    %v1855 = vrot.slane %v1838, %v1854
    %1860 = vmatprep.subr.mxu0 %v1711
    %1861 = vmatpush1.msra.mxu0 %v1710
    %1862 = vmatprep.subr.mxu0 %v1715
    %1863 = vmatpush1.msra.mxu0 %v1714
    %1864 = vmatprep.subr.mxu0 %v1719
    %1865 = vmatpush1.msra.mxu0 %v1718
    %1866 = vmatprep.subr.mxu0 %v1723
    %1867 = vmatpush1.msra.mxu0 %v1722
    %1868 = vmatprep.subr.mxu0 %v1727
    %1869 = vmatpush1.msra.mxu0 %v1726
    %1870 = vmatprep.subr.mxu0 %v1731
    %1871 = vmatpush1.msra.mxu0 %v1730
    %1872 = vmatprep.subr.mxu0 %v1735
    %1873 = vmatpush1.msra.mxu0 %v1734
    %1874 = vmatprep.subr.mxu0 %v1739
    %1875 = vmatpush1.msra.mxu0 %v1738
    %1876 = vmatprep.subr.mxu0 %v1743
    %1877 = vmatpush1.msra.mxu0 %v1742
    %1878 = vmatprep.subr.mxu0 %v1747
    %1879 = vmatpush1.msra.mxu0 %v1746
    %1880 = vmatprep.subr.mxu0 %v1751
    %1881 = vmatpush1.msra.mxu0 %v1750
    %1882 = vmatprep.subr.mxu0 %v1755
    %1883 = vmatpush1.msra.mxu0 %v1754
    %1884 = vmatprep.subr.mxu0 %v1759
    %1885 = vmatpush1.msra.mxu0 %v1758
    %1886 = vmatprep.subr.mxu0 %v1763
    %1887 = vmatpush1.msra.mxu0 %v1762
    %1888 = vmatprep.subr.mxu0 %v1767
    %1889 = vmatpush1.msra.mxu0 %v1766
    %1890 = vmatprep.subr.mxu0 %v1771
    %1891 = vmatpush1.msra.mxu0 %v1770
    %1892 = vmatprep.subr.mxu0 %v1775
    %1893 = vmatpush1.msra.mxu0 %v1774
    %1894 = vmatprep.subr.mxu0 %v1779
    %1895 = vmatpush1.msra.mxu0 %v1778
    %1896 = vmatprep.subr.mxu0 %v1783
    %1897 = vmatpush1.msra.mxu0 %v1782
    %1898 = vmatprep.subr.mxu0 %v1787
    %1899 = vmatpush1.msra.mxu0 %v1786
    %1900 = vmatprep.subr.mxu0 %v1791
    %1901 = vmatpush1.msra.mxu0 %v1790
    %1902 = vmatprep.subr.mxu0 %v1795
    %1903 = vmatpush1.msra.mxu0 %v1794
    %1904 = vmatprep.subr.mxu0 %v1799
    %1905 = vmatpush1.msra.mxu0 %v1798
    %1906 = vmatprep.subr.mxu0 %v1803
    %1907 = vmatpush1.msra.mxu0 %v1802
    %1908 = vmatprep.subr.mxu0 %v1807
    %1909 = vmatpush1.msra.mxu0 %v1806
    %1910 = vmatprep.subr.mxu0 %v1811
    %1911 = vmatpush1.msra.mxu0 %v1810
    %1912 = vmatprep.subr.mxu0 %v1815
    %1913 = vmatpush1.msra.mxu0 %v1814
    %1914 = vmatprep.subr.mxu0 %v1819
    %1915 = vmatpush1.msra.mxu0 %v1818
    %1916 = vmatprep.subr.mxu0 %v1823
    %1917 = vmatpush1.msra.mxu0 %v1822
    %1918 = vmatprep.subr.mxu0 %v1827
    %1919 = vmatpush1.msra.mxu0 %v1826
    %1920 = vmatprep.subr.mxu0 %v1831
    %1921 = vmatpush1.msra.mxu0 %v1830
    %1922 = vmatprep.subr.mxu0 %v1835
    %1923 = vmatpush1.msra.mxu0 %v1834
    %1924 = vmatprep.mubr.f32.mxu0 %v1709
    %1925 = vmatmul.mubr.f32.gmra.mrb[0].mxu0 %v1708
    %v1926 = vpop.f32.mrb[0].mxu0
    %v1927 = vadd.f32 %v1843, %v1926
    %v1928 = vpop.f32.mrb[0].mxu0
    %v1929 = vadd.f32 %v1847, %v1928
    %1930 = vdwg.mxu0
    %1931 = vmatprep.subr.mxu0 %v1713
    %1932 = vmatpush1.msra.mxu0 %v1712
    %1933 = vmatprep.subr.mxu0 %v1717
    %1934 = vmatpush1.msra.mxu0 %v1716
    %1935 = vmatprep.subr.mxu0 %v1721
    %1936 = vmatpush1.msra.mxu0 %v1720
    %1937 = vmatprep.subr.mxu0 %v1725
    %1938 = vmatpush1.msra.mxu0 %v1724
    %1939 = vmatprep.subr.mxu0 %v1729
    %1940 = vmatpush1.msra.mxu0 %v1728
    %1941 = vmatprep.subr.mxu0 %v1733
    %1942 = vmatpush1.msra.mxu0 %v1732
    %1943 = vmatprep.subr.mxu0 %v1737
    %1944 = vmatpush1.msra.mxu0 %v1736
    %1945 = vmatprep.subr.mxu0 %v1741
    %1946 = vmatpush1.msra.mxu0 %v1740
    %1947 = vmatprep.subr.mxu0 %v1745
    %1948 = vmatpush1.msra.mxu0 %v1744
    %1949 = vmatprep.subr.mxu0 %v1749
    %1950 = vmatpush1.msra.mxu0 %v1748
    %1951 = vmatprep.subr.mxu0 %v1753
    %1952 = vmatpush1.msra.mxu0 %v1752
    %1953 = vmatprep.subr.mxu0 %v1757
    %1954 = vmatpush1.msra.mxu0 %v1756
    %1955 = vmatprep.subr.mxu0 %v1761
    %1956 = vmatpush1.msra.mxu0 %v1760
    %1957 = vmatprep.subr.mxu0 %v1765
    %1958 = vmatpush1.msra.mxu0 %v1764
    %1959 = vmatprep.subr.mxu0 %v1769
    %1960 = vmatpush1.msra.mxu0 %v1768
    %1961 = vmatprep.subr.mxu0 %v1773
    %1962 = vmatpush1.msra.mxu0 %v1772
    %1963 = vmatprep.subr.mxu0 %v1777
    %1964 = vmatpush1.msra.mxu0 %v1776
    %1965 = vmatprep.subr.mxu0 %v1781
    %1966 = vmatpush1.msra.mxu0 %v1780
    %1967 = vmatprep.subr.mxu0 %v1785
    %1968 = vmatpush1.msra.mxu0 %v1784
    %1969 = vmatprep.subr.mxu0 %v1789
    %1970 = vmatpush1.msra.mxu0 %v1788
    %1971 = vmatprep.subr.mxu0 %v1793
    %1972 = vmatpush1.msra.mxu0 %v1792
    %1973 = vmatprep.subr.mxu0 %v1797
    %1974 = vmatpush1.msra.mxu0 %v1796
    %1975 = vmatprep.subr.mxu0 %v1801
    %1976 = vmatpush1.msra.mxu0 %v1800
    %1977 = vmatprep.subr.mxu0 %v1805
    %1978 = vmatpush1.msra.mxu0 %v1804
    %1979 = vmatprep.subr.mxu0 %v1809
    %1980 = vmatpush1.msra.mxu0 %v1808
    %1981 = vmatprep.subr.mxu0 %v1813
    %1982 = vmatpush1.msra.mxu0 %v1812
    %1983 = vmatprep.subr.mxu0 %v1817
    %1984 = vmatpush1.msra.mxu0 %v1816
    %1985 = vmatprep.subr.mxu0 %v1821
    %1986 = vmatpush1.msra.mxu0 %v1820
    %1987 = vmatprep.subr.mxu0 %v1825
    %1988 = vmatpush1.msra.mxu0 %v1824
    %1989 = vmatprep.subr.mxu0 %v1829
    %1990 = vmatpush1.msra.mxu0 %v1828
    %1991 = vmatprep.subr.mxu0 %v1833
    %1992 = vmatpush1.msra.mxu0 %v1832
    %1993 = vmatprep.subr.mxu0 %v1837
    %1994 = vmatpush1.msra.mxu0 %v1836
    %1995 = vmatprep.mubr.f32.mxu0 %v1709
    %1996 = vmatmul.mubr.f32.gmra.mrb[0].mxu0 %v1708
    %v1997 = vpop.f32.mrb[0].mxu0
    %v1998 = vadd.f32 %v1851, %v1997
    %v1999 = vpop.f32.mrb[0].mxu0
    %v2000 = vadd.f32 %v1855, %v1999
    %2001 = vdwg.mxu0
    %v2002 = vxor.u32 %v1927, 2147483648
    %v2003 = vmul.f32 %v2002, 1.442695
    %v2004 = vpow.pop %v2003
    %v2005 = vadd.f32 %v2004, 1.0
    %v2006 = vrcp.pop %v2005
    %v2007 = vmul.f32 1.0, %v2006
    %v2008 = vxor.u32 %v1929, 2147483648
    %v2009 = vmul.f32 %v2008, 1.442695
    %v2010 = vpow.pop %v2009
    %v2011 = vadd.f32 %v2010, 1.0
    %v2012 = vrcp.pop %v2011
    %v2013 = vmul.f32 1.0, %v2012
    %v2014 = vtanh.pop %v1998
    %v2015 = vxor.u32 %v2000, 2147483648
    %v2016 = vmul.f32 %v2015, 1.442695
    %v2017 = vpow.pop %v2016
    %v2018 = vadd.f32 %v2017, 1.0
    %v2019 = vrcp.pop %v2018
    %v2020 = vmul.f32 1.0, %v2019
    %v2021 = vmul.f32 %v2013, %v1699
    %v2022 = vmul.f32 %v2007, %v2014
    %v2023 = vadd.f32 %v2021, %v2022
    %v2024 = vtanh.pop %v2023
    %v2025 = vmul.f32 %v2020, %v2024
    %s2026 = scalar_lea.vmem [#allocation11], 40
    %2027 = vst [vmem:[%s2026] sm:$0xff] %v2025
    %s2028 = scalar_lea.vmem [#allocation3], 48
    %v2029 = vld [vmem:[%s2028] sm:$0xff]
    %2030 = vst [vmem:[#allocation2] sm:$0xff] %v2029
    %2031 = vst [vmem:[#allocation2 + $0x8] sm:$0xff] %v2025
    %v2032 = vld [vmem:[#allocation2] sm:$0xff]
    %v2033 = vld [vmem:[#allocation2 + $0x8] sm:$0xff]
    %v2034 = vld [vmem:[#allocation6] sm:$0xff]
    %v2035 = vld [vmem:[#allocation6 + $0x8] sm:$0xff]
    %v2036 = vld [vmem:[#allocation6 + $0x10] sm:$0xff]
    %v2037 = vld [vmem:[#allocation6 + $0x18] sm:$0xff]
    %v2038 = vld [vmem:[#allocation6 + $0x20] sm:$0xff]
    %v2039 = vld [vmem:[#allocation6 + $0x28] sm:$0xff]
    %v2040 = vld [vmem:[#allocation6 + $0x30] sm:$0xff]
    %v2041 = vld [vmem:[#allocation6 + $0x38] sm:$0xff]
    %v2042 = vld [vmem:[#allocation6 + $0x40] sm:$0xff]
    %v2043 = vld [vmem:[#allocation6 + $0x48] sm:$0xff]
    %v2044 = vld [vmem:[#allocation6 + $0x50] sm:$0xff]
    %v2045 = vld [vmem:[#allocation6 + $0x58] sm:$0xff]
    %v2046 = vld [vmem:[#allocation6 + $0x60] sm:$0xff]
    %v2047 = vld [vmem:[#allocation6 + $0x68] sm:$0xff]
    %v2048 = vld [vmem:[#allocation6 + $0x70] sm:$0xff]
    %v2049 = vld [vmem:[#allocation6 + $0x78] sm:$0xff]
    %v2050 = vld [vmem:[#allocation6 + $0x80] sm:$0xff]
    %v2051 = vld [vmem:[#allocation6 + $0x88] sm:$0xff]
    %v2052 = vld [vmem:[#allocation6 + $0x90] sm:$0xff]
    %v2053 = vld [vmem:[#allocation6 + $0x98] sm:$0xff]
    %v2054 = vld [vmem:[#allocation6 + $0xa0] sm:$0xff]
    %v2055 = vld [vmem:[#allocation6 + $0xa8] sm:$0xff]
    %v2056 = vld [vmem:[#allocation6 + $0xb0] sm:$0xff]
    %v2057 = vld [vmem:[#allocation6 + $0xb8] sm:$0xff]
    %v2058 = vld [vmem:[#allocation6 + $0xc0] sm:$0xff]
    %v2059 = vld [vmem:[#allocation6 + $0xc8] sm:$0xff]
    %v2060 = vld [vmem:[#allocation6 + $0xd0] sm:$0xff]
    %v2061 = vld [vmem:[#allocation6 + $0xd8] sm:$0xff]
    %v2062 = vld [vmem:[#allocation6 + $0xe0] sm:$0xff]
    %v2063 = vld [vmem:[#allocation6 + $0xe8] sm:$0xff]
    %v2064 = vld [vmem:[#allocation6 + $0xf0] sm:$0xff]
    %v2065 = vld [vmem:[#allocation6 + $0xf8] sm:$0xff]
    %v2066 = vld [vmem:[#allocation6 + $0x100] sm:$0xff]
    %v2067 = vld [vmem:[#allocation6 + $0x108] sm:$0xff]
    %v2068 = vld [vmem:[#allocation6 + $0x110] sm:$0xff]
    %v2069 = vld [vmem:[#allocation6 + $0x118] sm:$0xff]
    %v2070 = vld [vmem:[#allocation6 + $0x120] sm:$0xff]
    %v2071 = vld [vmem:[#allocation6 + $0x128] sm:$0xff]
    %v2072 = vld [vmem:[#allocation6 + $0x130] sm:$0xff]
    %v2073 = vld [vmem:[#allocation6 + $0x138] sm:$0xff]
    %v2074 = vld [vmem:[#allocation6 + $0x140] sm:$0xff]
    %v2075 = vld [vmem:[#allocation6 + $0x148] sm:$0xff]
    %v2076 = vld [vmem:[#allocation6 + $0x150] sm:$0xff]
    %v2077 = vld [vmem:[#allocation6 + $0x158] sm:$0xff]
    %v2078 = vld [vmem:[#allocation6 + $0x160] sm:$0xff]
    %v2079 = vld [vmem:[#allocation6 + $0x168] sm:$0xff]
    %v2080 = vld [vmem:[#allocation6 + $0x170] sm:$0xff]
    %v2081 = vld [vmem:[#allocation6 + $0x178] sm:$0xff]
    %v2082 = vld [vmem:[#allocation6 + $0x180] sm:$0xff]
    %v2083 = vld [vmem:[#allocation6 + $0x188] sm:$0xff]
    %v2084 = vld [vmem:[#allocation6 + $0x190] sm:$0xff]
    %v2085 = vld [vmem:[#allocation6 + $0x198] sm:$0xff]
    %v2086 = vld [vmem:[#allocation6 + $0x1a0] sm:$0xff]
    %v2087 = vld [vmem:[#allocation6 + $0x1a8] sm:$0xff]
    %v2088 = vld [vmem:[#allocation6 + $0x1b0] sm:$0xff]
    %v2089 = vld [vmem:[#allocation6 + $0x1b8] sm:$0xff]
    %v2090 = vld [vmem:[#allocation6 + $0x1c0] sm:$0xff]
    %v2091 = vld [vmem:[#allocation6 + $0x1c8] sm:$0xff]
    %v2092 = vld [vmem:[#allocation6 + $0x1d0] sm:$0xff]
    %v2093 = vld [vmem:[#allocation6 + $0x1d8] sm:$0xff]
    %v2094 = vld [vmem:[#allocation6 + $0x1e0] sm:$0xff]
    %v2095 = vld [vmem:[#allocation6 + $0x1e8] sm:$0xff]
    %v2096 = vld [vmem:[#allocation6 + $0x1f0] sm:$0xff]
    %v2097 = vld [vmem:[#allocation6 + $0x1f8] sm:$0xff]
    %v2098 = vld [vmem:[#allocation6 + $0x200] sm:$0xff]
    %v2099 = vld [vmem:[#allocation6 + $0x208] sm:$0xff]
    %v2100 = vld [vmem:[#allocation6 + $0x210] sm:$0xff]
    %v2101 = vld [vmem:[#allocation6 + $0x218] sm:$0xff]
    %v2102 = vld [vmem:[#allocation6 + $0x220] sm:$0xff]
    %v2103 = vld [vmem:[#allocation6 + $0x228] sm:$0xff]
    %v2104 = vld [vmem:[#allocation6 + $0x230] sm:$0xff]
    %v2105 = vld [vmem:[#allocation6 + $0x238] sm:$0xff]
    %v2106 = vld [vmem:[#allocation6 + $0x240] sm:$0xff]
    %v2107 = vld [vmem:[#allocation6 + $0x248] sm:$0xff]
    %v2108 = vld [vmem:[#allocation6 + $0x250] sm:$0xff]
    %v2109 = vld [vmem:[#allocation6 + $0x258] sm:$0xff]
    %v2110 = vld [vmem:[#allocation6 + $0x260] sm:$0xff]
    %v2111 = vld [vmem:[#allocation6 + $0x268] sm:$0xff]
    %v2112 = vld [vmem:[#allocation6 + $0x270] sm:$0xff]
    %v2113 = vld [vmem:[#allocation6 + $0x278] sm:$0xff]
    %v2114 = vld [vmem:[#allocation6 + $0x280] sm:$0xff]
    %v2115 = vld [vmem:[#allocation6 + $0x288] sm:$0xff]
    %v2116 = vld [vmem:[#allocation6 + $0x290] sm:$0xff]
    %v2117 = vld [vmem:[#allocation6 + $0x298] sm:$0xff]
    %v2118 = vld [vmem:[#allocation6 + $0x2a0] sm:$0xff]
    %v2119 = vld [vmem:[#allocation6 + $0x2a8] sm:$0xff]
    %v2120 = vld [vmem:[#allocation6 + $0x2b0] sm:$0xff]
    %v2121 = vld [vmem:[#allocation6 + $0x2b8] sm:$0xff]
    %v2122 = vld [vmem:[#allocation6 + $0x2c0] sm:$0xff]
    %v2123 = vld [vmem:[#allocation6 + $0x2c8] sm:$0xff]
    %v2124 = vld [vmem:[#allocation6 + $0x2d0] sm:$0xff]
    %v2125 = vld [vmem:[#allocation6 + $0x2d8] sm:$0xff]
    %v2126 = vld [vmem:[#allocation6 + $0x2e0] sm:$0xff]
    %v2127 = vld [vmem:[#allocation6 + $0x2e8] sm:$0xff]
    %v2128 = vld [vmem:[#allocation6 + $0x2f0] sm:$0xff]
    %v2129 = vld [vmem:[#allocation6 + $0x2f8] sm:$0xff]
    %v2130 = vld [vmem:[#allocation6 + $0x300] sm:$0xff]
    %v2131 = vld [vmem:[#allocation6 + $0x308] sm:$0xff]
    %v2132 = vld [vmem:[#allocation6 + $0x310] sm:$0xff]
    %v2133 = vld [vmem:[#allocation6 + $0x318] sm:$0xff]
    %v2134 = vld [vmem:[#allocation6 + $0x320] sm:$0xff]
    %v2135 = vld [vmem:[#allocation6 + $0x328] sm:$0xff]
    %v2136 = vld [vmem:[#allocation6 + $0x330] sm:$0xff]
    %v2137 = vld [vmem:[#allocation6 + $0x338] sm:$0xff]
    %v2138 = vld [vmem:[#allocation6 + $0x340] sm:$0xff]
    %v2139 = vld [vmem:[#allocation6 + $0x348] sm:$0xff]
    %v2140 = vld [vmem:[#allocation6 + $0x350] sm:$0xff]
    %v2141 = vld [vmem:[#allocation6 + $0x358] sm:$0xff]
    %v2142 = vld [vmem:[#allocation6 + $0x360] sm:$0xff]
    %v2143 = vld [vmem:[#allocation6 + $0x368] sm:$0xff]
    %v2144 = vld [vmem:[#allocation6 + $0x370] sm:$0xff]
    %v2145 = vld [vmem:[#allocation6 + $0x378] sm:$0xff]
    %v2146 = vld [vmem:[#allocation6 + $0x380] sm:$0xff]
    %v2147 = vld [vmem:[#allocation6 + $0x388] sm:$0xff]
    %v2148 = vld [vmem:[#allocation6 + $0x390] sm:$0xff]
    %v2149 = vld [vmem:[#allocation6 + $0x398] sm:$0xff]
    %v2150 = vld [vmem:[#allocation6 + $0x3a0] sm:$0xff]
    %v2151 = vld [vmem:[#allocation6 + $0x3a8] sm:$0xff]
    %v2152 = vld [vmem:[#allocation6 + $0x3b0] sm:$0xff]
    %v2153 = vld [vmem:[#allocation6 + $0x3b8] sm:$0xff]
    %v2154 = vld [vmem:[#allocation6 + $0x3c0] sm:$0xff]
    %v2155 = vld [vmem:[#allocation6 + $0x3c8] sm:$0xff]
    %v2156 = vld [vmem:[#allocation6 + $0x3d0] sm:$0xff]
    %v2157 = vld [vmem:[#allocation6 + $0x3d8] sm:$0xff]
    %v2158 = vld [vmem:[#allocation6 + $0x3e0] sm:$0xff]
    %v2159 = vld [vmem:[#allocation6 + $0x3e8] sm:$0xff]
    %v2160 = vld [vmem:[#allocation6 + $0x3f0] sm:$0xff]
    %v2161 = vld [vmem:[#allocation6 + $0x3f8] sm:$0xff]
    %v2162 = vld [vmem:[#allocation8] sm:$0xf]
    %v2164 = vlaneseq
    %v2165 = vshrl.u32 %v2164, 7
    %v2166 = vsub.s32 0, %v2165
    %v2167 = vrot.slane %v2162, %v2166
    %v2168 = vlaneseq
    %v2169 = vshrl.u32 %v2168, 7
    %v2170 = vsub.s32 1, %v2169
    %v2171 = vrot.slane %v2162, %v2170
    %v2172 = vlaneseq
    %v2173 = vshrl.u32 %v2172, 7
    %v2174 = vsub.s32 2, %v2173
    %v2175 = vrot.slane %v2162, %v2174
    %v2176 = vlaneseq
    %v2177 = vshrl.u32 %v2176, 7
    %v2178 = vsub.s32 3, %v2177
    %v2179 = vrot.slane %v2162, %v2178
    %2184 = vmatprep.subr.mxu0 %v2035
    %2185 = vmatpush1.msra.mxu0 %v2034
    %2186 = vmatprep.subr.mxu0 %v2039
    %2187 = vmatpush1.msra.mxu0 %v2038
    %2188 = vmatprep.subr.mxu0 %v2043
    %2189 = vmatpush1.msra.mxu0 %v2042
    %2190 = vmatprep.subr.mxu0 %v2047
    %2191 = vmatpush1.msra.mxu0 %v2046
    %2192 = vmatprep.subr.mxu0 %v2051
    %2193 = vmatpush1.msra.mxu0 %v2050
    %2194 = vmatprep.subr.mxu0 %v2055
    %2195 = vmatpush1.msra.mxu0 %v2054
    %2196 = vmatprep.subr.mxu0 %v2059
    %2197 = vmatpush1.msra.mxu0 %v2058
    %2198 = vmatprep.subr.mxu0 %v2063
    %2199 = vmatpush1.msra.mxu0 %v2062
    %2200 = vmatprep.subr.mxu0 %v2067
    %2201 = vmatpush1.msra.mxu0 %v2066
    %2202 = vmatprep.subr.mxu0 %v2071
    %2203 = vmatpush1.msra.mxu0 %v2070
    %2204 = vmatprep.subr.mxu0 %v2075
    %2205 = vmatpush1.msra.mxu0 %v2074
    %2206 = vmatprep.subr.mxu0 %v2079
    %2207 = vmatpush1.msra.mxu0 %v2078
    %2208 = vmatprep.subr.mxu0 %v2083
    %2209 = vmatpush1.msra.mxu0 %v2082
    %2210 = vmatprep.subr.mxu0 %v2087
    %2211 = vmatpush1.msra.mxu0 %v2086
    %2212 = vmatprep.subr.mxu0 %v2091
    %2213 = vmatpush1.msra.mxu0 %v2090
    %2214 = vmatprep.subr.mxu0 %v2095
    %2215 = vmatpush1.msra.mxu0 %v2094
    %2216 = vmatprep.subr.mxu0 %v2099
    %2217 = vmatpush1.msra.mxu0 %v2098
    %2218 = vmatprep.subr.mxu0 %v2103
    %2219 = vmatpush1.msra.mxu0 %v2102
    %2220 = vmatprep.subr.mxu0 %v2107
    %2221 = vmatpush1.msra.mxu0 %v2106
    %2222 = vmatprep.subr.mxu0 %v2111
    %2223 = vmatpush1.msra.mxu0 %v2110
    %2224 = vmatprep.subr.mxu0 %v2115
    %2225 = vmatpush1.msra.mxu0 %v2114
    %2226 = vmatprep.subr.mxu0 %v2119
    %2227 = vmatpush1.msra.mxu0 %v2118
    %2228 = vmatprep.subr.mxu0 %v2123
    %2229 = vmatpush1.msra.mxu0 %v2122
    %2230 = vmatprep.subr.mxu0 %v2127
    %2231 = vmatpush1.msra.mxu0 %v2126
    %2232 = vmatprep.subr.mxu0 %v2131
    %2233 = vmatpush1.msra.mxu0 %v2130
    %2234 = vmatprep.subr.mxu0 %v2135
    %2235 = vmatpush1.msra.mxu0 %v2134
    %2236 = vmatprep.subr.mxu0 %v2139
    %2237 = vmatpush1.msra.mxu0 %v2138
    %2238 = vmatprep.subr.mxu0 %v2143
    %2239 = vmatpush1.msra.mxu0 %v2142
    %2240 = vmatprep.subr.mxu0 %v2147
    %2241 = vmatpush1.msra.mxu0 %v2146
    %2242 = vmatprep.subr.mxu0 %v2151
    %2243 = vmatpush1.msra.mxu0 %v2150
    %2244 = vmatprep.subr.mxu0 %v2155
    %2245 = vmatpush1.msra.mxu0 %v2154
    %2246 = vmatprep.subr.mxu0 %v2159
    %2247 = vmatpush1.msra.mxu0 %v2158
    %2248 = vmatprep.mubr.f32.mxu0 %v2033
    %2249 = vmatmul.mubr.f32.gmra.mrb[0].mxu0 %v2032
    %v2250 = vpop.f32.mrb[0].mxu0
    %v2251 = vadd.f32 %v2167, %v2250
    %v2252 = vpop.f32.mrb[0].mxu0
    %v2253 = vadd.f32 %v2171, %v2252
    %2254 = vdwg.mxu0
    %2255 = vmatprep.subr.mxu0 %v2037
    %2256 = vmatpush1.msra.mxu0 %v2036
    %2257 = vmatprep.subr.mxu0 %v2041
    %2258 = vmatpush1.msra.mxu0 %v2040
    %2259 = vmatprep.subr.mxu0 %v2045
    %2260 = vmatpush1.msra.mxu0 %v2044
    %2261 = vmatprep.subr.mxu0 %v2049
    %2262 = vmatpush1.msra.mxu0 %v2048
    %2263 = vmatprep.subr.mxu0 %v2053
    %2264 = vmatpush1.msra.mxu0 %v2052
    %2265 = vmatprep.subr.mxu0 %v2057
    %2266 = vmatpush1.msra.mxu0 %v2056
    %2267 = vmatprep.subr.mxu0 %v2061
    %2268 = vmatpush1.msra.mxu0 %v2060
    %2269 = vmatprep.subr.mxu0 %v2065
    %2270 = vmatpush1.msra.mxu0 %v2064
    %2271 = vmatprep.subr.mxu0 %v2069
    %2272 = vmatpush1.msra.mxu0 %v2068
    %2273 = vmatprep.subr.mxu0 %v2073
    %2274 = vmatpush1.msra.mxu0 %v2072
    %2275 = vmatprep.subr.mxu0 %v2077
    %2276 = vmatpush1.msra.mxu0 %v2076
    %2277 = vmatprep.subr.mxu0 %v2081
    %2278 = vmatpush1.msra.mxu0 %v2080
    %2279 = vmatprep.subr.mxu0 %v2085
    %2280 = vmatpush1.msra.mxu0 %v2084
    %2281 = vmatprep.subr.mxu0 %v2089
    %2282 = vmatpush1.msra.mxu0 %v2088
    %2283 = vmatprep.subr.mxu0 %v2093
    %2284 = vmatpush1.msra.mxu0 %v2092
    %2285 = vmatprep.subr.mxu0 %v2097
    %2286 = vmatpush1.msra.mxu0 %v2096
    %2287 = vmatprep.subr.mxu0 %v2101
    %2288 = vmatpush1.msra.mxu0 %v2100
    %2289 = vmatprep.subr.mxu0 %v2105
    %2290 = vmatpush1.msra.mxu0 %v2104
    %2291 = vmatprep.subr.mxu0 %v2109
    %2292 = vmatpush1.msra.mxu0 %v2108
    %2293 = vmatprep.subr.mxu0 %v2113
    %2294 = vmatpush1.msra.mxu0 %v2112
    %2295 = vmatprep.subr.mxu0 %v2117
    %2296 = vmatpush1.msra.mxu0 %v2116
    %2297 = vmatprep.subr.mxu0 %v2121
    %2298 = vmatpush1.msra.mxu0 %v2120
    %2299 = vmatprep.subr.mxu0 %v2125
    %2300 = vmatpush1.msra.mxu0 %v2124
    %2301 = vmatprep.subr.mxu0 %v2129
    %2302 = vmatpush1.msra.mxu0 %v2128
    %2303 = vmatprep.subr.mxu0 %v2133
    %2304 = vmatpush1.msra.mxu0 %v2132
    %2305 = vmatprep.subr.mxu0 %v2137
    %2306 = vmatpush1.msra.mxu0 %v2136
    %2307 = vmatprep.subr.mxu0 %v2141
    %2308 = vmatpush1.msra.mxu0 %v2140
    %2309 = vmatprep.subr.mxu0 %v2145
    %2310 = vmatpush1.msra.mxu0 %v2144
    %2311 = vmatprep.subr.mxu0 %v2149
    %2312 = vmatpush1.msra.mxu0 %v2148
    %2313 = vmatprep.subr.mxu0 %v2153
    %2314 = vmatpush1.msra.mxu0 %v2152
    %2315 = vmatprep.subr.mxu0 %v2157
    %2316 = vmatpush1.msra.mxu0 %v2156
    %2317 = vmatprep.subr.mxu0 %v2161
    %2318 = vmatpush1.msra.mxu0 %v2160
    %2319 = vmatprep.mubr.f32.mxu0 %v2033
    %2320 = vmatmul.mubr.f32.gmra.mrb[0].mxu0 %v2032
    %v2321 = vpop.f32.mrb[0].mxu0
    %v2322 = vadd.f32 %v2175, %v2321
    %v2323 = vpop.f32.mrb[0].mxu0
    %v2324 = vadd.f32 %v2179, %v2323
    %2325 = vdwg.mxu0
    %v2326 = vxor.u32 %v2251, 2147483648
    %v2327 = vmul.f32 %v2326, 1.442695
    %v2328 = vpow.pop %v2327
    %v2329 = vadd.f32 %v2328, 1.0
    %v2330 = vrcp.pop %v2329
    %v2331 = vmul.f32 1.0, %v2330
    %v2332 = vxor.u32 %v2253, 2147483648
    %v2333 = vmul.f32 %v2332, 1.442695
    %v2334 = vpow.pop %v2333
    %v2335 = vadd.f32 %v2334, 1.0
    %v2336 = vrcp.pop %v2335
    %v2337 = vmul.f32 1.0, %v2336
    %v2338 = vtanh.pop %v2322
    %v2339 = vxor.u32 %v2324, 2147483648
    %v2340 = vmul.f32 %v2339, 1.442695
    %v2341 = vpow.pop %v2340
    %v2342 = vadd.f32 %v2341, 1.0
    %v2343 = vrcp.pop %v2342
    %v2344 = vmul.f32 1.0, %v2343
    %v2345 = vmul.f32 %v2337, %v2023
    %v2346 = vmul.f32 %v2331, %v2338
    %v2347 = vadd.f32 %v2345, %v2346
    %v2348 = vtanh.pop %v2347
    %v2349 = vmul.f32 %v2344, %v2348
    %s2350 = scalar_lea.vmem [#allocation11], 48
    %2351 = vst [vmem:[%s2350] sm:$0xff] %v2349
    %s2352 = scalar_lea.vmem [#allocation3], 56
    %v2353 = vld [vmem:[%s2352] sm:$0xff]
    %2354 = vst [vmem:[#allocation2] sm:$0xff] %v2353
    %2355 = vst [vmem:[#allocation2 + $0x8] sm:$0xff] %v2349
    %v2356 = vld [vmem:[#allocation2] sm:$0xff]
    %v2357 = vld [vmem:[#allocation2 + $0x8] sm:$0xff]
    %v2358 = vld [vmem:[#allocation6] sm:$0xff]
    %v2359 = vld [vmem:[#allocation6 + $0x8] sm:$0xff]
    %v2360 = vld [vmem:[#allocation6 + $0x10] sm:$0xff]
    %v2361 = vld [vmem:[#allocation6 + $0x18] sm:$0xff]
    %v2362 = vld [vmem:[#allocation6 + $0x20] sm:$0xff]
    %v2363 = vld [vmem:[#allocation6 + $0x28] sm:$0xff]
    %v2364 = vld [vmem:[#allocation6 + $0x30] sm:$0xff]
    %v2365 = vld [vmem:[#allocation6 + $0x38] sm:$0xff]
    %v2366 = vld [vmem:[#allocation6 + $0x40] sm:$0xff]
    %v2367 = vld [vmem:[#allocation6 + $0x48] sm:$0xff]
    %v2368 = vld [vmem:[#allocation6 + $0x50] sm:$0xff]
    %v2369 = vld [vmem:[#allocation6 + $0x58] sm:$0xff]
    %v2370 = vld [vmem:[#allocation6 + $0x60] sm:$0xff]
    %v2371 = vld [vmem:[#allocation6 + $0x68] sm:$0xff]
    %v2372 = vld [vmem:[#allocation6 + $0x70] sm:$0xff]
    %v2373 = vld [vmem:[#allocation6 + $0x78] sm:$0xff]
    %v2374 = vld [vmem:[#allocation6 + $0x80] sm:$0xff]
    %v2375 = vld [vmem:[#allocation6 + $0x88] sm:$0xff]
    %v2376 = vld [vmem:[#allocation6 + $0x90] sm:$0xff]
    %v2377 = vld [vmem:[#allocation6 + $0x98] sm:$0xff]
    %v2378 = vld [vmem:[#allocation6 + $0xa0] sm:$0xff]
    %v2379 = vld [vmem:[#allocation6 + $0xa8] sm:$0xff]
    %v2380 = vld [vmem:[#allocation6 + $0xb0] sm:$0xff]
    %v2381 = vld [vmem:[#allocation6 + $0xb8] sm:$0xff]
    %v2382 = vld [vmem:[#allocation6 + $0xc0] sm:$0xff]
    %v2383 = vld [vmem:[#allocation6 + $0xc8] sm:$0xff]
    %v2384 = vld [vmem:[#allocation6 + $0xd0] sm:$0xff]
    %v2385 = vld [vmem:[#allocation6 + $0xd8] sm:$0xff]
    %v2386 = vld [vmem:[#allocation6 + $0xe0] sm:$0xff]
    %v2387 = vld [vmem:[#allocation6 + $0xe8] sm:$0xff]
    %v2388 = vld [vmem:[#allocation6 + $0xf0] sm:$0xff]
    %v2389 = vld [vmem:[#allocation6 + $0xf8] sm:$0xff]
    %v2390 = vld [vmem:[#allocation6 + $0x100] sm:$0xff]
    %v2391 = vld [vmem:[#allocation6 + $0x108] sm:$0xff]
    %v2392 = vld [vmem:[#allocation6 + $0x110] sm:$0xff]
    %v2393 = vld [vmem:[#allocation6 + $0x118] sm:$0xff]
    %v2394 = vld [vmem:[#allocation6 + $0x120] sm:$0xff]
    %v2395 = vld [vmem:[#allocation6 + $0x128] sm:$0xff]
    %v2396 = vld [vmem:[#allocation6 + $0x130] sm:$0xff]
    %v2397 = vld [vmem:[#allocation6 + $0x138] sm:$0xff]
    %v2398 = vld [vmem:[#allocation6 + $0x140] sm:$0xff]
    %v2399 = vld [vmem:[#allocation6 + $0x148] sm:$0xff]
    %v2400 = vld [vmem:[#allocation6 + $0x150] sm:$0xff]
    %v2401 = vld [vmem:[#allocation6 + $0x158] sm:$0xff]
    %v2402 = vld [vmem:[#allocation6 + $0x160] sm:$0xff]
    %v2403 = vld [vmem:[#allocation6 + $0x168] sm:$0xff]
    %v2404 = vld [vmem:[#allocation6 + $0x170] sm:$0xff]
    %v2405 = vld [vmem:[#allocation6 + $0x178] sm:$0xff]
    %v2406 = vld [vmem:[#allocation6 + $0x180] sm:$0xff]
    %v2407 = vld [vmem:[#allocation6 + $0x188] sm:$0xff]
    %v2408 = vld [vmem:[#allocation6 + $0x190] sm:$0xff]
    %v2409 = vld [vmem:[#allocation6 + $0x198] sm:$0xff]
    %v2410 = vld [vmem:[#allocation6 + $0x1a0] sm:$0xff]
    %v2411 = vld [vmem:[#allocation6 + $0x1a8] sm:$0xff]
    %v2412 = vld [vmem:[#allocation6 + $0x1b0] sm:$0xff]
    %v2413 = vld [vmem:[#allocation6 + $0x1b8] sm:$0xff]
    %v2414 = vld [vmem:[#allocation6 + $0x1c0] sm:$0xff]
    %v2415 = vld [vmem:[#allocation6 + $0x1c8] sm:$0xff]
    %v2416 = vld [vmem:[#allocation6 + $0x1d0] sm:$0xff]
    %v2417 = vld [vmem:[#allocation6 + $0x1d8] sm:$0xff]
    %v2418 = vld [vmem:[#allocation6 + $0x1e0] sm:$0xff]
    %v2419 = vld [vmem:[#allocation6 + $0x1e8] sm:$0xff]
    %v2420 = vld [vmem:[#allocation6 + $0x1f0] sm:$0xff]
    %v2421 = vld [vmem:[#allocation6 + $0x1f8] sm:$0xff]
    %v2422 = vld [vmem:[#allocation6 + $0x200] sm:$0xff]
    %v2423 = vld [vmem:[#allocation6 + $0x208] sm:$0xff]
    %v2424 = vld [vmem:[#allocation6 + $0x210] sm:$0xff]
    %v2425 = vld [vmem:[#allocation6 + $0x218] sm:$0xff]
    %v2426 = vld [vmem:[#allocation6 + $0x220] sm:$0xff]
    %v2427 = vld [vmem:[#allocation6 + $0x228] sm:$0xff]
    %v2428 = vld [vmem:[#allocation6 + $0x230] sm:$0xff]
    %v2429 = vld [vmem:[#allocation6 + $0x238] sm:$0xff]
    %v2430 = vld [vmem:[#allocation6 + $0x240] sm:$0xff]
    %v2431 = vld [vmem:[#allocation6 + $0x248] sm:$0xff]
    %v2432 = vld [vmem:[#allocation6 + $0x250] sm:$0xff]
    %v2433 = vld [vmem:[#allocation6 + $0x258] sm:$0xff]
    %v2434 = vld [vmem:[#allocation6 + $0x260] sm:$0xff]
    %v2435 = vld [vmem:[#allocation6 + $0x268] sm:$0xff]
    %v2436 = vld [vmem:[#allocation6 + $0x270] sm:$0xff]
    %v2437 = vld [vmem:[#allocation6 + $0x278] sm:$0xff]
    %v2438 = vld [vmem:[#allocation6 + $0x280] sm:$0xff]
    %v2439 = vld [vmem:[#allocation6 + $0x288] sm:$0xff]
    %v2440 = vld [vmem:[#allocation6 + $0x290] sm:$0xff]
    %v2441 = vld [vmem:[#allocation6 + $0x298] sm:$0xff]
    %v2442 = vld [vmem:[#allocation6 + $0x2a0] sm:$0xff]
    %v2443 = vld [vmem:[#allocation6 + $0x2a8] sm:$0xff]
    %v2444 = vld [vmem:[#allocation6 + $0x2b0] sm:$0xff]
    %v2445 = vld [vmem:[#allocation6 + $0x2b8] sm:$0xff]
    %v2446 = vld [vmem:[#allocation6 + $0x2c0] sm:$0xff]
    %v2447 = vld [vmem:[#allocation6 + $0x2c8] sm:$0xff]
    %v2448 = vld [vmem:[#allocation6 + $0x2d0] sm:$0xff]
    %v2449 = vld [vmem:[#allocation6 + $0x2d8] sm:$0xff]
    %v2450 = vld [vmem:[#allocation6 + $0x2e0] sm:$0xff]
    %v2451 = vld [vmem:[#allocation6 + $0x2e8] sm:$0xff]
    %v2452 = vld [vmem:[#allocation6 + $0x2f0] sm:$0xff]
    %v2453 = vld [vmem:[#allocation6 + $0x2f8] sm:$0xff]
    %v2454 = vld [vmem:[#allocation6 + $0x300] sm:$0xff]
    %v2455 = vld [vmem:[#allocation6 + $0x308] sm:$0xff]
    %v2456 = vld [vmem:[#allocation6 + $0x310] sm:$0xff]
    %v2457 = vld [vmem:[#allocation6 + $0x318] sm:$0xff]
    %v2458 = vld [vmem:[#allocation6 + $0x320] sm:$0xff]
    %v2459 = vld [vmem:[#allocation6 + $0x328] sm:$0xff]
    %v2460 = vld [vmem:[#allocation6 + $0x330] sm:$0xff]
    %v2461 = vld [vmem:[#allocation6 + $0x338] sm:$0xff]
    %v2462 = vld [vmem:[#allocation6 + $0x340] sm:$0xff]
    %v2463 = vld [vmem:[#allocation6 + $0x348] sm:$0xff]
    %v2464 = vld [vmem:[#allocation6 + $0x350] sm:$0xff]
    %v2465 = vld [vmem:[#allocation6 + $0x358] sm:$0xff]
    %v2466 = vld [vmem:[#allocation6 + $0x360] sm:$0xff]
    %v2467 = vld [vmem:[#allocation6 + $0x368] sm:$0xff]
    %v2468 = vld [vmem:[#allocation6 + $0x370] sm:$0xff]
    %v2469 = vld [vmem:[#allocation6 + $0x378] sm:$0xff]
    %v2470 = vld [vmem:[#allocation6 + $0x380] sm:$0xff]
    %v2471 = vld [vmem:[#allocation6 + $0x388] sm:$0xff]
    %v2472 = vld [vmem:[#allocation6 + $0x390] sm:$0xff]
    %v2473 = vld [vmem:[#allocation6 + $0x398] sm:$0xff]
    %v2474 = vld [vmem:[#allocation6 + $0x3a0] sm:$0xff]
    %v2475 = vld [vmem:[#allocation6 + $0x3a8] sm:$0xff]
    %v2476 = vld [vmem:[#allocation6 + $0x3b0] sm:$0xff]
    %v2477 = vld [vmem:[#allocation6 + $0x3b8] sm:$0xff]
    %v2478 = vld [vmem:[#allocation6 + $0x3c0] sm:$0xff]
    %v2479 = vld [vmem:[#allocation6 + $0x3c8] sm:$0xff]
    %v2480 = vld [vmem:[#allocation6 + $0x3d0] sm:$0xff]
    %v2481 = vld [vmem:[#allocation6 + $0x3d8] sm:$0xff]
    %v2482 = vld [vmem:[#allocation6 + $0x3e0] sm:$0xff]
    %v2483 = vld [vmem:[#allocation6 + $0x3e8] sm:$0xff]
    %v2484 = vld [vmem:[#allocation6 + $0x3f0] sm:$0xff]
    %v2485 = vld [vmem:[#allocation6 + $0x3f8] sm:$0xff]
    %v2486 = vld [vmem:[#allocation8] sm:$0xf]
    %v2488 = vlaneseq
    %v2489 = vshrl.u32 %v2488, 7
    %v2490 = vsub.s32 0, %v2489
    %v2491 = vrot.slane %v2486, %v2490
    %v2492 = vlaneseq
    %v2493 = vshrl.u32 %v2492, 7
    %v2494 = vsub.s32 1, %v2493
    %v2495 = vrot.slane %v2486, %v2494
    %v2496 = vlaneseq
    %v2497 = vshrl.u32 %v2496, 7
    %v2498 = vsub.s32 2, %v2497
    %v2499 = vrot.slane %v2486, %v2498
    %v2500 = vlaneseq
    %v2501 = vshrl.u32 %v2500, 7
    %v2502 = vsub.s32 3, %v2501
    %v2503 = vrot.slane %v2486, %v2502
    %2508 = vmatprep.subr.mxu0 %v2359
    %2509 = vmatpush1.msra.mxu0 %v2358
    %2510 = vmatprep.subr.mxu0 %v2363
    %2511 = vmatpush1.msra.mxu0 %v2362
    %2512 = vmatprep.subr.mxu0 %v2367
    %2513 = vmatpush1.msra.mxu0 %v2366
    %2514 = vmatprep.subr.mxu0 %v2371
    %2515 = vmatpush1.msra.mxu0 %v2370
    %2516 = vmatprep.subr.mxu0 %v2375
    %2517 = vmatpush1.msra.mxu0 %v2374
    %2518 = vmatprep.subr.mxu0 %v2379
    %2519 = vmatpush1.msra.mxu0 %v2378
    %2520 = vmatprep.subr.mxu0 %v2383
    %2521 = vmatpush1.msra.mxu0 %v2382
    %2522 = vmatprep.subr.mxu0 %v2387
    %2523 = vmatpush1.msra.mxu0 %v2386
    %2524 = vmatprep.subr.mxu0 %v2391
    %2525 = vmatpush1.msra.mxu0 %v2390
    %2526 = vmatprep.subr.mxu0 %v2395
    %2527 = vmatpush1.msra.mxu0 %v2394
    %2528 = vmatprep.subr.mxu0 %v2399
    %2529 = vmatpush1.msra.mxu0 %v2398
    %2530 = vmatprep.subr.mxu0 %v2403
    %2531 = vmatpush1.msra.mxu0 %v2402
    %2532 = vmatprep.subr.mxu0 %v2407
    %2533 = vmatpush1.msra.mxu0 %v2406
    %2534 = vmatprep.subr.mxu0 %v2411
    %2535 = vmatpush1.msra.mxu0 %v2410
    %2536 = vmatprep.subr.mxu0 %v2415
    %2537 = vmatpush1.msra.mxu0 %v2414
    %2538 = vmatprep.subr.mxu0 %v2419
    %2539 = vmatpush1.msra.mxu0 %v2418
    %2540 = vmatprep.subr.mxu0 %v2423
    %2541 = vmatpush1.msra.mxu0 %v2422
    %2542 = vmatprep.subr.mxu0 %v2427
    %2543 = vmatpush1.msra.mxu0 %v2426
    %2544 = vmatprep.subr.mxu0 %v2431
    %2545 = vmatpush1.msra.mxu0 %v2430
    %2546 = vmatprep.subr.mxu0 %v2435
    %2547 = vmatpush1.msra.mxu0 %v2434
    %2548 = vmatprep.subr.mxu0 %v2439
    %2549 = vmatpush1.msra.mxu0 %v2438
    %2550 = vmatprep.subr.mxu0 %v2443
    %2551 = vmatpush1.msra.mxu0 %v2442
    %2552 = vmatprep.subr.mxu0 %v2447
    %2553 = vmatpush1.msra.mxu0 %v2446
    %2554 = vmatprep.subr.mxu0 %v2451
    %2555 = vmatpush1.msra.mxu0 %v2450
    %2556 = vmatprep.subr.mxu0 %v2455
    %2557 = vmatpush1.msra.mxu0 %v2454
    %2558 = vmatprep.subr.mxu0 %v2459
    %2559 = vmatpush1.msra.mxu0 %v2458
    %2560 = vmatprep.subr.mxu0 %v2463
    %2561 = vmatpush1.msra.mxu0 %v2462
    %2562 = vmatprep.subr.mxu0 %v2467
    %2563 = vmatpush1.msra.mxu0 %v2466
    %2564 = vmatprep.subr.mxu0 %v2471
    %2565 = vmatpush1.msra.mxu0 %v2470
    %2566 = vmatprep.subr.mxu0 %v2475
    %2567 = vmatpush1.msra.mxu0 %v2474
    %2568 = vmatprep.subr.mxu0 %v2479
    %2569 = vmatpush1.msra.mxu0 %v2478
    %2570 = vmatprep.subr.mxu0 %v2483
    %2571 = vmatpush1.msra.mxu0 %v2482
    %2572 = vmatprep.mubr.f32.mxu0 %v2357
    %2573 = vmatmul.mubr.f32.gmra.mrb[0].mxu0 %v2356
    %v2574 = vpop.f32.mrb[0].mxu0
    %v2575 = vadd.f32 %v2491, %v2574
    %v2576 = vpop.f32.mrb[0].mxu0
    %v2577 = vadd.f32 %v2495, %v2576
    %2578 = vdwg.mxu0
    %2579 = vmatprep.subr.mxu0 %v2361
    %2580 = vmatpush1.msra.mxu0 %v2360
    %2581 = vmatprep.subr.mxu0 %v2365
    %2582 = vmatpush1.msra.mxu0 %v2364
    %2583 = vmatprep.subr.mxu0 %v2369
    %2584 = vmatpush1.msra.mxu0 %v2368
    %2585 = vmatprep.subr.mxu0 %v2373
    %2586 = vmatpush1.msra.mxu0 %v2372
    %2587 = vmatprep.subr.mxu0 %v2377
    %2588 = vmatpush1.msra.mxu0 %v2376
    %2589 = vmatprep.subr.mxu0 %v2381
    %2590 = vmatpush1.msra.mxu0 %v2380
    %2591 = vmatprep.subr.mxu0 %v2385
    %2592 = vmatpush1.msra.mxu0 %v2384
    %2593 = vmatprep.subr.mxu0 %v2389
    %2594 = vmatpush1.msra.mxu0 %v2388
    %2595 = vmatprep.subr.mxu0 %v2393
    %2596 = vmatpush1.msra.mxu0 %v2392
    %2597 = vmatprep.subr.mxu0 %v2397
    %2598 = vmatpush1.msra.mxu0 %v2396
    %2599 = vmatprep.subr.mxu0 %v2401
    %2600 = vmatpush1.msra.mxu0 %v2400
    %2601 = vmatprep.subr.mxu0 %v2405
    %2602 = vmatpush1.msra.mxu0 %v2404
    %2603 = vmatprep.subr.mxu0 %v2409
    %2604 = vmatpush1.msra.mxu0 %v2408
    %2605 = vmatprep.subr.mxu0 %v2413
    %2606 = vmatpush1.msra.mxu0 %v2412
    %2607 = vmatprep.subr.mxu0 %v2417
    %2608 = vmatpush1.msra.mxu0 %v2416
    %2609 = vmatprep.subr.mxu0 %v2421
    %2610 = vmatpush1.msra.mxu0 %v2420
    %2611 = vmatprep.subr.mxu0 %v2425
    %2612 = vmatpush1.msra.mxu0 %v2424
    %2613 = vmatprep.subr.mxu0 %v2429
    %2614 = vmatpush1.msra.mxu0 %v2428
    %2615 = vmatprep.subr.mxu0 %v2433
    %2616 = vmatpush1.msra.mxu0 %v2432
    %2617 = vmatprep.subr.mxu0 %v2437
    %2618 = vmatpush1.msra.mxu0 %v2436
    %2619 = vmatprep.subr.mxu0 %v2441
    %2620 = vmatpush1.msra.mxu0 %v2440
    %2621 = vmatprep.subr.mxu0 %v2445
    %2622 = vmatpush1.msra.mxu0 %v2444
    %2623 = vmatprep.subr.mxu0 %v2449
    %2624 = vmatpush1.msra.mxu0 %v2448
    %2625 = vmatprep.subr.mxu0 %v2453
    %2626 = vmatpush1.msra.mxu0 %v2452
    %2627 = vmatprep.subr.mxu0 %v2457
    %2628 = vmatpush1.msra.mxu0 %v2456
    %2629 = vmatprep.subr.mxu0 %v2461
    %2630 = vmatpush1.msra.mxu0 %v2460
    %2631 = vmatprep.subr.mxu0 %v2465
    %2632 = vmatpush1.msra.mxu0 %v2464
    %2633 = vmatprep.subr.mxu0 %v2469
    %2634 = vmatpush1.msra.mxu0 %v2468
    %2635 = vmatprep.subr.mxu0 %v2473
    %2636 = vmatpush1.msra.mxu0 %v2472
    %2637 = vmatprep.subr.mxu0 %v2477
    %2638 = vmatpush1.msra.mxu0 %v2476
    %2639 = vmatprep.subr.mxu0 %v2481
    %2640 = vmatpush1.msra.mxu0 %v2480
    %2641 = vmatprep.subr.mxu0 %v2485
    %2642 = vmatpush1.msra.mxu0 %v2484
    %2643 = vmatprep.mubr.f32.mxu0 %v2357
    %2644 = vmatmul.mubr.f32.gmra.mrb[0].mxu0 %v2356
    %v2645 = vpop.f32.mrb[0].mxu0
    %v2646 = vadd.f32 %v2499, %v2645
    %v2647 = vpop.f32.mrb[0].mxu0
    %v2648 = vadd.f32 %v2503, %v2647
    %2649 = vdwg.mxu0
    %v2650 = vxor.u32 %v2575, 2147483648
    %v2651 = vmul.f32 %v2650, 1.442695
    %v2652 = vpow.pop %v2651
    %v2653 = vadd.f32 %v2652, 1.0
    %v2654 = vrcp.pop %v2653
    %v2655 = vmul.f32 1.0, %v2654
    %v2656 = vxor.u32 %v2577, 2147483648
    %v2657 = vmul.f32 %v2656, 1.442695
    %v2658 = vpow.pop %v2657
    %v2659 = vadd.f32 %v2658, 1.0
    %v2660 = vrcp.pop %v2659
    %v2661 = vmul.f32 1.0, %v2660
    %v2662 = vtanh.pop %v2646
    %v2663 = vxor.u32 %v2648, 2147483648
    %v2664 = vmul.f32 %v2663, 1.442695
    %v2665 = vpow.pop %v2664
    %v2666 = vadd.f32 %v2665, 1.0
    %v2667 = vrcp.pop %v2666
    %v2668 = vmul.f32 1.0, %v2667
    %v2669 = vmul.f32 %v2661, %v2347
    %v2670 = vmul.f32 %v2655, %v2662
    %v2671 = vadd.f32 %v2669, %v2670
    %v2672 = vtanh.pop %v2671
    %v2673 = vmul.f32 %v2668, %v2672
    %s2674 = scalar_lea.vmem [#allocation11], 56
    %2675 = vst [vmem:[%s2674] sm:$0xff] %v2673
    %2676 = vst [vmem:[#allocation12] sm:$0xff] %v2673
    %2677 = vst [vmem:[#allocation14] sm:$0xff] %v2671
    // Predicated region
    $region42: #{tpu_custom_call.1} parent=1 // pred_check
      _
    $region43: #{tpu_custom_call.1} parent=1 // pred_check_branch
      %2679 = sbr.rel (0) target = $region45
    $region44: #{tpu_custom_call.1} parent=1 // pred_region
      %s2681 = ssub.s32 1024, 1024
      %2682 = vsyncadd [#allocation5], %s2681
      %s2683 = sshll.u32 [#allocation11], 4
      %s2684 = int_to_ptr.vmem [resolvable:$true] %s2683
      %2689 = dma.vmem_to_hbm [thread:$0]  %s2684, 1024, %s5, [#allocation5], 128, 128, 8
    $region45: #{tpu_custom_call.1} parent=1 // pred_fallthru
      _
    // Predicated region
    $region46: #{tpu_custom_call.1} parent=1 // pred_check
      _
    $region47: #{tpu_custom_call.1} parent=1 // pred_check_branch
      %2691 = sbr.rel (0) target = $region49
    $region48: #{tpu_custom_call.1} parent=1 // pred_region
      %s2693 = ssub.s32 128, 128
      %2694 = vsyncadd [#allocation13], %s2693
      %s2696 = sshll.u32 [#allocation12], 4
      %s2697 = int_to_ptr.vmem [resolvable:$true] %s2696
      %2699 = dma.vmem_to_hbm [thread:$0]  %s2697, 128, %s6, [#allocation13]
    $region49: #{tpu_custom_call.1} parent=1 // pred_fallthru
      _
    // Predicated region
    $region50: #{tpu_custom_call.1} parent=1 // pred_check
      _
    $region51: #{tpu_custom_call.1} parent=1 // pred_check_branch
      %2701 = sbr.rel (0) target = $region53
    $region52: #{tpu_custom_call.1} parent=1 // pred_region
      %s2703 = ssub.s32 128, 128
      %2704 = vsyncadd [#allocation13], %s2703
      %s2706 = sshll.u32 [#allocation14], 4
      %s2707 = int_to_ptr.vmem [resolvable:$true] %s2706
      %2709 = dma.vmem_to_hbm [thread:$0]  %s2707, 128, %s7, [#allocation13]
    $region53: #{tpu_custom_call.1} parent=1 // pred_fallthru
      _
    // Predicated region
    $region54: #{tpu_custom_call.1} parent=1 // pred_check
      _
    $region55: #{tpu_custom_call.1} parent=1 // pred_check_branch
      %2711 = sbr.rel (0) target = $region57
    $region56: #{tpu_custom_call.1} parent=1 // pred_region
      %2712 = dma.done [#allocation5], 1024
    $region57: #{tpu_custom_call.1} parent=1 // pred_fallthru
      _
    // Predicated region
    $region58: #{tpu_custom_call.1} parent=1 // pred_check
      _
    $region59: #{tpu_custom_call.1} parent=1 // pred_check_branch
      %2714 = sbr.rel (0) target = $region61
    $region60: #{tpu_custom_call.1} parent=1 // pred_region
      %2715 = dma.done [#allocation13], 128
    $region61: #{tpu_custom_call.1} parent=1 // pred_fallthru
      _
    // Predicated region
    $region62: #{tpu_custom_call.1} parent=1 // pred_check
      _
    $region63: #{tpu_custom_call.1} parent=1 // pred_check_branch
      %2717 = sbr.rel (0) target = $region65
    $region64: #{tpu_custom_call.1} parent=1 // pred_region
      %2718 = dma.done [#allocation13], 128
    $region65: #{tpu_custom_call.1} parent=1 // pred_fallthru
      _
    %2719 = vsyncpa [#allocation4], 1
    %2720 = vsyncpa [#allocation7], 1
    %2721 = vsyncpa [#allocation10], 1
    %2722 = vsyncpa [#allocation5], 1
    %2723 = vsyncpa [#allocation13], 1

</llo_original>
